<compile_context>
chip_gen: v7x
topology: tpu7x:2x2x1
jax: 0.10.0
libtpu: 0.0.40
codegen_flags: <defaults>
</compile_context>

<pallas_src>
import jax
import jax.numpy as jnp
from jax import lax
from jax.experimental import pallas as pl
from jax.experimental.pallas import tpu as pltpu

# ----------------------------- small, deterministic config -----------------------------
B = 8                        # point clouds (objects); the batched/parallel axis
P = 64                       # points per cloud
IN_DIM = 6                   # xyz (3) + rgb (3)
NP1, S1, R1 = 16, 8, 0.2     # SA level 1: npoint, nsample, radius
NP2, S2, R2 = 8, 8, 0.4      # SA level 2
SA_MLPS = [[3, 16, 16, 32], [32, 32, 32, 64], [64, 64, 64, 32]]   # use_xyz adds +3 to input
HIDDEN = 32                  # config.hidden_size == SA_MLPS[-1][-1]
NUM_CLASSES = 10
BN_EPS = 1e-5
LN_EPS = 1e-12

OBJ_TILE = 4                 # objects per grid step (per-TensorCore tile on v7x)
NUM_TILES = B // OBJ_TILE
LANES = 128
assert B % OBJ_TILE == 0

# per-tile row counts
ROWS_L1 = OBJ_TILE * NP1 * S1      # 512: level-1 grouped rows
ROWS_L2 = OBJ_TILE * NP2 * S2      # 256: level-2 grouped rows
ROWS_L3 = OBJ_TILE * NP2           # 32 : level-2 centers (GroupAll input rows)
G2_COLS = OBJ_TILE * NP1           # 64 : tile-local one-hot width

# activation-slab column layout (one lane-dense (ROWS_L1, 128) slab per tile)
F1 = SA_MLPS[0][0] + 3             # 6: level-1 input channels (rel-xyz + rgb)
COL_G2 = 0
COL_X1 = COL_G2 + G2_COLS          # 64
COL_RX2 = COL_X1 + F1              # 70
COL_XYZ2 = COL_RX2 + 3             # 73
assert COL_XYZ2 + 3 <= LANES

# ----------------------------- weight / bias slab layout -------------------------------
C1_1, C1_2, C1_3 = SA_MLPS[0][1:]
C2_1, C2_2, C2_3 = SA_MLPS[1][1:]
C3_1, C3_2, C3_3 = SA_MLPS[2][1:]
F2 = SA_MLPS[1][0]                 # level-2 feature channels (level-1 output)
F3 = SA_MLPS[2][0]                 # level-3 feature channels (level-2 output)
assert C1_3 == F2 and C2_3 == F3 and C3_3 == HIDDEN

_WEIGHT_DEFS = [                   # (name, K, N); stacked along rows, 8-row aligned, 128 lanes
    ("w11", F1, C1_1), ("w12", C1_1, C1_2), ("w13", C1_2, C1_3),
    ("w21x", 3, C2_1), ("w21f", F2, C2_1), ("w22", C2_1, C2_2), ("w23", C2_2, C2_3),
    ("w31x", 3, C3_1), ("w31f", F3, C3_1), ("w32", C3_1, C3_2), ("w33", C3_2, C3_3),
    ("wh1", HIDDEN, HIDDEN // 2),            # fc folded into head's first Linear
    ("wh2", HIDDEN // 2, NUM_CLASSES),       # LN affine folded into head's last Linear
]
_BIAS_DEFS = [                     # (name, N); one row per bias in a (16, 128) slab
    ("b11", C1_1), ("b12", C1_2), ("b13", C1_3),
    ("b21", C2_1), ("b22", C2_2), ("b23", C2_3),
    ("b31", C3_1), ("b32", C3_2), ("b33", C3_3),
    ("bh1", HIDDEN // 2), ("bh2", NUM_CLASSES),
]


def _pad8(n):
    return -(-n // 8) * 8


W_OFF = {}
_r = 0
for _name, _k, _n in _WEIGHT_DEFS:
    W_OFF[_name] = (_r, _k, _n)
    _r += _pad8(_k)
W_ROWS = _pad8(_r)                 # 392

B_OFF = {name: (i, n) for i, (name, n) in enumerate(_BIAS_DEFS)}
B_ROWS = _pad8(len(_BIAS_DEFS))    # 16


# ----------------------------------- fused Pallas kernel --------------------------------
def _fused_kernel(act_ref, w_ref, b_ref, o_ref):
    """One object tile: 3x (shared MLP + max-pool) -> folded fc+head -> padded logits tile.

    act_ref : (ROWS_L1, 128) packed activation slab for this tile
    w_ref   : (W_ROWS, 128)  packed (BN-folded / algebra-folded) weight slab
    b_ref   : (B_ROWS, 128)  packed bias slab
    o_ref   : (OBJ_TILE, 128) lane-padded logits (cols >= NUM_CLASSES are zero)
    """

    def W(name):
        r, k, n = W_OFF[name]
        return w_ref[r:r + k, :n]

    def Bias(name):
        row, n = B_OFF[name]
        return b_ref[row:row + 1, :n]

    def dense_relu(v, wn, bn):
        return jnp.maximum(
            jnp.dot(v, W(wn), preferred_element_type=jnp.float32) + Bias(bn), 0.0)

    def pool_max(h, groups, samples):
        # (groups*samples, C) -> (groups, C): max over `samples` consecutive rows per group.
        # TODO(synk): verify with pl.lower_as_mlir that this lowers to sublane reduces (no
        #             relayout copies); restructure as a jnp.maximum tree over static row
        #             slices if copies appear.
        return jnp.max(h.reshape(groups, samples, h.shape[-1]), axis=1)

    # ---- static sub-window loads from the single packed activation slab ----
    g2 = act_ref[0:ROWS_L2, COL_G2:COL_G2 + G2_COLS]          # (256, 64) one-hot gather matrix
    x1 = act_ref[:, COL_X1:COL_X1 + F1]                       # (512, 6)  level-1 grouped input
    rx2 = act_ref[0:ROWS_L2, COL_RX2:COL_RX2 + 3]             # (256, 3)  level-2 relative xyz
    xyz3 = act_ref[0:ROWS_L3, COL_XYZ2:COL_XYZ2 + 3]          # (32, 3)   level-2 centers (abs)

    # ---- SA level 1: MLP -> max over S1 neighbors ----
    h = dense_relu(x1, "w11", "b11")
    h = dense_relu(h, "w12", "b12")
    h = dense_relu(h, "w13", "b13")
    feats1 = pool_max(h, OBJ_TILE * NP1, S1)                  # (64, 32)

    # ---- SA level 2: gather level-1 feats (one-hot matmul), split-concat MLP, max over S2 ----
    gath = jnp.dot(g2, feats1, preferred_element_type=jnp.float32)        # (256, 32)
    h = jnp.maximum(
        jnp.dot(rx2, W("w21x"), preferred_element_type=jnp.float32)
        + jnp.dot(gath, W("w21f"), preferred_element_type=jnp.float32)
        + Bias("b21"), 0.0)
    h = dense_relu(h, "w22", "b22")
    h = dense_relu(h, "w23", "b23")
    feats2 = pool_max(h, OBJ_TILE * NP2, S2)                  # (32, 64)

    # ---- SA level 3 (GroupAll): concat([abs xyz, feats]) via split weights, max over NP2 ----
    h = jnp.maximum(
        jnp.dot(xyz3, W("w31x"), preferred_element_type=jnp.float32)
        + jnp.dot(feats2, W("w31f"), preferred_element_type=jnp.float32)
        + Bias("b31"), 0.0)
    h = dense_relu(h, "w32", "b32")
    h = dense_relu(h, "w33", "b33")
    emb = pool_max(h, OBJ_TILE, NP2)                          # (OBJ_TILE, HIDDEN)

    # ---- head: (fc ∘ dropout ∘ Linear) folded -> ReLU -> LayerNorm(no affine) -> folded Linear
    # TODO(synk): training-mode nn.Dropout would need pltpu.prng_*; inference is identity.
    h1 = jnp.maximum(
        jnp.dot(emb, W("wh1"), preferred_element_type=jnp.float32) + Bias("bh1"), 0.0)
    mu = jnp.mean(h1, axis=-1, keepdims=True)
    var = jnp.mean((h1 - mu) ** 2, axis=-1, keepdims=True)
    norm = (h1 - mu) * lax.rsqrt(var + LN_EPS)

    r2, k2, _ = W_OFF["wh2"]
    row2 = B_OFF["bh2"][0]
    # full 128-lane matmul/store (weight & bias columns >= NUM_CLASSES are zero) -> unmasked vst
    o_ref[...] = (jnp.dot(norm, w_ref[r2:r2 + k2, :], preferred_element_type=jnp.float32)
                  + b_ref[row2:row2 + 1, :])


def fused_forward(act, wslab, bslab):
    return pl.pallas_call(
        _fused_kernel,
        out_shape=jax.ShapeDtypeStruct((NUM_TILES, OBJ_TILE, LANES), jnp.float32),
        grid=(NUM_TILES,),
        in_specs=[
            pl.BlockSpec((None, ROWS_L1, LANES), lambda i: (i, 0, 0)),   # per-tile activations
            pl.BlockSpec((W_ROWS, LANES), lambda i: (0, 0)),             # weights: fetched once
            pl.BlockSpec((B_ROWS, LANES), lambda i: (0, 0)),             # biases : fetched once
        ],
        out_specs=pl.BlockSpec((None, OBJ_TILE, LANES), lambda i: (i, 0, 0)),
        compiler_params=pltpu.CompilerParams(
            dimension_semantics=("parallel",)),                          # both TCs on v7x
    )(act, wslab, bslab)


# --------------------------- plain-JAX glue (data-dependent indexing) -------------------
# TODO(synk): FPS / ball-query are data-dependent argmax/compare loops producing indices only;
#             they stay as XLA glue outside the kernel.
def furthest_point_sample(xyz, npoint):
    """Matches pointnet2 CUDA FPS: start at index 0, dists init 1e10."""
    Bn, Pn, _ = xyz.shape
    idxs = jnp.zeros((Bn, npoint), dtype=jnp.int32)
    dists = jnp.full((Bn, Pn), 1e10, dtype=jnp.float32)
    farthest = jnp.zeros((Bn,), dtype=jnp.int32)
    for i in range(npoint):
        idxs = idxs.at[:, i].set(farthest)
        centroid = jnp.take_along_axis(xyz, farthest[:, None, None], axis=1)   # (B,1,3)
        d = jnp.sum((xyz - centroid) ** 2, axis=-1)
        dists = jnp.minimum(dists, d)
        farthest = jnp.argmax(dists, axis=-1).astype(jnp.int32)
    return idxs


def ball_query(radius, nsample, xyz, new_xyz):
    """Matches pointnet2 CUDA ball_query: first nsample points with d2 < r^2 (index order);
    unfilled slots padded with the first in-ball index."""
    d2 = jnp.sum((new_xyz[:, :, None, :] - xyz[:, None, :, :]) ** 2, axis=-1)  # (B,Np,P)
    in_ball = d2 < radius * radius
    rank = jnp.cumsum(in_ball.astype(jnp.int32), axis=-1) - 1
    rank = jnp.where(in_ball, rank, -1)
    match = rank[:, :, None, :] == jnp.arange(nsample)[None, None, :, None]    # (B,Np,ns,P)
    has = jnp.any(match, axis=-1)
    idx = jnp.argmax(match, axis=-1).astype(jnp.int32)
    first = jnp.argmax(in_ball, axis=-1).astype(jnp.int32)
    return jnp.where(has, idx, first[:, :, None])


def group_points(pts, idx):
    """pts: (B,P,C), idx: (B,Np,S) -> (B,Np,S,C)."""
    Bn, Np, S = idx.shape
    C = pts.shape[-1]
    flat = jnp.take_along_axis(pts, idx.reshape(Bn, Np * S, 1), axis=1)
    return flat.reshape(Bn, Np, S, C)


# -------------------------------------- parameters --------------------------------------
def init_params(key):
    """Raw (PyTorch-style) params: conv weights + BN stats/affine, fc, head."""
    keys = jax.random.split(key, 32)
    kit = iter(keys)

    sa = []
    for mlps in SA_MLPS:
        cin = mlps[0] + 3                     # use_xyz=True
        layers = []
        for cout in mlps[1:]:
            w = jax.random.normal(next(kit), (cin, cout), jnp.float32) / jnp.sqrt(float(cin))
            bn = dict(gamma=jnp.ones((cout,), jnp.float32),
                      beta=jnp.zeros((cout,), jnp.float32),
                      mean=jnp.zeros((cout,), jnp.float32),
                      var=jnp.ones((cout,), jnp.float32))
            layers.append((w, bn))
            cin = cout
        sa.append(layers)

    def linear(kk, cin, cout):
        w = jax.random.normal(kk, (cin, cout), jnp.float32) / jnp.sqrt(float(cin))
        b = jnp.zeros((cout,), jnp.float32)
        return w, b

    return {
        "sa": sa,
        "fc": linear(next(kit), HIDDEN, HIDDEN),                  # PointNetPP.fc
        "head_l1": linear(next(kit), HIDDEN, HIDDEN // 2),
        "head_ln": (jnp.ones((HIDDEN // 2,), jnp.float32),
                    jnp.zeros((HIDDEN // 2,), jnp.float32)),
        "head_l2": linear(next(kit), HIDDEN // 2, NUM_CLASSES),
    }


def pack_params(params):
    """BN fold + fc/LayerNorm algebra folds + slab packing (one-time, outside the kernel)."""
    folded = {}

    # BN(eval) folded into conv weights with the general formula (valid for trained stats too).
    names = [["w11", "w12", "w13"], ["w21", "w22", "w23"], ["w31", "w32", "w33"]]
    for lvl, layers in enumerate(params["sa"]):
        for li, (w, bn) in enumerate(layers):
            scale = bn["gamma"] / jnp.sqrt(bn["var"] + BN_EPS)
            folded[names[lvl][li]] = w * scale[None, :]
            folded["b" + names[lvl][li][1:]] = bn["beta"] - bn["mean"] * scale

    # Split first-layer weights of SA levels 2/3 into xyz / feature parts (use_xyz concat).
    w21 = folded.pop("w21")
    folded["w21x"], folded["w21f"] = w21[:3], w21[3:]
    w31 = folded.pop("w31")
    folded["w31x"], folded["w31f"] = w31[:3], w31[3:]

    # PointNetPP.fc composed with head's first Linear (no nonlinearity / eval-dropout between).
    wfc, bfc = params["fc"]
    wh1, bh1 = params["head_l1"]
    folded["wh1"] = wfc @ wh1
    folded["bh1"] = bfc @ wh1 + bh1

    # LayerNorm affine folded into the final Linear.
    gln, bln = params["head_ln"]
    wh2, bh2 = params["head_l2"]
    folded["wh2"] = wh2 * gln[:, None]
    folded["bh2"] = bln @ wh2 + bh2

    # Pack into lane-dense slabs.
    # TODO(synk): weights / one-hot gather matrix could be cast to bf16 to halve DMA bytes;
    #             kept f32 here to preserve fp32 reference numerics.
    wslab = jnp.zeros((W_ROWS, LANES), jnp.float32)
    for name, (r, k, n) in W_OFF.items():
        wslab = wslab.at[r:r + k, :n].set(folded[name])
    bslab = jnp.zeros((B_ROWS, LANES), jnp.float32)
    for name, (row, n) in B_OFF.items():
        bslab = bslab.at[row, :n].set(folded[name])
    return wslab, bslab


# --------------------------------------- forward ----------------------------------------
def pcd_classifier_forward(obj_pcds, wslab, bslab):
    # break_up_pc: xyz = first 3 channels, remaining channels are point features (rgb).
    xyz = obj_pcds[..., :3]                                     # (B, P, 3)
    rgb = obj_pcds[..., 3:]                                     # (B, P, 3)

    # ---- index generation (depends ONLY on xyz -> fully precomputable before the kernel) ----
    # SA level 1
    fps1 = furthest_point_sample(xyz, NP1)                      # (B, NP1)
    cxyz1 = jnp.take_along_axis(xyz, fps1[..., None], axis=1)   # (B, NP1, 3)
    idx1 = ball_query(R1, S1, xyz, cxyz1)                       # (B, NP1, S1)
    gxyz1 = group_points(xyz, idx1) - cxyz1[:, :, None, :]      # relative coords
    gfeat1 = group_points(rgb, idx1)
    x1 = jnp.concatenate([gxyz1, gfeat1], axis=-1)              # (B, NP1, S1, 6)

    # SA level 2
    fps2 = furthest_point_sample(cxyz1, NP2)                    # (B, NP2)
    cxyz2 = jnp.take_along_axis(cxyz1, fps2[..., None], axis=1) # (B, NP2, 3)
    idx2 = ball_query(R2, S2, cxyz1, cxyz2)                     # (B, NP2, S2)
    relxyz2 = group_points(cxyz1, idx2) - cxyz2[:, :, None, :]  # (B, NP2, S2, 3)

    # Tile-local block-diagonal one-hot gather: row (b,p,s) picks feats1 row
    # (b mod OBJ_TILE)*NP1 + idx2[b,p,s] within its own tile.
    local_obj = (jnp.arange(B, dtype=jnp.int32) % OBJ_TILE)[:, None, None]
    col = local_obj * NP1 + idx2                                # (B, NP2, S2)
    gmat2 = (col[..., None] == jnp.arange(G2_COLS)).astype(jnp.float32)

    # ---- pack everything the kernel consumes into one lane-dense slab per object tile ----
    act = jnp.zeros((NUM_TILES, ROWS_L1, LANES), jnp.float32)
    act = act.at[:, :ROWS_L2, COL_G2:COL_G2 + G2_COLS].set(
        gmat2.reshape(NUM_TILES, ROWS_L2, G2_COLS))
    act = act.at[:, :, COL_X1:COL_X1 + F1].set(x1.reshape(NUM_TILES, ROWS_L1, F1))
    act = act.at[:, :ROWS_L2, COL_RX2:COL_RX2 + 3].set(relxyz2.reshape(NUM_TILES, ROWS_L2, 3))
    act = act.at[:, :ROWS_L3, COL_XYZ2:COL_XYZ2 + 3].set(cxyz2.reshape(NUM_TILES, ROWS_L3, 3))

    # ---- whole feature path + head in one fused, tile-parallel Pallas kernel ----
    out = fused_forward(act, wslab, bslab)                      # (NUM_TILES, OBJ_TILE, 128)
    return out.reshape(B, LANES)[:, :NUM_CLASSES]               # (B, NUM_CLASSES)


# ----------------------------------------- main ------------------------------------------
if __name__ == "__main__":
    key = jax.random.PRNGKey(0)
    pkey, xkey = jax.random.split(key)
    params = init_params(pkey)
    wslab, bslab = pack_params(params)
    obj_pcds = jax.random.uniform(xkey, (B, P, IN_DIM), dtype=jnp.float32)

    fwd = jax.jit(pcd_classifier_forward)
    logits = fwd(obj_pcds, wslab, bslab)
    jax.block_until_ready(logits)

    assert logits.shape == (B, NUM_CLASSES), logits.shape
    assert bool(jnp.all(jnp.isfinite(logits)))
    print("KERNEL_OK")
</pallas_src>

<mosaic_0001>
module attributes {stable_mosaic.version = 11 : i64} {
  func.func @_fused_kernel(%arg0: i32, %arg1: memref<1x512x128xf32, #tpu.memory_space<vmem>>, %arg2: memref<392x128xf32, #tpu.memory_space<vmem>>, %arg3: memref<16x128xf32, #tpu.memory_space<vmem>>, %arg4: memref<1x4x128xf32, #tpu.memory_space<vmem>>) attributes {dimension_semantics = [#tpu.dimension_semantics<parallel>], iteration_bounds = array<i64: 2>, scalar_prefetch = 0 : i64, scratch_operands = 0 : i64, tpu.core_type = #tpu.core_type<tc>, window_params = [{transform_indices = @transform_0, window_bounds = array<i64: 1, 512, 128>}, {pipeline_mode = #tpu.pipeline_mode<synchronous>, transform_indices = @transform_1, window_bounds = array<i64: 392, 128>}, {pipeline_mode = #tpu.pipeline_mode<synchronous>, transform_indices = @transform_2, window_bounds = array<i64: 16, 128>}, {transform_indices = @transform_3, window_bounds = array<i64: 1, 4, 128>}]} {
    %c0 = arith.constant 0 : index
    %c0_0 = arith.constant 0 : index
    %c0_1 = arith.constant 0 : index
    %0 = vector.load %arg1[%c0, %c0_0, %c0_1] : memref<1x512x128xf32, #tpu.memory_space<vmem>>, vector<1x256x64xf32>
    %1 = vector.shape_cast %0 : vector<1x256x64xf32> to vector<256x64xf32>
    %c0_2 = arith.constant 0 : index
    %c0_3 = arith.constant 0 : index
    %c64 = arith.constant 64 : index
    %2 = vector.load %arg1[%c0_2, %c0_3, %c64] : memref<1x512x128xf32, #tpu.memory_space<vmem>>, vector<1x512x6xf32>
    %3 = vector.shape_cast %2 : vector<1x512x6xf32> to vector<512x6xf32>
    %c0_4 = arith.constant 0 : index
    %c0_5 = arith.constant 0 : index
    %c70 = arith.constant 70 : index
    %4 = vector.load %arg1[%c0_4, %c0_5, %c70] : memref<1x512x128xf32, #tpu.memory_space<vmem>>, vector<1x256x3xf32>
    %5 = vector.shape_cast %4 : vector<1x256x3xf32> to vector<256x3xf32>
    %c0_6 = arith.constant 0 : index
    %c0_7 = arith.constant 0 : index
    %c73 = arith.constant 73 : index
    %6 = vector.load %arg1[%c0_6, %c0_7, %c73] : memref<1x512x128xf32, #tpu.memory_space<vmem>>, vector<1x32x3xf32>
    %7 = vector.shape_cast %6 : vector<1x32x3xf32> to vector<32x3xf32>
    %c0_8 = arith.constant 0 : index
    %c0_9 = arith.constant 0 : index
    %8 = vector.load %arg2[%c0_8, %c0_9] : memref<392x128xf32, #tpu.memory_space<vmem>>, vector<6x16xf32>
    %cst = arith.constant dense<0.000000e+00> : vector<512x16xf32>
    %9 = tpu.matmul %3, %8, %cst {dimension_numbers = #tpu.dot_dimension_numbers<[1], [0], [0], [1], [0, 0, 1, 1], [], []>} : vector<512x6xf32>, vector<6x16xf32>, vector<512x16xf32> -> vector<512x16xf32>
    %c0_10 = arith.constant 0 : index
    %c0_11 = arith.constant 0 : index
    %10 = vector.load %arg3[%c0_10, %c0_11] : memref<16x128xf32, #tpu.memory_space<vmem>>, vector<1x16xf32>
    %11 = vector.broadcast %10 : vector<1x16xf32> to vector<512x16xf32>
    %12 = arith.addf %9, %11 : vector<512x16xf32>
    %cst_12 = arith.constant 0.000000e+00 : f32
    %13 = vector.broadcast %cst_12 : f32 to vector<512x16xf32>
    %14 = arith.maximumf %12, %13 : vector<512x16xf32>
    %c8 = arith.constant 8 : index
    %c0_13 = arith.constant 0 : index
    %15 = vector.load %arg2[%c8, %c0_13] : memref<392x128xf32, #tpu.memory_space<vmem>>, vector<16x16xf32>
    %cst_14 = arith.constant dense<0.000000e+00> : vector<512x16xf32>
    %16 = tpu.matmul %14, %15, %cst_14 {dimension_numbers = #tpu.dot_dimension_numbers<[1], [0], [0], [1], [0, 0, 1, 1], [], []>} : vector<512x16xf32>, vector<16x16xf32>, vector<512x16xf32> -> vector<512x16xf32>
    %c1 = arith.constant 1 : index
    %c0_15 = arith.constant 0 : index
    %17 = vector.load %arg3[%c1, %c0_15] : memref<16x128xf32, #tpu.memory_space<vmem>>, vector<1x16xf32>
    %18 = vector.broadcast %17 : vector<1x16xf32> to vector<512x16xf32>
    %19 = arith.addf %16, %18 : vector<512x16xf32>
    %cst_16 = arith.constant 0.000000e+00 : f32
    %20 = vector.broadcast %cst_16 : f32 to vector<512x16xf32>
    %21 = arith.maximumf %19, %20 : vector<512x16xf32>
    %c24 = arith.constant 24 : index
    %c0_17 = arith.constant 0 : index
    %22 = vector.load %arg2[%c24, %c0_17] : memref<392x128xf32, #tpu.memory_space<vmem>>, vector<16x32xf32>
    %cst_18 = arith.constant dense<0.000000e+00> : vector<512x32xf32>
    %23 = tpu.matmul %21, %22, %cst_18 {dimension_numbers = #tpu.dot_dimension_numbers<[1], [0], [0], [1], [0, 0, 1, 1], [], []>} : vector<512x16xf32>, vector<16x32xf32>, vector<512x32xf32> -> vector<512x32xf32>
    %c2 = arith.constant 2 : index
    %c0_19 = arith.constant 0 : index
    %24 = vector.load %arg3[%c2, %c0_19] : memref<16x128xf32, #tpu.memory_space<vmem>>, vector<1x32xf32>
    %25 = vector.broadcast %24 : vector<1x32xf32> to vector<512x32xf32>
    %26 = arith.addf %23, %25 : vector<512x32xf32>
    %cst_20 = arith.constant 0.000000e+00 : f32
    %27 = vector.broadcast %cst_20 : f32 to vector<512x32xf32>
    %28 = arith.maximumf %26, %27 : vector<512x32xf32>
    %29 = vector.shape_cast %28 : vector<512x32xf32> to vector<64x8x32xf32>
    %cst_21 = arith.constant dense<0xFF800000> : vector<64x32xf32>
    %30 = vector.multi_reduction <maximumf>, %29, %cst_21 [1] : vector<64x8x32xf32> to vector<64x32xf32>
    %cst_22 = arith.constant dense<0.000000e+00> : vector<256x32xf32>
    %31 = tpu.matmul %1, %30, %cst_22 {dimension_numbers = #tpu.dot_dimension_numbers<[1], [0], [0], [1], [0, 0, 1, 1], [], []>} : vector<256x64xf32>, vector<64x32xf32>, vector<256x32xf32> -> vector<256x32xf32>
    %c40 = arith.constant 40 : index
    %c0_23 = arith.constant 0 : index
    %32 = vector.load %arg2[%c40, %c0_23] : memref<392x128xf32, #tpu.memory_space<vmem>>, vector<3x32xf32>
    %cst_24 = arith.constant dense<0.000000e+00> : vector<256x32xf32>
    %33 = tpu.matmul %5, %32, %cst_24 {dimension_numbers = #tpu.dot_dimension_numbers<[1], [0], [0], [1], [0, 0, 1, 1], [], []>} : vector<256x3xf32>, vector<3x32xf32>, vector<256x32xf32> -> vector<256x32xf32>
    %c48 = arith.constant 48 : index
    %c0_25 = arith.constant 0 : index
    %34 = vector.load %arg2[%c48, %c0_25] : memref<392x128xf32, #tpu.memory_space<vmem>>, vector<32x32xf32>
    %cst_26 = arith.constant dense<0.000000e+00> : vector<256x32xf32>
    %35 = tpu.matmul %31, %34, %cst_26 {dimension_numbers = #tpu.dot_dimension_numbers<[1], [0], [0], [1], [0, 0, 1, 1], [], []>} : vector<256x32xf32>, vector<32x32xf32>, vector<256x32xf32> -> vector<256x32xf32>
    %36 = arith.addf %33, %35 : vector<256x32xf32>
    %c3 = arith.constant 3 : index
    %c0_27 = arith.constant 0 : index
    %37 = vector.load %arg3[%c3, %c0_27] : memref<16x128xf32, #tpu.memory_space<vmem>>, vector<1x32xf32>
    %38 = vector.broadcast %37 : vector<1x32xf32> to vector<256x32xf32>
    %39 = arith.addf %36, %38 : vector<256x32xf32>
    %cst_28 = arith.constant 0.000000e+00 : f32
    %40 = vector.broadcast %cst_28 : f32 to vector<256x32xf32>
    %41 = arith.maximumf %39, %40 : vector<256x32xf32>
    %c80 = arith.constant 80 : index
    %c0_29 = arith.constant 0 : index
    %42 = vector.load %arg2[%c80, %c0_29] : memref<392x128xf32, #tpu.memory_space<vmem>>, vector<32x32xf32>
    %cst_30 = arith.constant dense<0.000000e+00> : vector<256x32xf32>
    %43 = tpu.matmul %41, %42, %cst_30 {dimension_numbers = #tpu.dot_dimension_numbers<[1], [0], [0], [1], [0, 0, 1, 1], [], []>} : vector<256x32xf32>, vector<32x32xf32>, vector<256x32xf32> -> vector<256x32xf32>
    %c4 = arith.constant 4 : index
    %c0_31 = arith.constant 0 : index
    %44 = vector.load %arg3[%c4, %c0_31] : memref<16x128xf32, #tpu.memory_space<vmem>>, vector<1x32xf32>
    %45 = vector.broadcast %44 : vector<1x32xf32> to vector<256x32xf32>
    %46 = arith.addf %43, %45 : vector<256x32xf32>
    %cst_32 = arith.constant 0.000000e+00 : f32
    %47 = vector.broadcast %cst_32 : f32 to vector<256x32xf32>
    %48 = arith.maximumf %46, %47 : vector<256x32xf32>
    %c112 = arith.constant 112 : index
    %c0_33 = arith.constant 0 : index
    %49 = vector.load %arg2[%c112, %c0_33] : memref<392x128xf32, #tpu.memory_space<vmem>>, vector<32x64xf32>
    %cst_34 = arith.constant dense<0.000000e+00> : vector<256x64xf32>
    %50 = tpu.matmul %48, %49, %cst_34 {dimension_numbers = #tpu.dot_dimension_numbers<[1], [0], [0], [1], [0, 0, 1, 1], [], []>} : vector<256x32xf32>, vector<32x64xf32>, vector<256x64xf32> -> vector<256x64xf32>
    %c5 = arith.constant 5 : index
    %c0_35 = arith.constant 0 : index
    %51 = vector.load %arg3[%c5, %c0_35] : memref<16x128xf32, #tpu.memory_space<vmem>>, vector<1x64xf32>
    %52 = vector.broadcast %51 : vector<1x64xf32> to vector<256x64xf32>
    %53 = arith.addf %50, %52 : vector<256x64xf32>
    %cst_36 = arith.constant 0.000000e+00 : f32
    %54 = vector.broadcast %cst_36 : f32 to vector<256x64xf32>
    %55 = arith.maximumf %53, %54 : vector<256x64xf32>
    %56 = vector.shape_cast %55 : vector<256x64xf32> to vector<32x8x64xf32>
    %cst_37 = arith.constant dense<0xFF800000> : vector<32x64xf32>
    %57 = vector.multi_reduction <maximumf>, %56, %cst_37 [1] : vector<32x8x64xf32> to vector<32x64xf32>
    %c144 = arith.constant 144 : index
    %c0_38 = arith.constant 0 : index
    %58 = vector.load %arg2[%c144, %c0_38] : memref<392x128xf32, #tpu.memory_space<vmem>>, vector<3x64xf32>
    %cst_39 = arith.constant dense<0.000000e+00> : vector<32x64xf32>
    %59 = tpu.matmul %7, %58, %cst_39 {dimension_numbers = #tpu.dot_dimension_numbers<[1], [0], [0], [1], [0, 0, 1, 1], [], []>} : vector<32x3xf32>, vector<3x64xf32>, vector<32x64xf32> -> vector<32x64xf32>
    %c152 = arith.constant 152 : index
    %c0_40 = arith.constant 0 : index
    %60 = vector.load %arg2[%c152, %c0_40] : memref<392x128xf32, #tpu.memory_space<vmem>>, vector<64x64xf32>
    %cst_41 = arith.constant dense<0.000000e+00> : vector<32x64xf32>
    %61 = tpu.matmul %57, %60, %cst_41 {dimension_numbers = #tpu.dot_dimension_numbers<[1], [0], [0], [1], [0, 0, 1, 1], [], []>} : vector<32x64xf32>, vector<64x64xf32>, vector<32x64xf32> -> vector<32x64xf32>
    %62 = arith.addf %59, %61 : vector<32x64xf32>
    %c6 = arith.constant 6 : index
    %c0_42 = arith.constant 0 : index
    %63 = vector.load %arg3[%c6, %c0_42] : memref<16x128xf32, #tpu.memory_space<vmem>>, vector<1x64xf32>
    %64 = vector.broadcast %63 : vector<1x64xf32> to vector<32x64xf32>
    %65 = arith.addf %62, %64 : vector<32x64xf32>
    %cst_43 = arith.constant 0.000000e+00 : f32
    %66 = vector.broadcast %cst_43 : f32 to vector<32x64xf32>
    %67 = arith.maximumf %65, %66 : vector<32x64xf32>
    %c216 = arith.constant 216 : index
    %c0_44 = arith.constant 0 : index
    %68 = vector.load %arg2[%c216, %c0_44] : memref<392x128xf32, #tpu.memory_space<vmem>>, vector<64x64xf32>
    %cst_45 = arith.constant dense<0.000000e+00> : vector<32x64xf32>
    %69 = tpu.matmul %67, %68, %cst_45 {dimension_numbers = #tpu.dot_dimension_numbers<[1], [0], [0], [1], [0, 0, 1, 1], [], []>} : vector<32x64xf32>, vector<64x64xf32>, vector<32x64xf32> -> vector<32x64xf32>
    %c7 = arith.constant 7 : index
    %c0_46 = arith.constant 0 : index
    %70 = vector.load %arg3[%c7, %c0_46] : memref<16x128xf32, #tpu.memory_space<vmem>>, vector<1x64xf32>
    %71 = vector.broadcast %70 : vector<1x64xf32> to vector<32x64xf32>
    %72 = arith.addf %69, %71 : vector<32x64xf32>
    %cst_47 = arith.constant 0.000000e+00 : f32
    %73 = vector.broadcast %cst_47 : f32 to vector<32x64xf32>
    %74 = arith.maximumf %72, %73 : vector<32x64xf32>
    %c280 = arith.constant 280 : index
    %c0_48 = arith.constant 0 : index
    %75 = vector.load %arg2[%c280, %c0_48] : memref<392x128xf32, #tpu.memory_space<vmem>>, vector<64x32xf32>
    %cst_49 = arith.constant dense<0.000000e+00> : vector<32x32xf32>
    %76 = tpu.matmul %74, %75, %cst_49 {dimension_numbers = #tpu.dot_dimension_numbers<[1], [0], [0], [1], [0, 0, 1, 1], [], []>} : vector<32x64xf32>, vector<64x32xf32>, vector<32x32xf32> -> vector<32x32xf32>
    %c8_50 = arith.constant 8 : index
    %c0_51 = arith.constant 0 : index
    %77 = vector.load %arg3[%c8_50, %c0_51] : memref<16x128xf32, #tpu.memory_space<vmem>>, vector<1x32xf32>
    %78 = vector.broadcast %77 : vector<1x32xf32> to vector<32x32xf32>
    %79 = arith.addf %76, %78 : vector<32x32xf32>
    %cst_52 = arith.constant 0.000000e+00 : f32
    %80 = vector.broadcast %cst_52 : f32 to vector<32x32xf32>
    %81 = arith.maximumf %79, %80 : vector<32x32xf32>
    %82 = vector.shape_cast %81 : vector<32x32xf32> to vector<4x8x32xf32>
    %cst_53 = arith.constant dense<0xFF800000> : vector<4x32xf32>
    %83 = vector.multi_reduction <maximumf>, %82, %cst_53 [1] : vector<4x8x32xf32> to vector<4x32xf32>
    %c344 = arith.constant 344 : index
    %c0_54 = arith.constant 0 : index
    %84 = vector.load %arg2[%c344, %c0_54] : memref<392x128xf32, #tpu.memory_space<vmem>>, vector<32x16xf32>
    %cst_55 = arith.constant dense<0.000000e+00> : vector<4x16xf32>
    %85 = tpu.matmul %83, %84, %cst_55 {dimension_numbers = #tpu.dot_dimension_numbers<[1], [0], [0], [1], [0, 0, 1, 1], [], []>} : vector<4x32xf32>, vector<32x16xf32>, vector<4x16xf32> -> vector<4x16xf32>
    %c9 = arith.constant 9 : index
    %c0_56 = arith.constant 0 : index
    %86 = vector.load %arg3[%c9, %c0_56] : memref<16x128xf32, #tpu.memory_space<vmem>>, vector<1x16xf32>
    %87 = vector.broadcast %86 : vector<1x16xf32> to vector<4x16xf32>
    %88 = arith.addf %85, %87 : vector<4x16xf32>
    %cst_57 = arith.constant 0.000000e+00 : f32
    %89 = vector.broadcast %cst_57 : f32 to vector<4x16xf32>
    %90 = arith.maximumf %88, %89 : vector<4x16xf32>
    %cst_58 = arith.constant dense<0.000000e+00> : vector<4xf32>
    %91 = vector.multi_reduction <add>, %90, %cst_58 [1] : vector<4x16xf32> to vector<4xf32>
    %92 = vector.shape_cast %91 : vector<4xf32> to vector<4x1xf32>
    %cst_59 = arith.constant 1.600000e+01 : f32
    %93 = vector.broadcast %cst_59 : f32 to vector<4x1xf32>
    %94 = arith.divf %92, %93 : vector<4x1xf32>
    %95 = vector.broadcast %94 : vector<4x1xf32> to vector<4x16xf32>
    %96 = arith.subf %90, %95 : vector<4x16xf32>
    %97 = arith.mulf %96, %96 : vector<4x16xf32>
    %cst_60 = arith.constant dense<0.000000e+00> : vector<4xf32>
    %98 = vector.multi_reduction <add>, %97, %cst_60 [1] : vector<4x16xf32> to vector<4xf32>
    %99 = vector.shape_cast %98 : vector<4xf32> to vector<4x1xf32>
    %cst_61 = arith.constant 1.600000e+01 : f32
    %100 = vector.broadcast %cst_61 : f32 to vector<4x1xf32>
    %101 = arith.divf %99, %100 : vector<4x1xf32>
    %102 = vector.broadcast %94 : vector<4x1xf32> to vector<4x16xf32>
    %103 = arith.subf %90, %102 : vector<4x16xf32>
    %cst_62 = arith.constant 9.99999996E-13 : f32
    %104 = vector.broadcast %cst_62 : f32 to vector<4x1xf32>
    %105 = arith.addf %101, %104 : vector<4x1xf32>
    %106 = math.rsqrt %105 : vector<4x1xf32>
    %107 = vector.broadcast %106 : vector<4x1xf32> to vector<4x16xf32>
    %108 = arith.mulf %103, %107 : vector<4x16xf32>
    %c376 = arith.constant 376 : index
    %c0_63 = arith.constant 0 : index
    %109 = vector.load %arg2[%c376, %c0_63] : memref<392x128xf32, #tpu.memory_space<vmem>>, vector<16x128xf32>
    %cst_64 = arith.constant dense<0.000000e+00> : vector<4x128xf32>
    %110 = tpu.matmul %108, %109, %cst_64 {dimension_numbers = #tpu.dot_dimension_numbers<[1], [0], [0], [1], [0, 0, 1, 1], [], []>} : vector<4x16xf32>, vector<16x128xf32>, vector<4x128xf32> -> vector<4x128xf32>
    %c10 = arith.constant 10 : index
    %c0_65 = arith.constant 0 : index
    %111 = vector.load %arg3[%c10, %c0_65] : memref<16x128xf32, #tpu.memory_space<vmem>>, vector<1x128xf32>
    %112 = vector.broadcast %111 : vector<1x128xf32> to vector<4x128xf32>
    %113 = arith.addf %110, %112 : vector<4x128xf32>
    %c0_66 = arith.constant 0 : index
    %c0_67 = arith.constant 0 : index
    %c0_68 = arith.constant 0 : index
    %114 = vector.load %arg4[%c0_66, %c0_67, %c0_68] : memref<1x4x128xf32, #tpu.memory_space<vmem>>, vector<1x4x128xf32>
    %115 = vector.shape_cast %114 : vector<1x4x128xf32> to vector<4x128xf32>
    %116 = vector.shape_cast %113 : vector<4x128xf32> to vector<1x4x128xf32>
    tpu.vector_store %arg4[%c0_66, %c0_67, %c0_68], %116 {strides = array<i32>} : memref<1x4x128xf32, #tpu.memory_space<vmem>>, vector<1x4x128xf32>,
    return
  }
  func.func @transform_0(%arg0: i32) -> (i32, i32, i32) {
    %c0_i32 = arith.constant 0 : i32
    %c0_i32_0 = arith.constant 0 : i32
    %c0_i32_1 = arith.constant 0 : i32
    return %arg0, %c0_i32, %c0_i32_0 : i32, i32, i32
  }
  func.func @transform_1(%arg0: i32) -> (i32, i32) {
    %c0_i32 = arith.constant 0 : i32
    %c0_i32_0 = arith.constant 0 : i32
    %c0_i32_1 = arith.constant 0 : i32
    return %c0_i32, %c0_i32_0 : i32, i32
  }
  func.func @transform_2(%arg0: i32) -> (i32, i32) {
    %c0_i32 = arith.constant 0 : i32
    %c0_i32_0 = arith.constant 0 : i32
    %c0_i32_1 = arith.constant 0 : i32
    return %c0_i32, %c0_i32_0 : i32, i32
  }
  func.func @transform_3(%arg0: i32) -> (i32, i32, i32) {
    %c0_i32 = arith.constant 0 : i32
    %c0_i32_0 = arith.constant 0 : i32
    %c0_i32_1 = arith.constant 0 : i32
    return %arg0, %c0_i32, %c0_i32_0 : i32, i32, i32
  }
}

</mosaic_0001>

<llo_original>
// kernel: sub.0
$region0: #{sub.0}
  #allocation0 [shape = 's32[1]{0}', space=sflag, size = 0x4, scoped, tag = 'scoped memory for sub.0']
  %s0 = inlined_call_operand.vmem [shape: f32[2,512,3], index: 0, kind: input, shape index: {}]
  %s1 = inlined_call_operand.vmem [shape: f32[2,512,3], index: 1, kind: input, shape index: {}]
  %s2 = inlined_call_operand.vmem [shape: f32[2,512,3], index: 2, kind: output, shape index: {}]
  %v3 = vld [vmem:[%s0] sm:$0x3]
  %v4 = vld [vmem:[%s1] sm:$0x3]
  %5 = xla_tuple %v3, %v4
  %6 = xla_tuple %5
  %v7 = vsub.f32 %v3, %v4
  %8 = xla_tuple %v7
  %9 = vst [vmem:[%s2] sm:$0x3] %v7
  %s10 = scalar_lea.vmem %s0, 8
  %v11 = vld [vmem:[%s10] sm:$0x3]
  %s12 = scalar_lea.vmem %s1, 8
  %v13 = vld [vmem:[%s12] sm:$0x3]
  %14 = xla_tuple %v11, %v13
  %15 = xla_tuple %14
  %v16 = vsub.f32 %v11, %v13
  %17 = xla_tuple %v16
  %s18 = scalar_lea.vmem %s2, 8
  %19 = vst [vmem:[%s18] sm:$0x3] %v16
  %s20 = scalar_lea.vmem %s0, 16
  %v21 = vld [vmem:[%s20] sm:$0x3]
  %s22 = scalar_lea.vmem %s1, 16
  %v23 = vld [vmem:[%s22] sm:$0x3]
  %24 = xla_tuple %v21, %v23
  %25 = xla_tuple %24
  %v26 = vsub.f32 %v21, %v23
  %27 = xla_tuple %v26
  %s28 = scalar_lea.vmem %s2, 16
  %29 = vst [vmem:[%s28] sm:$0x3] %v26
  %s30 = scalar_lea.vmem %s0, 2
  %v31 = vld [vmem:[%s30] sm:$0x3]
  %s32 = scalar_lea.vmem %s1, 2
  %v33 = vld [vmem:[%s32] sm:$0x3]
  %34 = xla_tuple %v31, %v33
  %35 = xla_tuple %34
  %v36 = vsub.f32 %v31, %v33
  %37 = xla_tuple %v36
  %s38 = scalar_lea.vmem %s2, 2
  %39 = vst [vmem:[%s38] sm:$0x3] %v36
  %s40 = scalar_lea.vmem %s0, 10
  %v41 = vld [vmem:[%s40] sm:$0x3]
  %s42 = scalar_lea.vmem %s1, 10
  %v43 = vld [vmem:[%s42] sm:$0x3]
  %44 = xla_tuple %v41, %v43
  %45 = xla_tuple %44
  %v46 = vsub.f32 %v41, %v43
  %47 = xla_tuple %v46
  %s48 = scalar_lea.vmem %s2, 10
  %49 = vst [vmem:[%s48] sm:$0x3] %v46
  %s50 = scalar_lea.vmem %s0, 18
  %v51 = vld [vmem:[%s50] sm:$0x3]
  %s52 = scalar_lea.vmem %s1, 18
  %v53 = vld [vmem:[%s52] sm:$0x3]
  %54 = xla_tuple %v51, %v53
  %55 = xla_tuple %54
  %v56 = vsub.f32 %v51, %v53
  %57 = xla_tuple %v56
  %s58 = scalar_lea.vmem %s2, 18
  %59 = vst [vmem:[%s58] sm:$0x3] %v56
  %s60 = scalar_lea.vmem %s0, 4
  %v61 = vld [vmem:[%s60] sm:$0x3]
  %s62 = scalar_lea.vmem %s1, 4
  %v63 = vld [vmem:[%s62] sm:$0x3]
  %64 = xla_tuple %v61, %v63
  %65 = xla_tuple %64
  %v66 = vsub.f32 %v61, %v63
  %67 = xla_tuple %v66
  %s68 = scalar_lea.vmem %s2, 4
  %69 = vst [vmem:[%s68] sm:$0x3] %v66
  %s70 = scalar_lea.vmem %s0, 12
  %v71 = vld [vmem:[%s70] sm:$0x3]
  %s72 = scalar_lea.vmem %s1, 12
  %v73 = vld [vmem:[%s72] sm:$0x3]
  %74 = xla_tuple %v71, %v73
  %75 = xla_tuple %74
  %v76 = vsub.f32 %v71, %v73
  %77 = xla_tuple %v76
  %s78 = scalar_lea.vmem %s2, 12
  %79 = vst [vmem:[%s78] sm:$0x3] %v76
  %s80 = scalar_lea.vmem %s0, 20
  %v81 = vld [vmem:[%s80] sm:$0x3]
  %s82 = scalar_lea.vmem %s1, 20
  %v83 = vld [vmem:[%s82] sm:$0x3]
  %84 = xla_tuple %v81, %v83
  %85 = xla_tuple %84
  %v86 = vsub.f32 %v81, %v83
  %87 = xla_tuple %v86
  %s88 = scalar_lea.vmem %s2, 20
  %89 = vst [vmem:[%s88] sm:$0x3] %v86
  %s90 = scalar_lea.vmem %s0, 6
  %v91 = vld [vmem:[%s90] sm:$0x3]
  %s92 = scalar_lea.vmem %s1, 6
  %v93 = vld [vmem:[%s92] sm:$0x3]
  %94 = xla_tuple %v91, %v93
  %95 = xla_tuple %94
  %v96 = vsub.f32 %v91, %v93
  %97 = xla_tuple %v96
  %s98 = scalar_lea.vmem %s2, 6
  %99 = vst [vmem:[%s98] sm:$0x3] %v96
  %s100 = scalar_lea.vmem %s0, 14
  %v101 = vld [vmem:[%s100] sm:$0x3]
  %s102 = scalar_lea.vmem %s1, 14
  %v103 = vld [vmem:[%s102] sm:$0x3]
  %104 = xla_tuple %v101, %v103
  %105 = xla_tuple %104
  %v106 = vsub.f32 %v101, %v103
  %107 = xla_tuple %v106
  %s108 = scalar_lea.vmem %s2, 14
  %109 = vst [vmem:[%s108] sm:$0x3] %v106
  %s110 = scalar_lea.vmem %s0, 22
  %v111 = vld [vmem:[%s110] sm:$0x3]
  %s112 = scalar_lea.vmem %s1, 22
  %v113 = vld [vmem:[%s112] sm:$0x3]
  %114 = xla_tuple %v111, %v113
  %115 = xla_tuple %114
  %v116 = vsub.f32 %v111, %v113
  %117 = xla_tuple %v116
  %s118 = scalar_lea.vmem %s2, 22
  %119 = vst [vmem:[%s118] sm:$0x3] %v116

// kernel: pcd_classifier_forward.1
$region0: #{pcd_classifier_forward.1}
  #allocation0 [shape = 'u32[]', space=smem, size = 0x4, offset = 0x4, fixed_abs, tag = 'smem constant byte address 0x4 - core index']
  #allocation1 [shape = 'u32[144,128]{1,0:T(1,128)}', space=vmem, size = 0x12000, scoped, tag = 'internal scratch']
  %s0 = inlined_call_operand.vmem [shape: f32[2,512,128], index: 0, kind: input, shape index: {}]
  %s1 = inlined_call_operand.vmem [shape: f32[392,128], index: 1, kind: input, shape index: {}]
  %s2 = inlined_call_operand.vmem [shape: f32[16,128], index: 2, kind: input, shape index: {}]
  %s3 = inlined_call_operand.hbm [shape: f32[2,4,128], index: 3, kind: output, shape index: {}]
  %s4 = sld [smem:[#allocation0]]
  $region45: #{pcd_classifier_forward.1} parent=0
    _
  %s6 = ssub.s32 1, %s4
  %s7 = scalar_select 0, %s6, %s4
  $region1: #{pcd_classifier_forward.1} parent=0
    #allocation2 [shape = 'u8[4096]{0}', space=vmem, size = 0x1000, scoped, tag = 'output window, operand 0']
    #allocation3 [shape = 's32[2]{0}', space=sflag, size = 0x8, scoped, tag = 'scoped memory for pcd_classifier_forward.1']
    %8 = vsyncpa [#allocation3], 0
    %s9 = scalar_lea.sflag [#allocation3], 1
    %10 = vsyncpa %s9, 0
    loop: start=0, step=1, limit=4
    $region2: #{pcd_classifier_forward.1} parent=1 // loop_pre_header
      _
    $region3: #{pcd_classifier_forward.1} parent=1 // loop_header
      %s12 = sphi 0, %s16
      %p13 = scmp.ge.s32.totalorder %s12, 4
      %s22 = sphi 0, %s24
      %s25 = sphi 0, %s22
      %s26 = sphi 0, %s25
      %s42 = sphi 0, %s26
      %s46 = sphi 0, %s46
      %s48 = sphi 0, %s46
      %s49 = sphi 0, %s48
      %s63 = sphi 0, %s49
      %s67 = sphi 0, %s67
      %s69 = sphi 0, %s67
      %s70 = sphi 0, %s69
      %s84 = sphi 0, %s70
      %s90 = sphi 0, %s92
      %s93 = sphi 0, %s90
      %s94 = sphi 0, %s93
      %s110 = sphi 0, %s94
    $region4: #{pcd_classifier_forward.1} parent=1 // loop_header_branch
      %15 = sbr.rel (%p13) target = $region8
    $region5: #{pcd_classifier_forward.1} parent=1 // loop_body
      %s17 = ssub.s32 %s12, 1
      %s18 = ssub.s32 %s12, 2
      %s19 = sadd.s32 %s12, 1
      %s20 = ssub.s32 %s12, %s19
      %p21 = scmp.eq.s32.totalorder %s20, 0
      %s23 = sadd.s32 %s22, 1
      %s24 = scalar_select %p21, %s22, %s23
      %p27 = pneg %p21
      %p28 = scmp.eq.s32.totalorder %s12, 1
      %p29 = por %p27, %p28
      %p30 = scmp.ne.s32.totalorder %s22, %s25
      %p31 = scmp.eq.s32.totalorder %s12, 0
      %p32 = por %p30, %p31
      %p33 = scmp.ne.s32.totalorder %s22, %s25
      %p34 = scmp.eq.s32.totalorder %s17, 1
      %p35 = por %p33, %p34
      %p36 = scmp.ne.s32.totalorder %s25, %s26
      %p37 = scmp.eq.s32.totalorder %s17, 0
      %p38 = por %p36, %p37
      %p39 = scmp.ne.s32.totalorder %s25, %s26
      %p40 = scmp.eq.s32.totalorder %s18, 1
      %p41 = por %p39, %p40
      %p43 = scmp.ne.s32.totalorder %s26, %s42
      %p44 = scmp.eq.s32.totalorder %s18, 0
      %p45 = por %p43, %p44
      %s47 = sadd.s32 %s46, 1
      %p50 = scmp.eq.s32.totalorder %s12, 1
      %p51 = scmp.ne.s32.totalorder %s46, %s48
      %p52 = scmp.eq.s32.totalorder %s12, 0
      %p53 = por %p51, %p52
      %p54 = scmp.ne.s32.totalorder %s46, %s48
      %p55 = scmp.eq.s32.totalorder %s17, 1
      %p56 = por %p54, %p55
      %p57 = scmp.ne.s32.totalorder %s48, %s49
      %p58 = scmp.eq.s32.totalorder %s17, 0
      %p59 = por %p57, %p58
      %p60 = scmp.ne.s32.totalorder %s48, %s49
      %p61 = scmp.eq.s32.totalorder %s18, 1
      %p62 = por %p60, %p61
      %p64 = scmp.ne.s32.totalorder %s49, %s63
      %p65 = scmp.eq.s32.totalorder %s18, 0
      %p66 = por %p64, %p65
      %s68 = sadd.s32 %s67, 1
      %p71 = scmp.eq.s32.totalorder %s12, 1
      %p72 = scmp.ne.s32.totalorder %s67, %s69
      %p73 = scmp.eq.s32.totalorder %s12, 0
      %p74 = por %p72, %p73
      %p75 = scmp.ne.s32.totalorder %s67, %s69
      %p76 = scmp.eq.s32.totalorder %s17, 1
      %p77 = por %p75, %p76
      %p78 = scmp.ne.s32.totalorder %s69, %s70
      %p79 = scmp.eq.s32.totalorder %s17, 0
      %p80 = por %p78, %p79
      %p81 = scmp.ne.s32.totalorder %s69, %s70
      %p82 = scmp.eq.s32.totalorder %s18, 1
      %p83 = por %p81, %p82
      %p85 = scmp.ne.s32.totalorder %s70, %s84
      %p86 = scmp.eq.s32.totalorder %s18, 0
      %p87 = por %p85, %p86
      %s88 = ssub.s32 %s12, %s19
      %p89 = scmp.eq.s32.totalorder %s88, 0
      %s91 = sadd.s32 %s90, 1
      %s92 = scalar_select %p89, %s90, %s91
      %p95 = pneg %p89
      %p96 = scmp.eq.s32.totalorder %s12, 1
      %p97 = por %p95, %p96
      %p98 = scmp.ne.s32.totalorder %s90, %s93
      %p99 = scmp.eq.s32.totalorder %s12, 0
      %p100 = por %p98, %p99
      %p101 = scmp.ne.s32.totalorder %s90, %s93
      %p102 = scmp.eq.s32.totalorder %s17, 1
      %p103 = por %p101, %p102
      %p104 = scmp.ne.s32.totalorder %s93, %s94
      %p105 = scmp.eq.s32.totalorder %s17, 0
      %p106 = por %p104, %p105
      %p107 = scmp.ne.s32.totalorder %s93, %s94
      %p108 = scmp.eq.s32.totalorder %s18, 1
      %p109 = por %p107, %p108
      %p111 = scmp.ne.s32.totalorder %s94, %s110
      %p112 = scmp.eq.s32.totalorder %s18, 0
      %p113 = por %p111, %p112
      %p114 = scmp.le.s32.totalorder 1, %s12
      %p115 = scmp.lt.s32.totalorder %s12, 3
      %p116 = pnand %p114, %p115
      %p117 = pneg %p116
      // Predicated region
      $region9: #{pcd_classifier_forward.1} parent=5 // pred_check
        _
      $region10: #{pcd_classifier_forward.1} parent=5 // pred_check_branch
        %119 = sbr.rel (%p116) target = $region12
      $region11: #{pcd_classifier_forward.1} parent=5 // pred_region
        %s120 = ssub.s32 %s12, 1
        // Predicated region
        $region13: #{pcd_classifier_forward.1} parent=11 // pred_check
          %p121 = pneg %p59
        $region14: #{pcd_classifier_forward.1} parent=11 // pred_check_branch
          %123 = sbr.rel (%p121) target = $region16
        $region15: #{pcd_classifier_forward.1} parent=11 // pred_region
          _
        $region16: #{pcd_classifier_forward.1} parent=11 // pred_fallthru
          _
        // Predicated region
        $region17: #{pcd_classifier_forward.1} parent=11 // pred_check
          %p124 = pneg %p80
        $region18: #{pcd_classifier_forward.1} parent=11 // pred_check_branch
          %126 = sbr.rel (%p124) target = $region20
        $region19: #{pcd_classifier_forward.1} parent=11 // pred_region
          _
        $region20: #{pcd_classifier_forward.1} parent=11 // pred_fallthru
          _
      $region12: #{pcd_classifier_forward.1} parent=5 // pred_fallthru
        _
      %p127 = scmp.lt.s32.totalorder %s12, 2
      // Predicated region
      $region21: #{pcd_classifier_forward.1} parent=5 // pred_check
        %p128 = pneg %p127
      $region22: #{pcd_classifier_forward.1} parent=5 // pred_check_branch
        %130 = sbr.rel (%p128) target = $region24
      $region23: #{pcd_classifier_forward.1} parent=5 // pred_region
        // Predicated region
        $region25: #{pcd_classifier_forward.1} parent=23 // pred_check
          %p131 = pneg %p32
        $region26: #{pcd_classifier_forward.1} parent=23 // pred_check_branch
          %133 = sbr.rel (%p131) target = $region28
        $region27: #{pcd_classifier_forward.1} parent=23 // pred_region
          %p134 = scmp.lt.s32.totalorder %s12, 1
          %s135 = scalar_select %p134, %s12, 1
          %s136 = smul.addr %s135, 64
          %s137 = smul.addr %s136, 8
          %s138 = scalar_lea.vmem %s0, %s137
        $region28: #{pcd_classifier_forward.1} parent=23 // pred_fallthru
          _
      $region24: #{pcd_classifier_forward.1} parent=5 // pred_fallthru
        _
      %p139 = scmp.le.s32.totalorder 1, %s12
      %p140 = scmp.lt.s32.totalorder %s12, 3
      %p141 = pnand %p139, %p140
      %p142 = pneg %p141
      // Predicated region
      $region29: #{pcd_classifier_forward.1} parent=5 // pred_check
        _
      $region30: #{pcd_classifier_forward.1} parent=5 // pred_check_branch
        %144 = sbr.rel (%p141) target = $region32
      $region31: #{pcd_classifier_forward.1} parent=5 // pred_region
        %s145 = ssub.s32 %s12, 1
        %p146 = scmp.lt.s32.totalorder %s17, 1
        %s147 = scalar_select %p146, %s17, 1
        %s148 = smul.addr %s147, 64
        %s149 = smul.addr %s148, 8
        %s150 = scalar_lea.vmem %s0, %s149
        %p151 = pneg %p38
        %p152 = pneg %p35
        %p153 = pneg %p59
        %p154 = pneg %p56
        %p155 = pneg %p80
        %p156 = pneg %p77
        %p157 = pneg %p106
        %p158 = pneg %p103
        %s159 = sand.u32 %s93, 1
        %s160 = scalar_lea.sflag [#allocation3], %s159
        %s161 = sand.u32 %s93, 1
        %s162 = smul.addr %s161, 4
        %s163 = scalar_lea.vmem [#allocation2], %s162
        %p164 = scmp.lt.s32.totalorder %s17, 1
        %s165 = scalar_select %p164, %s17, 1
        %s166 = smul.addr %s165, 64
        %s167 = smul.addr %s166, 8
        %s168 = scalar_lea.vmem %s0, %s167
        %v169 = vld [vmem:[%s168] sm:$0xff]
        %v170 = vld [vmem:[%s168 + $0x8] sm:$0xff]
        %v171 = vld [vmem:[%s168 + $0x10] sm:$0xff]
        %v172 = vld [vmem:[%s168 + $0x18] sm:$0xff]
        %v173 = vld [vmem:[%s168 + $0x20] sm:$0xff]
        %v174 = vld [vmem:[%s168 + $0x28] sm:$0xff]
        %v175 = vld [vmem:[%s168 + $0x30] sm:$0xff]
        %v176 = vld [vmem:[%s168 + $0x38] sm:$0xff]
        %v177 = vld [vmem:[%s168 + $0x40] sm:$0xff]
        %v178 = vld [vmem:[%s168 + $0x48] sm:$0xff]
        %v179 = vld [vmem:[%s168 + $0x50] sm:$0xff]
        %v180 = vld [vmem:[%s168 + $0x58] sm:$0xff]
        %v181 = vld [vmem:[%s168 + $0x60] sm:$0xff]
        %v182 = vld [vmem:[%s168 + $0x68] sm:$0xff]
        %v183 = vld [vmem:[%s168 + $0x70] sm:$0xff]
        %v184 = vld [vmem:[%s168 + $0x78] sm:$0xff]
        %v185 = vld [vmem:[%s168 + $0x80] sm:$0xff]
        %v186 = vld [vmem:[%s168 + $0x88] sm:$0xff]
        %v187 = vld [vmem:[%s168 + $0x90] sm:$0xff]
        %v188 = vld [vmem:[%s168 + $0x98] sm:$0xff]
        %v189 = vld [vmem:[%s168 + $0xa0] sm:$0xff]
        %v190 = vld [vmem:[%s168 + $0xa8] sm:$0xff]
        %v191 = vld [vmem:[%s168 + $0xb0] sm:$0xff]
        %v192 = vld [vmem:[%s168 + $0xb8] sm:$0xff]
        %v193 = vld [vmem:[%s168 + $0xc0] sm:$0xff]
        %v194 = vld [vmem:[%s168 + $0xc8] sm:$0xff]
        %v195 = vld [vmem:[%s168 + $0xd0] sm:$0xff]
        %v196 = vld [vmem:[%s168 + $0xd8] sm:$0xff]
        %v197 = vld [vmem:[%s168 + $0xe0] sm:$0xff]
        %v198 = vld [vmem:[%s168 + $0xe8] sm:$0xff]
        %v199 = vld [vmem:[%s168 + $0xf0] sm:$0xff]
        %v200 = vld [vmem:[%s168 + $0xf8] sm:$0xff]
        %v201 = vld [vmem:[%s168] sm:$0xff]
        %v202 = vld [vmem:[%s168 + $0x8] sm:$0xff]
        %v203 = vld [vmem:[%s168 + $0x10] sm:$0xff]
        %v204 = vld [vmem:[%s168 + $0x18] sm:$0xff]
        %v205 = vld [vmem:[%s168 + $0x20] sm:$0xff]
        %v206 = vld [vmem:[%s168 + $0x28] sm:$0xff]
        %v207 = vld [vmem:[%s168 + $0x30] sm:$0xff]
        %v208 = vld [vmem:[%s168 + $0x38] sm:$0xff]
        %v209 = vld [vmem:[%s168 + $0x40] sm:$0xff]
        %v210 = vld [vmem:[%s168 + $0x48] sm:$0xff]
        %v211 = vld [vmem:[%s168 + $0x50] sm:$0xff]
        %v212 = vld [vmem:[%s168 + $0x58] sm:$0xff]
        %v213 = vld [vmem:[%s168 + $0x60] sm:$0xff]
        %v214 = vld [vmem:[%s168 + $0x68] sm:$0xff]
        %v215 = vld [vmem:[%s168 + $0x70] sm:$0xff]
        %v216 = vld [vmem:[%s168 + $0x78] sm:$0xff]
        %v217 = vld [vmem:[%s168 + $0x80] sm:$0xff]
        %v218 = vld [vmem:[%s168 + $0x88] sm:$0xff]
        %v219 = vld [vmem:[%s168 + $0x90] sm:$0xff]
        %v220 = vld [vmem:[%s168 + $0x98] sm:$0xff]
        %v221 = vld [vmem:[%s168 + $0xa0] sm:$0xff]
        %v222 = vld [vmem:[%s168 + $0xa8] sm:$0xff]
        %v223 = vld [vmem:[%s168 + $0xb0] sm:$0xff]
        %v224 = vld [vmem:[%s168 + $0xb8] sm:$0xff]
        %v225 = vld [vmem:[%s168 + $0xc0] sm:$0xff]
        %v226 = vld [vmem:[%s168 + $0xc8] sm:$0xff]
        %v227 = vld [vmem:[%s168 + $0xd0] sm:$0xff]
        %v228 = vld [vmem:[%s168 + $0xd8] sm:$0xff]
        %v229 = vld [vmem:[%s168 + $0xe0] sm:$0xff]
        %v230 = vld [vmem:[%s168 + $0xe8] sm:$0xff]
        %v231 = vld [vmem:[%s168 + $0xf0] sm:$0xff]
        %v232 = vld [vmem:[%s168 + $0xf8] sm:$0xff]
        %v233 = vld [vmem:[%s168 + $0x100] sm:$0xff]
        %v234 = vld [vmem:[%s168 + $0x108] sm:$0xff]
        %v235 = vld [vmem:[%s168 + $0x110] sm:$0xff]
        %v236 = vld [vmem:[%s168 + $0x118] sm:$0xff]
        %v237 = vld [vmem:[%s168 + $0x120] sm:$0xff]
        %v238 = vld [vmem:[%s168 + $0x128] sm:$0xff]
        %v239 = vld [vmem:[%s168 + $0x130] sm:$0xff]
        %v240 = vld [vmem:[%s168 + $0x138] sm:$0xff]
        %v241 = vld [vmem:[%s168 + $0x140] sm:$0xff]
        %v242 = vld [vmem:[%s168 + $0x148] sm:$0xff]
        %v243 = vld [vmem:[%s168 + $0x150] sm:$0xff]
        %v244 = vld [vmem:[%s168 + $0x158] sm:$0xff]
        %v245 = vld [vmem:[%s168 + $0x160] sm:$0xff]
        %v246 = vld [vmem:[%s168 + $0x168] sm:$0xff]
        %v247 = vld [vmem:[%s168 + $0x170] sm:$0xff]
        %v248 = vld [vmem:[%s168 + $0x178] sm:$0xff]
        %v249 = vld [vmem:[%s168 + $0x180] sm:$0xff]
        %v250 = vld [vmem:[%s168 + $0x188] sm:$0xff]
        %v251 = vld [vmem:[%s168 + $0x190] sm:$0xff]
        %v252 = vld [vmem:[%s168 + $0x198] sm:$0xff]
        %v253 = vld [vmem:[%s168 + $0x1a0] sm:$0xff]
        %v254 = vld [vmem:[%s168 + $0x1a8] sm:$0xff]
        %v255 = vld [vmem:[%s168 + $0x1b0] sm:$0xff]
        %v256 = vld [vmem:[%s168 + $0x1b8] sm:$0xff]
        %v257 = vld [vmem:[%s168 + $0x1c0] sm:$0xff]
        %v258 = vld [vmem:[%s168 + $0x1c8] sm:$0xff]
        %v259 = vld [vmem:[%s168 + $0x1d0] sm:$0xff]
        %v260 = vld [vmem:[%s168 + $0x1d8] sm:$0xff]
        %v261 = vld [vmem:[%s168 + $0x1e0] sm:$0xff]
        %v262 = vld [vmem:[%s168 + $0x1e8] sm:$0xff]
        %v263 = vld [vmem:[%s168 + $0x1f0] sm:$0xff]
        %v264 = vld [vmem:[%s168 + $0x1f8] sm:$0xff]
        %v265 = vld [vmem:[%s1] sm:$0x3f]
        %v266 = vld [vmem:[%s2] sm:$0x1]
        %v267 = vlaneseq
        %v268 = vshrl.u32 %v267, 7
        %v269 = vsub.s32 0, %v268
        %v270 = vrot.slane %v266, %v269
        %335 = vrot.lane.b32.xlu0 %v201, 64
        %v336 = vpop.permute.xlu0 %335
        %337 = vrot.lane.b32.xlu0 %v202, 64
        %v338 = vpop.permute.xlu0 %337
        %339 = vrot.lane.b32.xlu0 %v203, 64
        %v340 = vpop.permute.xlu0 %339
        %341 = vrot.lane.b32.xlu0 %v204, 64
        %v342 = vpop.permute.xlu0 %341
        %343 = vrot.lane.b32.xlu0 %v205, 64
        %v344 = vpop.permute.xlu0 %343
        %345 = vrot.lane.b32.xlu0 %v206, 64
        %v346 = vpop.permute.xlu0 %345
        %347 = vrot.lane.b32.xlu0 %v207, 64
        %v348 = vpop.permute.xlu0 %347
        %349 = vrot.lane.b32.xlu0 %v208, 64
        %v350 = vpop.permute.xlu0 %349
        %351 = vrot.lane.b32.xlu0 %v209, 64
        %v352 = vpop.permute.xlu0 %351
        %353 = vrot.lane.b32.xlu0 %v210, 64
        %v354 = vpop.permute.xlu0 %353
        %355 = vrot.lane.b32.xlu0 %v211, 64
        %v356 = vpop.permute.xlu0 %355
        %357 = vrot.lane.b32.xlu0 %v212, 64
        %v358 = vpop.permute.xlu0 %357
        %359 = vrot.lane.b32.xlu0 %v213, 64
        %v360 = vpop.permute.xlu0 %359
        %361 = vrot.lane.b32.xlu0 %v214, 64
        %v362 = vpop.permute.xlu0 %361
        %363 = vrot.lane.b32.xlu0 %v215, 64
        %v364 = vpop.permute.xlu0 %363
        %365 = vrot.lane.b32.xlu0 %v216, 64
        %v366 = vpop.permute.xlu0 %365
        %367 = vrot.lane.b32.xlu0 %v217, 64
        %v368 = vpop.permute.xlu0 %367
        %369 = vrot.lane.b32.xlu0 %v218, 64
        %v370 = vpop.permute.xlu0 %369
        %371 = vrot.lane.b32.xlu0 %v219, 64
        %v372 = vpop.permute.xlu0 %371
        %373 = vrot.lane.b32.xlu0 %v220, 64
        %v374 = vpop.permute.xlu0 %373
        %375 = vrot.lane.b32.xlu0 %v221, 64
        %v376 = vpop.permute.xlu0 %375
        %377 = vrot.lane.b32.xlu0 %v222, 64
        %v378 = vpop.permute.xlu0 %377
        %379 = vrot.lane.b32.xlu0 %v223, 64
        %v380 = vpop.permute.xlu0 %379
        %381 = vrot.lane.b32.xlu0 %v224, 64
        %v382 = vpop.permute.xlu0 %381
        %383 = vrot.lane.b32.xlu0 %v225, 64
        %v384 = vpop.permute.xlu0 %383
        %385 = vrot.lane.b32.xlu0 %v226, 64
        %v386 = vpop.permute.xlu0 %385
        %387 = vrot.lane.b32.xlu0 %v227, 64
        %v388 = vpop.permute.xlu0 %387
        %389 = vrot.lane.b32.xlu0 %v228, 64
        %v390 = vpop.permute.xlu0 %389
        %391 = vrot.lane.b32.xlu0 %v229, 64
        %v392 = vpop.permute.xlu0 %391
        %393 = vrot.lane.b32.xlu0 %v230, 64
        %v394 = vpop.permute.xlu0 %393
        %395 = vrot.lane.b32.xlu0 %v231, 64
        %v396 = vpop.permute.xlu0 %395
        %397 = vrot.lane.b32.xlu0 %v232, 64
        %v398 = vpop.permute.xlu0 %397
        %399 = vrot.lane.b32.xlu0 %v233, 64
        %v400 = vpop.permute.xlu0 %399
        %401 = vrot.lane.b32.xlu0 %v234, 64
        %v402 = vpop.permute.xlu0 %401
        %403 = vrot.lane.b32.xlu0 %v235, 64
        %v404 = vpop.permute.xlu0 %403
        %405 = vrot.lane.b32.xlu0 %v236, 64
        %v406 = vpop.permute.xlu0 %405
        %407 = vrot.lane.b32.xlu0 %v237, 64
        %v408 = vpop.permute.xlu0 %407
        %409 = vrot.lane.b32.xlu0 %v238, 64
        %v410 = vpop.permute.xlu0 %409
        %411 = vrot.lane.b32.xlu0 %v239, 64
        %v412 = vpop.permute.xlu0 %411
        %413 = vrot.lane.b32.xlu0 %v240, 64
        %v414 = vpop.permute.xlu0 %413
        %415 = vrot.lane.b32.xlu0 %v241, 64
        %v416 = vpop.permute.xlu0 %415
        %417 = vrot.lane.b32.xlu0 %v242, 64
        %v418 = vpop.permute.xlu0 %417
        %419 = vrot.lane.b32.xlu0 %v243, 64
        %v420 = vpop.permute.xlu0 %419
        %421 = vrot.lane.b32.xlu0 %v244, 64
        %v422 = vpop.permute.xlu0 %421
        %423 = vrot.lane.b32.xlu0 %v245, 64
        %v424 = vpop.permute.xlu0 %423
        %425 = vrot.lane.b32.xlu0 %v246, 64
        %v426 = vpop.permute.xlu0 %425
        %427 = vrot.lane.b32.xlu0 %v247, 64
        %v428 = vpop.permute.xlu0 %427
        %429 = vrot.lane.b32.xlu0 %v248, 64
        %v430 = vpop.permute.xlu0 %429
        %431 = vrot.lane.b32.xlu0 %v249, 64
        %v432 = vpop.permute.xlu0 %431
        %433 = vrot.lane.b32.xlu0 %v250, 64
        %v434 = vpop.permute.xlu0 %433
        %435 = vrot.lane.b32.xlu0 %v251, 64
        %v436 = vpop.permute.xlu0 %435
        %437 = vrot.lane.b32.xlu0 %v252, 64
        %v438 = vpop.permute.xlu0 %437
        %439 = vrot.lane.b32.xlu0 %v253, 64
        %v440 = vpop.permute.xlu0 %439
        %441 = vrot.lane.b32.xlu0 %v254, 64
        %v442 = vpop.permute.xlu0 %441
        %443 = vrot.lane.b32.xlu0 %v255, 64
        %v444 = vpop.permute.xlu0 %443
        %445 = vrot.lane.b32.xlu0 %v256, 64
        %v446 = vpop.permute.xlu0 %445
        %447 = vrot.lane.b32.xlu0 %v257, 64
        %v448 = vpop.permute.xlu0 %447
        %449 = vrot.lane.b32.xlu0 %v258, 64
        %v450 = vpop.permute.xlu0 %449
        %451 = vrot.lane.b32.xlu0 %v259, 64
        %v452 = vpop.permute.xlu0 %451
        %453 = vrot.lane.b32.xlu0 %v260, 64
        %v454 = vpop.permute.xlu0 %453
        %455 = vrot.lane.b32.xlu0 %v261, 64
        %v456 = vpop.permute.xlu0 %455
        %457 = vrot.lane.b32.xlu0 %v262, 64
        %v458 = vpop.permute.xlu0 %457
        %459 = vrot.lane.b32.xlu0 %v263, 64
        %v460 = vpop.permute.xlu0 %459
        %461 = vrot.lane.b32.xlu0 %v264, 64
        %v462 = vpop.permute.xlu0 %461
        %vm463 = vcmask 48128
        %v464 = vsel %vm463, %v336, 0
        %v466 = vsel %vm463, %v338, 0
        %v468 = vsel %vm463, %v340, 0
        %v470 = vsel %vm463, %v342, 0
        %v472 = vsel %vm463, %v344, 0
        %v474 = vsel %vm463, %v346, 0
        %v476 = vsel %vm463, %v348, 0
        %v478 = vsel %vm463, %v350, 0
        %v480 = vsel %vm463, %v352, 0
        %v482 = vsel %vm463, %v354, 0
        %v484 = vsel %vm463, %v356, 0
        %v486 = vsel %vm463, %v358, 0
        %v488 = vsel %vm463, %v360, 0
        %v490 = vsel %vm463, %v362, 0
        %v492 = vsel %vm463, %v364, 0
        %v494 = vsel %vm463, %v366, 0
        %v496 = vsel %vm463, %v368, 0
        %v498 = vsel %vm463, %v370, 0
        %v500 = vsel %vm463, %v372, 0
        %v502 = vsel %vm463, %v374, 0
        %v504 = vsel %vm463, %v376, 0
        %v506 = vsel %vm463, %v378, 0
        %v508 = vsel %vm463, %v380, 0
        %v510 = vsel %vm463, %v382, 0
        %v512 = vsel %vm463, %v384, 0
        %v514 = vsel %vm463, %v386, 0
        %v516 = vsel %vm463, %v388, 0
        %v518 = vsel %vm463, %v390, 0
        %v520 = vsel %vm463, %v392, 0
        %v522 = vsel %vm463, %v394, 0
        %v524 = vsel %vm463, %v396, 0
        %v526 = vsel %vm463, %v398, 0
        %v528 = vsel %vm463, %v400, 0
        %v530 = vsel %vm463, %v402, 0
        %v532 = vsel %vm463, %v404, 0
        %v534 = vsel %vm463, %v406, 0
        %v536 = vsel %vm463, %v408, 0
        %v538 = vsel %vm463, %v410, 0
        %v540 = vsel %vm463, %v412, 0
        %v542 = vsel %vm463, %v414, 0
        %v544 = vsel %vm463, %v416, 0
        %v546 = vsel %vm463, %v418, 0
        %v548 = vsel %vm463, %v420, 0
        %v550 = vsel %vm463, %v422, 0
        %v552 = vsel %vm463, %v424, 0
        %v554 = vsel %vm463, %v426, 0
        %v556 = vsel %vm463, %v428, 0
        %v558 = vsel %vm463, %v430, 0
        %v560 = vsel %vm463, %v432, 0
        %v562 = vsel %vm463, %v434, 0
        %v564 = vsel %vm463, %v436, 0
        %v566 = vsel %vm463, %v438, 0
        %v568 = vsel %vm463, %v440, 0
        %v570 = vsel %vm463, %v442, 0
        %v572 = vsel %vm463, %v444, 0
        %v574 = vsel %vm463, %v446, 0
        %v576 = vsel %vm463, %v448, 0
        %v578 = vsel %vm463, %v450, 0
        %v580 = vsel %vm463, %v452, 0
        %v582 = vsel %vm463, %v454, 0
        %v584 = vsel %vm463, %v456, 0
        %v586 = vsel %vm463, %v458, 0
        %v588 = vsel %vm463, %v460, 0
        %v590 = vsel %vm463, %v462, 0
        %vm592 = vcmask 1045504
        %v594 = vsel %vm592, %v265, 0
        %596 = vmatprep.subr.mxu0 0.0
        %597 = vmatpush1.msra.mxu0 %v594
        %598 = vmatprep.subr.mxu0 0.0
        %599 = vmatpush1.msra.mxu0 0.0
        %600 = vmatprep.subr.mxu0 0.0
        %601 = vmatpush1.msra.mxu0 0.0
        %602 = vmatprep.subr.mxu0 0.0
        %603 = vmatpush1.msra.mxu0 0.0
        %604 = vmatprep.subr.mxu0 0.0
        %605 = vmatpush1.msra.mxu0 0.0
        %606 = vmatprep.subr.mxu0 0.0
        %607 = vmatpush1.msra.mxu0 0.0
        %608 = vmatprep.subr.mxu0 0.0
        %609 = vmatpush1.msra.mxu0 0.0
        %610 = vmatprep.subr.mxu0 0.0
        %611 = vmatpush1.msra.mxu0 0.0
        %612 = vmatprep.subr.mxu0 0.0
        %613 = vmatpush1.msra.mxu0 0.0
        %614 = vmatprep.subr.mxu0 0.0
        %615 = vmatpush1.msra.mxu0 0.0
        %616 = vmatprep.subr.mxu0 0.0
        %617 = vmatpush1.msra.mxu0 0.0
        %618 = vmatprep.subr.mxu0 0.0
        %619 = vmatpush1.msra.mxu0 0.0
        %620 = vmatprep.subr.mxu0 0.0
        %621 = vmatpush1.msra.mxu0 0.0
        %622 = vmatprep.subr.mxu0 0.0
        %623 = vmatpush1.msra.mxu0 0.0
        %624 = vmatprep.subr.mxu0 0.0
        %625 = vmatpush1.msra.mxu0 0.0
        %626 = vmatprep.subr.mxu0 0.0
        %627 = vmatpush1.msra.mxu0 0.0
        %628 = vmatprep.subr.mxu0 0.0
        %629 = vmatpush1.msra.mxu0 0.0
        %630 = vmatprep.subr.mxu0 0.0
        %631 = vmatpush1.msra.mxu0 0.0
        %632 = vmatprep.subr.mxu0 0.0
        %633 = vmatpush1.msra.mxu0 0.0
        %634 = vmatprep.subr.mxu0 0.0
        %635 = vmatpush1.msra.mxu0 0.0
        %636 = vmatprep.subr.mxu0 0.0
        %637 = vmatpush1.msra.mxu0 0.0
        %638 = vmatprep.subr.mxu0 0.0
        %639 = vmatpush1.msra.mxu0 0.0
        %640 = vmatprep.subr.mxu0 0.0
        %641 = vmatpush1.msra.mxu0 0.0
        %642 = vmatprep.subr.mxu0 0.0
        %643 = vmatpush1.msra.mxu0 0.0
        %644 = vmatprep.subr.mxu0 0.0
        %645 = vmatpush1.msra.mxu0 0.0
        %646 = vmatprep.subr.mxu0 0.0
        %647 = vmatpush1.msra.mxu0 0.0
        %648 = vmatprep.subr.mxu0 0.0
        %649 = vmatpush1.msra.mxu0 0.0
        %650 = vmatprep.subr.mxu0 0.0
        %651 = vmatpush1.msra.mxu0 0.0
        %652 = vmatprep.subr.mxu0 0.0
        %653 = vmatpush1.msra.mxu0 0.0
        %654 = vmatprep.subr.mxu0 0.0
        %655 = vmatpush1.msra.mxu0 0.0
        %656 = vmatprep.subr.mxu0 0.0
        %657 = vmatpush1.msra.mxu0 0.0
        %658 = vmatprep.subr.mxu0 0.0
        %659 = vmatpush1.msra.mxu0 0.0
        %660 = vmatprep.mubr.f32.mxu0 0.0
        %661 = vmatmul.mubr.f32.gmra.mrb[0].mxu0 %v464
        %v662 = vpop.f32.mrb[0].mxu0
        %v663 = vadd.f32 %v270, %v662
        %v664 = vpop.f32.mrb[0].mxu0
        %665 = vmatprep.mubr.f32.mxu0 0.0
        %666 = vmatmul.mubr.f32.gmra.mrb[0].mxu0 %v466
        %v667 = vpop.f32.mrb[0].mxu0
        %v668 = vadd.f32 %v270, %v667
        %v669 = vpop.f32.mrb[0].mxu0
        %670 = vmatprep.mubr.f32.mxu0 0.0
        %671 = vmatmul.mubr.f32.gmra.mrb[0].mxu0 %v468
        %v672 = vpop.f32.mrb[0].mxu0
        %v673 = vadd.f32 %v270, %v672
        %v674 = vpop.f32.mrb[0].mxu0
        %675 = vmatprep.mubr.f32.mxu0 0.0
        %676 = vmatmul.mubr.f32.gmra.mrb[0].mxu0 %v470
        %v677 = vpop.f32.mrb[0].mxu0
        %v678 = vadd.f32 %v270, %v677
        %v679 = vpop.f32.mrb[0].mxu0
        %680 = vmatprep.mubr.f32.mxu0 0.0
        %681 = vmatmul.mubr.f32.gmra.mrb[0].mxu0 %v472
        %v682 = vpop.f32.mrb[0].mxu0
        %v683 = vadd.f32 %v270, %v682
        %v684 = vpop.f32.mrb[0].mxu0
        %685 = vmatprep.mubr.f32.mxu0 0.0
        %686 = vmatmul.mubr.f32.gmra.mrb[0].mxu0 %v474
        %v687 = vpop.f32.mrb[0].mxu0
        %v688 = vadd.f32 %v270, %v687
        %v689 = vpop.f32.mrb[0].mxu0
        %690 = vmatprep.mubr.f32.mxu0 0.0
        %691 = vmatmul.mubr.f32.gmra.mrb[0].mxu0 %v476
        %v692 = vpop.f32.mrb[0].mxu0
        %v693 = vadd.f32 %v270, %v692
        %v694 = vpop.f32.mrb[0].mxu0
        %695 = vmatprep.mubr.f32.mxu0 0.0
        %696 = vmatmul.mubr.f32.gmra.mrb[0].mxu0 %v478
        %v697 = vpop.f32.mrb[0].mxu0
        %v698 = vadd.f32 %v270, %v697
        %v699 = vpop.f32.mrb[0].mxu0
        %700 = vmatprep.mubr.f32.mxu0 0.0
        %701 = vmatmul.mubr.f32.gmra.mrb[0].mxu0 %v480
        %v702 = vpop.f32.mrb[0].mxu0
        %v703 = vadd.f32 %v270, %v702
        %v704 = vpop.f32.mrb[0].mxu0
        %705 = vmatprep.mubr.f32.mxu0 0.0
        %706 = vmatmul.mubr.f32.gmra.mrb[0].mxu0 %v482
        %v707 = vpop.f32.mrb[0].mxu0
        %v708 = vadd.f32 %v270, %v707
        %v709 = vpop.f32.mrb[0].mxu0
        %710 = vmatprep.mubr.f32.mxu0 0.0
        %711 = vmatmul.mubr.f32.gmra.mrb[0].mxu0 %v484
        %v712 = vpop.f32.mrb[0].mxu0
        %v713 = vadd.f32 %v270, %v712
        %v714 = vpop.f32.mrb[0].mxu0
        %715 = vmatprep.mubr.f32.mxu0 0.0
        %716 = vmatmul.mubr.f32.gmra.mrb[0].mxu0 %v486
        %v717 = vpop.f32.mrb[0].mxu0
        %v718 = vadd.f32 %v270, %v717
        %v719 = vpop.f32.mrb[0].mxu0
        %720 = vmatprep.mubr.f32.mxu0 0.0
        %721 = vmatmul.mubr.f32.gmra.mrb[0].mxu0 %v488
        %v722 = vpop.f32.mrb[0].mxu0
        %v723 = vadd.f32 %v270, %v722
        %v724 = vpop.f32.mrb[0].mxu0
        %725 = vmatprep.mubr.f32.mxu0 0.0
        %726 = vmatmul.mubr.f32.gmra.mrb[0].mxu0 %v490
        %v727 = vpop.f32.mrb[0].mxu0
        %v728 = vadd.f32 %v270, %v727
        %v729 = vpop.f32.mrb[0].mxu0
        %730 = vmatprep.mubr.f32.mxu0 0.0
        %731 = vmatmul.mubr.f32.gmra.mrb[0].mxu0 %v492
        %v732 = vpop.f32.mrb[0].mxu0
        %v733 = vadd.f32 %v270, %v732
        %v734 = vpop.f32.mrb[0].mxu0
        %735 = vmatprep.mubr.f32.mxu0 0.0
        %736 = vmatmul.mubr.f32.gmra.mrb[0].mxu0 %v494
        %v737 = vpop.f32.mrb[0].mxu0
        %v738 = vadd.f32 %v270, %v737
        %v739 = vpop.f32.mrb[0].mxu0
        %740 = vmatprep.mubr.f32.mxu0 0.0
        %741 = vmatmul.mubr.f32.gmra.mrb[0].mxu0 %v496
        %v742 = vpop.f32.mrb[0].mxu0
        %v743 = vadd.f32 %v270, %v742
        %v744 = vpop.f32.mrb[0].mxu0
        %745 = vmatprep.mubr.f32.mxu0 0.0
        %746 = vmatmul.mubr.f32.gmra.mrb[0].mxu0 %v498
        %v747 = vpop.f32.mrb[0].mxu0
        %v748 = vadd.f32 %v270, %v747
        %v749 = vpop.f32.mrb[0].mxu0
        %750 = vmatprep.mubr.f32.mxu0 0.0
        %751 = vmatmul.mubr.f32.gmra.mrb[0].mxu0 %v500
        %v752 = vpop.f32.mrb[0].mxu0
        %v753 = vadd.f32 %v270, %v752
        %v754 = vpop.f32.mrb[0].mxu0
        %755 = vmatprep.mubr.f32.mxu0 0.0
        %756 = vmatmul.mubr.f32.gmra.mrb[0].mxu0 %v502
        %v757 = vpop.f32.mrb[0].mxu0
        %v758 = vadd.f32 %v270, %v757
        %v759 = vpop.f32.mrb[0].mxu0
        %760 = vmatprep.mubr.f32.mxu0 0.0
        %761 = vmatmul.mubr.f32.gmra.mrb[0].mxu0 %v504
        %v762 = vpop.f32.mrb[0].mxu0
        %v763 = vadd.f32 %v270, %v762
        %v764 = vpop.f32.mrb[0].mxu0
        %765 = vmatprep.mubr.f32.mxu0 0.0
        %766 = vmatmul.mubr.f32.gmra.mrb[0].mxu0 %v506
        %v767 = vpop.f32.mrb[0].mxu0
        %v768 = vadd.f32 %v270, %v767
        %v769 = vpop.f32.mrb[0].mxu0
        %770 = vmatprep.mubr.f32.mxu0 0.0
        %771 = vmatmul.mubr.f32.gmra.mrb[0].mxu0 %v508
        %v772 = vpop.f32.mrb[0].mxu0
        %v773 = vadd.f32 %v270, %v772
        %v774 = vpop.f32.mrb[0].mxu0
        %775 = vmatprep.mubr.f32.mxu0 0.0
        %776 = vmatmul.mubr.f32.gmra.mrb[0].mxu0 %v510
        %v777 = vpop.f32.mrb[0].mxu0
        %v778 = vadd.f32 %v270, %v777
        %v779 = vpop.f32.mrb[0].mxu0
        %780 = vmatprep.mubr.f32.mxu0 0.0
        %781 = vmatmul.mubr.f32.gmra.mrb[0].mxu0 %v512
        %v782 = vpop.f32.mrb[0].mxu0
        %v783 = vadd.f32 %v270, %v782
        %v784 = vpop.f32.mrb[0].mxu0
        %785 = vmatprep.mubr.f32.mxu0 0.0
        %786 = vmatmul.mubr.f32.gmra.mrb[0].mxu0 %v514
        %v787 = vpop.f32.mrb[0].mxu0
        %v788 = vadd.f32 %v270, %v787
        %v789 = vpop.f32.mrb[0].mxu0
        %790 = vmatprep.mubr.f32.mxu0 0.0
        %791 = vmatmul.mubr.f32.gmra.mrb[0].mxu0 %v516
        %v792 = vpop.f32.mrb[0].mxu0
        %v793 = vadd.f32 %v270, %v792
        %v794 = vpop.f32.mrb[0].mxu0
        %795 = vmatprep.mubr.f32.mxu0 0.0
        %796 = vmatmul.mubr.f32.gmra.mrb[0].mxu0 %v518
        %v797 = vpop.f32.mrb[0].mxu0
        %v798 = vadd.f32 %v270, %v797
        %v799 = vpop.f32.mrb[0].mxu0
        %800 = vmatprep.mubr.f32.mxu0 0.0
        %801 = vmatmul.mubr.f32.gmra.mrb[0].mxu0 %v520
        %v802 = vpop.f32.mrb[0].mxu0
        %v803 = vadd.f32 %v270, %v802
        %v804 = vpop.f32.mrb[0].mxu0
        %805 = vmatprep.mubr.f32.mxu0 0.0
        %806 = vmatmul.mubr.f32.gmra.mrb[0].mxu0 %v522
        %v807 = vpop.f32.mrb[0].mxu0
        %v808 = vadd.f32 %v270, %v807
        %v809 = vpop.f32.mrb[0].mxu0
        %810 = vmatprep.mubr.f32.mxu0 0.0
        %811 = vmatmul.mubr.f32.gmra.mrb[0].mxu0 %v524
        %v812 = vpop.f32.mrb[0].mxu0
        %v813 = vadd.f32 %v270, %v812
        %v814 = vpop.f32.mrb[0].mxu0
        %815 = vmatprep.mubr.f32.mxu0 0.0
        %816 = vmatmul.mubr.f32.gmra.mrb[0].mxu0 %v526
        %v817 = vpop.f32.mrb[0].mxu0
        %v818 = vadd.f32 %v270, %v817
        %v819 = vpop.f32.mrb[0].mxu0
        %820 = vmatprep.mubr.f32.mxu0 0.0
        %821 = vmatmul.mubr.f32.gmra.mrb[0].mxu0 %v528
        %v822 = vpop.f32.mrb[0].mxu0
        %v823 = vadd.f32 %v270, %v822
        %v824 = vpop.f32.mrb[0].mxu0
        %825 = vmatprep.mubr.f32.mxu0 0.0
        %826 = vmatmul.mubr.f32.gmra.mrb[0].mxu0 %v530
        %v827 = vpop.f32.mrb[0].mxu0
        %v828 = vadd.f32 %v270, %v827
        %v829 = vpop.f32.mrb[0].mxu0
        %830 = vmatprep.mubr.f32.mxu0 0.0
        %831 = vmatmul.mubr.f32.gmra.mrb[0].mxu0 %v532
        %v832 = vpop.f32.mrb[0].mxu0
        %v833 = vadd.f32 %v270, %v832
        %v834 = vpop.f32.mrb[0].mxu0
        %835 = vmatprep.mubr.f32.mxu0 0.0
        %836 = vmatmul.mubr.f32.gmra.mrb[0].mxu0 %v534
        %v837 = vpop.f32.mrb[0].mxu0
        %v838 = vadd.f32 %v270, %v837
        %v839 = vpop.f32.mrb[0].mxu0
        %840 = vmatprep.mubr.f32.mxu0 0.0
        %841 = vmatmul.mubr.f32.gmra.mrb[0].mxu0 %v536
        %v842 = vpop.f32.mrb[0].mxu0
        %v843 = vadd.f32 %v270, %v842
        %v844 = vpop.f32.mrb[0].mxu0
        %845 = vmatprep.mubr.f32.mxu0 0.0
        %846 = vmatmul.mubr.f32.gmra.mrb[0].mxu0 %v538
        %v847 = vpop.f32.mrb[0].mxu0
        %v848 = vadd.f32 %v270, %v847
        %v849 = vpop.f32.mrb[0].mxu0
        %850 = vmatprep.mubr.f32.mxu0 0.0
        %851 = vmatmul.mubr.f32.gmra.mrb[0].mxu0 %v540
        %v852 = vpop.f32.mrb[0].mxu0
        %v853 = vadd.f32 %v270, %v852
        %v854 = vpop.f32.mrb[0].mxu0
        %855 = vmatprep.mubr.f32.mxu0 0.0
        %856 = vmatmul.mubr.f32.gmra.mrb[0].mxu0 %v542
        %v857 = vpop.f32.mrb[0].mxu0
        %v858 = vadd.f32 %v270, %v857
        %v859 = vpop.f32.mrb[0].mxu0
        %860 = vmatprep.mubr.f32.mxu0 0.0
        %861 = vmatmul.mubr.f32.gmra.mrb[0].mxu0 %v544
        %v862 = vpop.f32.mrb[0].mxu0
        %v863 = vadd.f32 %v270, %v862
        %v864 = vpop.f32.mrb[0].mxu0
        %865 = vmatprep.mubr.f32.mxu0 0.0
        %866 = vmatmul.mubr.f32.gmra.mrb[0].mxu0 %v546
        %v867 = vpop.f32.mrb[0].mxu0
        %v868 = vadd.f32 %v270, %v867
        %v869 = vpop.f32.mrb[0].mxu0
        %870 = vmatprep.mubr.f32.mxu0 0.0
        %871 = vmatmul.mubr.f32.gmra.mrb[0].mxu0 %v548
        %v872 = vpop.f32.mrb[0].mxu0
        %v873 = vadd.f32 %v270, %v872
        %v874 = vpop.f32.mrb[0].mxu0
        %875 = vmatprep.mubr.f32.mxu0 0.0
        %876 = vmatmul.mubr.f32.gmra.mrb[0].mxu0 %v550
        %v877 = vpop.f32.mrb[0].mxu0
        %v878 = vadd.f32 %v270, %v877
        %v879 = vpop.f32.mrb[0].mxu0
        %880 = vmatprep.mubr.f32.mxu0 0.0
        %881 = vmatmul.mubr.f32.gmra.mrb[0].mxu0 %v552
        %v882 = vpop.f32.mrb[0].mxu0
        %v883 = vadd.f32 %v270, %v882
        %v884 = vpop.f32.mrb[0].mxu0
        %885 = vmatprep.mubr.f32.mxu0 0.0
        %886 = vmatmul.mubr.f32.gmra.mrb[0].mxu0 %v554
        %v887 = vpop.f32.mrb[0].mxu0
        %v888 = vadd.f32 %v270, %v887
        %v889 = vpop.f32.mrb[0].mxu0
        %890 = vmatprep.mubr.f32.mxu0 0.0
        %891 = vmatmul.mubr.f32.gmra.mrb[0].mxu0 %v556
        %v892 = vpop.f32.mrb[0].mxu0
        %v893 = vadd.f32 %v270, %v892
        %v894 = vpop.f32.mrb[0].mxu0
        %895 = vmatprep.mubr.f32.mxu0 0.0
        %896 = vmatmul.mubr.f32.gmra.mrb[0].mxu0 %v558
        %v897 = vpop.f32.mrb[0].mxu0
        %v898 = vadd.f32 %v270, %v897
        %v899 = vpop.f32.mrb[0].mxu0
        %900 = vmatprep.mubr.f32.mxu0 0.0
        %901 = vmatmul.mubr.f32.gmra.mrb[0].mxu0 %v560
        %v902 = vpop.f32.mrb[0].mxu0
        %v903 = vadd.f32 %v270, %v902
        %v904 = vpop.f32.mrb[0].mxu0
        %905 = vmatprep.mubr.f32.mxu0 0.0
        %906 = vmatmul.mubr.f32.gmra.mrb[0].mxu0 %v562
        %v907 = vpop.f32.mrb[0].mxu0
        %v908 = vadd.f32 %v270, %v907
        %v909 = vpop.f32.mrb[0].mxu0
        %910 = vmatprep.mubr.f32.mxu0 0.0
        %911 = vmatmul.mubr.f32.gmra.mrb[0].mxu0 %v564
        %v912 = vpop.f32.mrb[0].mxu0
        %v913 = vadd.f32 %v270, %v912
        %v914 = vpop.f32.mrb[0].mxu0
        %915 = vmatprep.mubr.f32.mxu0 0.0
        %916 = vmatmul.mubr.f32.gmra.mrb[0].mxu0 %v566
        %v917 = vpop.f32.mrb[0].mxu0
        %v918 = vadd.f32 %v270, %v917
        %v919 = vpop.f32.mrb[0].mxu0
        %920 = vmatprep.mubr.f32.mxu0 0.0
        %921 = vmatmul.mubr.f32.gmra.mrb[0].mxu0 %v568
        %v922 = vpop.f32.mrb[0].mxu0
        %v923 = vadd.f32 %v270, %v922
        %v924 = vpop.f32.mrb[0].mxu0
        %925 = vmatprep.mubr.f32.mxu0 0.0
        %926 = vmatmul.mubr.f32.gmra.mrb[0].mxu0 %v570
        %v927 = vpop.f32.mrb[0].mxu0
        %v928 = vadd.f32 %v270, %v927
        %v929 = vpop.f32.mrb[0].mxu0
        %930 = vmatprep.mubr.f32.mxu0 0.0
        %931 = vmatmul.mubr.f32.gmra.mrb[0].mxu0 %v572
        %v932 = vpop.f32.mrb[0].mxu0
        %v933 = vadd.f32 %v270, %v932
        %v934 = vpop.f32.mrb[0].mxu0
        %935 = vmatprep.mubr.f32.mxu0 0.0
        %936 = vmatmul.mubr.f32.gmra.mrb[0].mxu0 %v574
        %v937 = vpop.f32.mrb[0].mxu0
        %v938 = vadd.f32 %v270, %v937
        %v939 = vpop.f32.mrb[0].mxu0
        %940 = vmatprep.mubr.f32.mxu0 0.0
        %941 = vmatmul.mubr.f32.gmra.mrb[0].mxu0 %v576
        %v942 = vpop.f32.mrb[0].mxu0
        %v943 = vadd.f32 %v270, %v942
        %v944 = vpop.f32.mrb[0].mxu0
        %945 = vmatprep.mubr.f32.mxu0 0.0
        %946 = vmatmul.mubr.f32.gmra.mrb[0].mxu0 %v578
        %v947 = vpop.f32.mrb[0].mxu0
        %v948 = vadd.f32 %v270, %v947
        %v949 = vpop.f32.mrb[0].mxu0
        %950 = vmatprep.mubr.f32.mxu0 0.0
        %951 = vmatmul.mubr.f32.gmra.mrb[0].mxu0 %v580
        %v952 = vpop.f32.mrb[0].mxu0
        %v953 = vadd.f32 %v270, %v952
        %v954 = vpop.f32.mrb[0].mxu0
        %955 = vmatprep.mubr.f32.mxu0 0.0
        %956 = vmatmul.mubr.f32.gmra.mrb[0].mxu0 %v582
        %v957 = vpop.f32.mrb[0].mxu0
        %v958 = vadd.f32 %v270, %v957
        %v959 = vpop.f32.mrb[0].mxu0
        %960 = vmatprep.mubr.f32.mxu0 0.0
        %961 = vmatmul.mubr.f32.gmra.mrb[0].mxu0 %v584
        %v962 = vpop.f32.mrb[0].mxu0
        %v963 = vadd.f32 %v270, %v962
        %v964 = vpop.f32.mrb[0].mxu0
        %965 = vmatprep.mubr.f32.mxu0 0.0
        %966 = vmatmul.mubr.f32.gmra.mrb[0].mxu0 %v586
        %v967 = vpop.f32.mrb[0].mxu0
        %v968 = vadd.f32 %v270, %v967
        %v969 = vpop.f32.mrb[0].mxu0
        %970 = vmatprep.mubr.f32.mxu0 0.0
        %971 = vmatmul.mubr.f32.gmra.mrb[0].mxu0 %v588
        %v972 = vpop.f32.mrb[0].mxu0
        %v973 = vadd.f32 %v270, %v972
        %v974 = vpop.f32.mrb[0].mxu0
        %975 = vmatprep.mubr.f32.mxu0 0.0
        %976 = vmatmul.mubr.f32.gmra.mrb[0].mxu0 %v590
        %v977 = vpop.f32.mrb[0].mxu0
        %v978 = vadd.f32 %v270, %v977
        %v979 = vpop.f32.mrb[0].mxu0
        %980 = vdwg.mxu0
        %v981 = vmax.f32 %v663, 0.0
        %v982 = vmax.f32 %v668, 0.0
        %v983 = vmax.f32 %v673, 0.0
        %v984 = vmax.f32 %v678, 0.0
        %v985 = vmax.f32 %v683, 0.0
        %v986 = vmax.f32 %v688, 0.0
        %v987 = vmax.f32 %v693, 0.0
        %v988 = vmax.f32 %v698, 0.0
        %v989 = vmax.f32 %v703, 0.0
        %v990 = vmax.f32 %v708, 0.0
        %v991 = vmax.f32 %v713, 0.0
        %v992 = vmax.f32 %v718, 0.0
        %v993 = vmax.f32 %v723, 0.0
        %v994 = vmax.f32 %v728, 0.0
        %v995 = vmax.f32 %v733, 0.0
        %v996 = vmax.f32 %v738, 0.0
        %v997 = vmax.f32 %v743, 0.0
        %v998 = vmax.f32 %v748, 0.0
        %v999 = vmax.f32 %v753, 0.0
        %v1000 = vmax.f32 %v758, 0.0
        %v1001 = vmax.f32 %v763, 0.0
        %v1002 = vmax.f32 %v768, 0.0
        %v1003 = vmax.f32 %v773, 0.0
        %v1004 = vmax.f32 %v778, 0.0
        %v1005 = vmax.f32 %v783, 0.0
        %v1006 = vmax.f32 %v788, 0.0
        %v1007 = vmax.f32 %v793, 0.0
        %v1008 = vmax.f32 %v798, 0.0
        %v1009 = vmax.f32 %v803, 0.0
        %v1010 = vmax.f32 %v808, 0.0
        %v1011 = vmax.f32 %v813, 0.0
        %v1012 = vmax.f32 %v818, 0.0
        %v1013 = vmax.f32 %v823, 0.0
        %v1014 = vmax.f32 %v828, 0.0
        %v1015 = vmax.f32 %v833, 0.0
        %v1016 = vmax.f32 %v838, 0.0
        %v1017 = vmax.f32 %v843, 0.0
        %v1018 = vmax.f32 %v848, 0.0
        %v1019 = vmax.f32 %v853, 0.0
        %v1020 = vmax.f32 %v858, 0.0
        %v1021 = vmax.f32 %v863, 0.0
        %v1022 = vmax.f32 %v868, 0.0
        %v1023 = vmax.f32 %v873, 0.0
        %v1024 = vmax.f32 %v878, 0.0
        %v1025 = vmax.f32 %v883, 0.0
        %v1026 = vmax.f32 %v888, 0.0
        %v1027 = vmax.f32 %v893, 0.0
        %v1028 = vmax.f32 %v898, 0.0
        %v1029 = vmax.f32 %v903, 0.0
        %v1030 = vmax.f32 %v908, 0.0
        %v1031 = vmax.f32 %v913, 0.0
        %v1032 = vmax.f32 %v918, 0.0
        %v1033 = vmax.f32 %v923, 0.0
        %v1034 = vmax.f32 %v928, 0.0
        %v1035 = vmax.f32 %v933, 0.0
        %v1036 = vmax.f32 %v938, 0.0
        %v1037 = vmax.f32 %v943, 0.0
        %v1038 = vmax.f32 %v948, 0.0
        %v1039 = vmax.f32 %v953, 0.0
        %v1040 = vmax.f32 %v958, 0.0
        %v1041 = vmax.f32 %v963, 0.0
        %v1042 = vmax.f32 %v968, 0.0
        %v1043 = vmax.f32 %v973, 0.0
        %v1044 = vmax.f32 %v978, 0.0
        %v1045 = vld [vmem:[%s1 + $0x8] sm:$0xff]
        %v1046 = vld [vmem:[%s1 + $0x10] sm:$0xff]
        %v1047 = vld [vmem:[%s2 + $0x1] sm:$0x1]
        %v1048 = vlaneseq
        %v1049 = vshrl.u32 %v1048, 7
        %v1050 = vsub.s32 0, %v1049
        %v1051 = vrot.slane %v1047, %v1050
        %vm1052 = vcmask 130048
        %v1054 = vsel %vm1052, %v981, 0
        %v1057 = vsel %vm1052, %v982, 0
        %v1060 = vsel %vm1052, %v983, 0
        %v1063 = vsel %vm1052, %v984, 0
        %v1066 = vsel %vm1052, %v985, 0
        %v1069 = vsel %vm1052, %v986, 0
        %v1072 = vsel %vm1052, %v987, 0
        %v1075 = vsel %vm1052, %v988, 0
        %v1078 = vsel %vm1052, %v989, 0
        %v1081 = vsel %vm1052, %v990, 0
        %v1084 = vsel %vm1052, %v991, 0
        %v1087 = vsel %vm1052, %v992, 0
        %v1090 = vsel %vm1052, %v993, 0
        %v1093 = vsel %vm1052, %v994, 0
        %v1096 = vsel %vm1052, %v995, 0
        %v1099 = vsel %vm1052, %v996, 0
        %v1102 = vsel %vm1052, %v997, 0
        %v1105 = vsel %vm1052, %v998, 0
        %v1108 = vsel %vm1052, %v999, 0
        %v1111 = vsel %vm1052, %v1000, 0
        %v1114 = vsel %vm1052, %v1001, 0
        %v1117 = vsel %vm1052, %v1002, 0
        %v1120 = vsel %vm1052, %v1003, 0
        %v1123 = vsel %vm1052, %v1004, 0
        %v1126 = vsel %vm1052, %v1005, 0
        %v1129 = vsel %vm1052, %v1006, 0
        %v1132 = vsel %vm1052, %v1007, 0
        %v1135 = vsel %vm1052, %v1008, 0
        %v1138 = vsel %vm1052, %v1009, 0
        %v1141 = vsel %vm1052, %v1010, 0
        %v1144 = vsel %vm1052, %v1011, 0
        %v1147 = vsel %vm1052, %v1012, 0
        %v1150 = vsel %vm1052, %v1013, 0
        %v1153 = vsel %vm1052, %v1014, 0
        %v1156 = vsel %vm1052, %v1015, 0
        %v1159 = vsel %vm1052, %v1016, 0
        %v1162 = vsel %vm1052, %v1017, 0
        %v1165 = vsel %vm1052, %v1018, 0
        %v1168 = vsel %vm1052, %v1019, 0
        %v1171 = vsel %vm1052, %v1020, 0
        %v1174 = vsel %vm1052, %v1021, 0
        %v1177 = vsel %vm1052, %v1022, 0
        %v1180 = vsel %vm1052, %v1023, 0
        %v1183 = vsel %vm1052, %v1024, 0
        %v1186 = vsel %vm1052, %v1025, 0
        %v1189 = vsel %vm1052, %v1026, 0
        %v1192 = vsel %vm1052, %v1027, 0
        %v1195 = vsel %vm1052, %v1028, 0
        %v1198 = vsel %vm1052, %v1029, 0
        %v1201 = vsel %vm1052, %v1030, 0
        %v1204 = vsel %vm1052, %v1031, 0
        %v1207 = vsel %vm1052, %v1032, 0
        %v1210 = vsel %vm1052, %v1033, 0
        %v1213 = vsel %vm1052, %v1034, 0
        %v1216 = vsel %vm1052, %v1035, 0
        %v1219 = vsel %vm1052, %v1036, 0
        %v1222 = vsel %vm1052, %v1037, 0
        %v1225 = vsel %vm1052, %v1038, 0
        %v1228 = vsel %vm1052, %v1039, 0
        %v1231 = vsel %vm1052, %v1040, 0
        %v1234 = vsel %vm1052, %v1041, 0
        %v1237 = vsel %vm1052, %v1042, 0
        %v1240 = vsel %vm1052, %v1043, 0
        %v1243 = vsel %vm1052, %v1044, 0
        %1245 = vmatprep.subr.mxu0 0.0
        %1246 = vmatpush1.msra.mxu0 %v1045
        %1247 = vmatprep.subr.mxu0 0.0
        %1248 = vmatpush1.msra.mxu0 %v1046
        %1249 = vmatprep.subr.mxu0 0.0
        %1250 = vmatpush1.msra.mxu0 0.0
        %1251 = vmatprep.subr.mxu0 0.0
        %1252 = vmatpush1.msra.mxu0 0.0
        %1253 = vmatprep.subr.mxu0 0.0
        %1254 = vmatpush1.msra.mxu0 0.0
        %1255 = vmatprep.subr.mxu0 0.0
        %1256 = vmatpush1.msra.mxu0 0.0
        %1257 = vmatprep.subr.mxu0 0.0
        %1258 = vmatpush1.msra.mxu0 0.0
        %1259 = vmatprep.subr.mxu0 0.0
        %1260 = vmatpush1.msra.mxu0 0.0
        %1261 = vmatprep.subr.mxu0 0.0
        %1262 = vmatpush1.msra.mxu0 0.0
        %1263 = vmatprep.subr.mxu0 0.0
        %1264 = vmatpush1.msra.mxu0 0.0
        %1265 = vmatprep.subr.mxu0 0.0
        %1266 = vmatpush1.msra.mxu0 0.0
        %1267 = vmatprep.subr.mxu0 0.0
        %1268 = vmatpush1.msra.mxu0 0.0
        %1269 = vmatprep.subr.mxu0 0.0
        %1270 = vmatpush1.msra.mxu0 0.0
        %1271 = vmatprep.subr.mxu0 0.0
        %1272 = vmatpush1.msra.mxu0 0.0
        %1273 = vmatprep.subr.mxu0 0.0
        %1274 = vmatpush1.msra.mxu0 0.0
        %1275 = vmatprep.subr.mxu0 0.0
        %1276 = vmatpush1.msra.mxu0 0.0
        %1277 = vmatprep.subr.mxu0 0.0
        %1278 = vmatpush1.msra.mxu0 0.0
        %1279 = vmatprep.subr.mxu0 0.0
        %1280 = vmatpush1.msra.mxu0 0.0
        %1281 = vmatprep.subr.mxu0 0.0
        %1282 = vmatpush1.msra.mxu0 0.0
        %1283 = vmatprep.subr.mxu0 0.0
        %1284 = vmatpush1.msra.mxu0 0.0
        %1285 = vmatprep.subr.mxu0 0.0
        %1286 = vmatpush1.msra.mxu0 0.0
        %1287 = vmatprep.subr.mxu0 0.0
        %1288 = vmatpush1.msra.mxu0 0.0
        %1289 = vmatprep.subr.mxu0 0.0
        %1290 = vmatpush1.msra.mxu0 0.0
        %1291 = vmatprep.subr.mxu0 0.0
        %1292 = vmatpush1.msra.mxu0 0.0
        %1293 = vmatprep.subr.mxu0 0.0
        %1294 = vmatpush1.msra.mxu0 0.0
        %1295 = vmatprep.subr.mxu0 0.0
        %1296 = vmatpush1.msra.mxu0 0.0
        %1297 = vmatprep.subr.mxu0 0.0
        %1298 = vmatpush1.msra.mxu0 0.0
        %1299 = vmatprep.subr.mxu0 0.0
        %1300 = vmatpush1.msra.mxu0 0.0
        %1301 = vmatprep.subr.mxu0 0.0
        %1302 = vmatpush1.msra.mxu0 0.0
        %1303 = vmatprep.subr.mxu0 0.0
        %1304 = vmatpush1.msra.mxu0 0.0
        %1305 = vmatprep.subr.mxu0 0.0
        %1306 = vmatpush1.msra.mxu0 0.0
        %1307 = vmatprep.subr.mxu0 0.0
        %1308 = vmatpush1.msra.mxu0 0.0
        %1309 = vmatprep.mubr.f32.mxu0 0.0
        %1310 = vmatmul.mubr.f32.gmra.mrb[0].mxu0 %v1054
        %v1311 = vpop.f32.mrb[0].mxu0
        %v1312 = vadd.f32 %v1051, %v1311
        %v1313 = vpop.f32.mrb[0].mxu0
        %1314 = vmatprep.mubr.f32.mxu0 0.0
        %1315 = vmatmul.mubr.f32.gmra.mrb[0].mxu0 %v1057
        %v1316 = vpop.f32.mrb[0].mxu0
        %v1317 = vadd.f32 %v1051, %v1316
        %v1318 = vpop.f32.mrb[0].mxu0
        %1319 = vmatprep.mubr.f32.mxu0 0.0
        %1320 = vmatmul.mubr.f32.gmra.mrb[0].mxu0 %v1060
        %v1321 = vpop.f32.mrb[0].mxu0
        %v1322 = vadd.f32 %v1051, %v1321
        %v1323 = vpop.f32.mrb[0].mxu0
        %1324 = vmatprep.mubr.f32.mxu0 0.0
        %1325 = vmatmul.mubr.f32.gmra.mrb[0].mxu0 %v1063
        %v1326 = vpop.f32.mrb[0].mxu0
        %v1327 = vadd.f32 %v1051, %v1326
        %v1328 = vpop.f32.mrb[0].mxu0
        %1329 = vmatprep.mubr.f32.mxu0 0.0
        %1330 = vmatmul.mubr.f32.gmra.mrb[0].mxu0 %v1066
        %v1331 = vpop.f32.mrb[0].mxu0
        %v1332 = vadd.f32 %v1051, %v1331
        %v1333 = vpop.f32.mrb[0].mxu0
        %1334 = vmatprep.mubr.f32.mxu0 0.0
        %1335 = vmatmul.mubr.f32.gmra.mrb[0].mxu0 %v1069
        %v1336 = vpop.f32.mrb[0].mxu0
        %v1337 = vadd.f32 %v1051, %v1336
        %v1338 = vpop.f32.mrb[0].mxu0
        %1339 = vmatprep.mubr.f32.mxu0 0.0
        %1340 = vmatmul.mubr.f32.gmra.mrb[0].mxu0 %v1072
        %v1341 = vpop.f32.mrb[0].mxu0
        %v1342 = vadd.f32 %v1051, %v1341
        %v1343 = vpop.f32.mrb[0].mxu0
        %1344 = vmatprep.mubr.f32.mxu0 0.0
        %1345 = vmatmul.mubr.f32.gmra.mrb[0].mxu0 %v1075
        %v1346 = vpop.f32.mrb[0].mxu0
        %v1347 = vadd.f32 %v1051, %v1346
        %v1348 = vpop.f32.mrb[0].mxu0
        %1349 = vmatprep.mubr.f32.mxu0 0.0
        %1350 = vmatmul.mubr.f32.gmra.mrb[0].mxu0 %v1078
        %v1351 = vpop.f32.mrb[0].mxu0
        %v1352 = vadd.f32 %v1051, %v1351
        %v1353 = vpop.f32.mrb[0].mxu0
        %1354 = vmatprep.mubr.f32.mxu0 0.0
        %1355 = vmatmul.mubr.f32.gmra.mrb[0].mxu0 %v1081
        %v1356 = vpop.f32.mrb[0].mxu0
        %v1357 = vadd.f32 %v1051, %v1356
        %v1358 = vpop.f32.mrb[0].mxu0
        %1359 = vmatprep.mubr.f32.mxu0 0.0
        %1360 = vmatmul.mubr.f32.gmra.mrb[0].mxu0 %v1084
        %v1361 = vpop.f32.mrb[0].mxu0
        %v1362 = vadd.f32 %v1051, %v1361
        %v1363 = vpop.f32.mrb[0].mxu0
        %1364 = vmatprep.mubr.f32.mxu0 0.0
        %1365 = vmatmul.mubr.f32.gmra.mrb[0].mxu0 %v1087
        %v1366 = vpop.f32.mrb[0].mxu0
        %v1367 = vadd.f32 %v1051, %v1366
        %v1368 = vpop.f32.mrb[0].mxu0
        %1369 = vmatprep.mubr.f32.mxu0 0.0
        %1370 = vmatmul.mubr.f32.gmra.mrb[0].mxu0 %v1090
        %v1371 = vpop.f32.mrb[0].mxu0
        %v1372 = vadd.f32 %v1051, %v1371
        %v1373 = vpop.f32.mrb[0].mxu0
        %1374 = vmatprep.mubr.f32.mxu0 0.0
        %1375 = vmatmul.mubr.f32.gmra.mrb[0].mxu0 %v1093
        %v1376 = vpop.f32.mrb[0].mxu0
        %v1377 = vadd.f32 %v1051, %v1376
        %v1378 = vpop.f32.mrb[0].mxu0
        %1379 = vmatprep.mubr.f32.mxu0 0.0
        %1380 = vmatmul.mubr.f32.gmra.mrb[0].mxu0 %v1096
        %v1381 = vpop.f32.mrb[0].mxu0
        %v1382 = vadd.f32 %v1051, %v1381
        %v1383 = vpop.f32.mrb[0].mxu0
        %1384 = vmatprep.mubr.f32.mxu0 0.0
        %1385 = vmatmul.mubr.f32.gmra.mrb[0].mxu0 %v1099
        %v1386 = vpop.f32.mrb[0].mxu0
        %v1387 = vadd.f32 %v1051, %v1386
        %v1388 = vpop.f32.mrb[0].mxu0
        %1389 = vmatprep.mubr.f32.mxu0 0.0
        %1390 = vmatmul.mubr.f32.gmra.mrb[0].mxu0 %v1102
        %v1391 = vpop.f32.mrb[0].mxu0
        %v1392 = vadd.f32 %v1051, %v1391
        %v1393 = vpop.f32.mrb[0].mxu0
        %1394 = vmatprep.mubr.f32.mxu0 0.0
        %1395 = vmatmul.mubr.f32.gmra.mrb[0].mxu0 %v1105
        %v1396 = vpop.f32.mrb[0].mxu0
        %v1397 = vadd.f32 %v1051, %v1396
        %v1398 = vpop.f32.mrb[0].mxu0
        %1399 = vmatprep.mubr.f32.mxu0 0.0
        %1400 = vmatmul.mubr.f32.gmra.mrb[0].mxu0 %v1108
        %v1401 = vpop.f32.mrb[0].mxu0
        %v1402 = vadd.f32 %v1051, %v1401
        %v1403 = vpop.f32.mrb[0].mxu0
        %1404 = vmatprep.mubr.f32.mxu0 0.0
        %1405 = vmatmul.mubr.f32.gmra.mrb[0].mxu0 %v1111
        %v1406 = vpop.f32.mrb[0].mxu0
        %v1407 = vadd.f32 %v1051, %v1406
        %v1408 = vpop.f32.mrb[0].mxu0
        %1409 = vmatprep.mubr.f32.mxu0 0.0
        %1410 = vmatmul.mubr.f32.gmra.mrb[0].mxu0 %v1114
        %v1411 = vpop.f32.mrb[0].mxu0
        %v1412 = vadd.f32 %v1051, %v1411
        %v1413 = vpop.f32.mrb[0].mxu0
        %1414 = vmatprep.mubr.f32.mxu0 0.0
        %1415 = vmatmul.mubr.f32.gmra.mrb[0].mxu0 %v1117
        %v1416 = vpop.f32.mrb[0].mxu0
        %v1417 = vadd.f32 %v1051, %v1416
        %v1418 = vpop.f32.mrb[0].mxu0
        %1419 = vmatprep.mubr.f32.mxu0 0.0
        %1420 = vmatmul.mubr.f32.gmra.mrb[0].mxu0 %v1120
        %v1421 = vpop.f32.mrb[0].mxu0
        %v1422 = vadd.f32 %v1051, %v1421
        %v1423 = vpop.f32.mrb[0].mxu0
        %1424 = vmatprep.mubr.f32.mxu0 0.0
        %1425 = vmatmul.mubr.f32.gmra.mrb[0].mxu0 %v1123
        %v1426 = vpop.f32.mrb[0].mxu0
        %v1427 = vadd.f32 %v1051, %v1426
        %v1428 = vpop.f32.mrb[0].mxu0
        %1429 = vmatprep.mubr.f32.mxu0 0.0
        %1430 = vmatmul.mubr.f32.gmra.mrb[0].mxu0 %v1126
        %v1431 = vpop.f32.mrb[0].mxu0
        %v1432 = vadd.f32 %v1051, %v1431
        %v1433 = vpop.f32.mrb[0].mxu0
        %1434 = vmatprep.mubr.f32.mxu0 0.0
        %1435 = vmatmul.mubr.f32.gmra.mrb[0].mxu0 %v1129
        %v1436 = vpop.f32.mrb[0].mxu0
        %v1437 = vadd.f32 %v1051, %v1436
        %v1438 = vpop.f32.mrb[0].mxu0
        %1439 = vmatprep.mubr.f32.mxu0 0.0
        %1440 = vmatmul.mubr.f32.gmra.mrb[0].mxu0 %v1132
        %v1441 = vpop.f32.mrb[0].mxu0
        %v1442 = vadd.f32 %v1051, %v1441
        %v1443 = vpop.f32.mrb[0].mxu0
        %1444 = vmatprep.mubr.f32.mxu0 0.0
        %1445 = vmatmul.mubr.f32.gmra.mrb[0].mxu0 %v1135
        %v1446 = vpop.f32.mrb[0].mxu0
        %v1447 = vadd.f32 %v1051, %v1446
        %v1448 = vpop.f32.mrb[0].mxu0
        %1449 = vmatprep.mubr.f32.mxu0 0.0
        %1450 = vmatmul.mubr.f32.gmra.mrb[0].mxu0 %v1138
        %v1451 = vpop.f32.mrb[0].mxu0
        %v1452 = vadd.f32 %v1051, %v1451
        %v1453 = vpop.f32.mrb[0].mxu0
        %1454 = vmatprep.mubr.f32.mxu0 0.0
        %1455 = vmatmul.mubr.f32.gmra.mrb[0].mxu0 %v1141
        %v1456 = vpop.f32.mrb[0].mxu0
        %v1457 = vadd.f32 %v1051, %v1456
        %v1458 = vpop.f32.mrb[0].mxu0
        %1459 = vmatprep.mubr.f32.mxu0 0.0
        %1460 = vmatmul.mubr.f32.gmra.mrb[0].mxu0 %v1144
        %v1461 = vpop.f32.mrb[0].mxu0
        %v1462 = vadd.f32 %v1051, %v1461
        %v1463 = vpop.f32.mrb[0].mxu0
        %1464 = vmatprep.mubr.f32.mxu0 0.0
        %1465 = vmatmul.mubr.f32.gmra.mrb[0].mxu0 %v1147
        %v1466 = vpop.f32.mrb[0].mxu0
        %v1467 = vadd.f32 %v1051, %v1466
        %v1468 = vpop.f32.mrb[0].mxu0
        %1469 = vmatprep.mubr.f32.mxu0 0.0
        %1470 = vmatmul.mubr.f32.gmra.mrb[0].mxu0 %v1150
        %v1471 = vpop.f32.mrb[0].mxu0
        %v1472 = vadd.f32 %v1051, %v1471
        %v1473 = vpop.f32.mrb[0].mxu0
        %1474 = vmatprep.mubr.f32.mxu0 0.0
        %1475 = vmatmul.mubr.f32.gmra.mrb[0].mxu0 %v1153
        %v1476 = vpop.f32.mrb[0].mxu0
        %v1477 = vadd.f32 %v1051, %v1476
        %v1478 = vpop.f32.mrb[0].mxu0
        %1479 = vmatprep.mubr.f32.mxu0 0.0
        %1480 = vmatmul.mubr.f32.gmra.mrb[0].mxu0 %v1156
        %v1481 = vpop.f32.mrb[0].mxu0
        %v1482 = vadd.f32 %v1051, %v1481
        %v1483 = vpop.f32.mrb[0].mxu0
        %1484 = vmatprep.mubr.f32.mxu0 0.0
        %1485 = vmatmul.mubr.f32.gmra.mrb[0].mxu0 %v1159
        %v1486 = vpop.f32.mrb[0].mxu0
        %v1487 = vadd.f32 %v1051, %v1486
        %v1488 = vpop.f32.mrb[0].mxu0
        %1489 = vmatprep.mubr.f32.mxu0 0.0
        %1490 = vmatmul.mubr.f32.gmra.mrb[0].mxu0 %v1162
        %v1491 = vpop.f32.mrb[0].mxu0
        %v1492 = vadd.f32 %v1051, %v1491
        %v1493 = vpop.f32.mrb[0].mxu0
        %1494 = vmatprep.mubr.f32.mxu0 0.0
        %1495 = vmatmul.mubr.f32.gmra.mrb[0].mxu0 %v1165
        %v1496 = vpop.f32.mrb[0].mxu0
        %v1497 = vadd.f32 %v1051, %v1496
        %v1498 = vpop.f32.mrb[0].mxu0
        %1499 = vmatprep.mubr.f32.mxu0 0.0
        %1500 = vmatmul.mubr.f32.gmra.mrb[0].mxu0 %v1168
        %v1501 = vpop.f32.mrb[0].mxu0
        %v1502 = vadd.f32 %v1051, %v1501
        %v1503 = vpop.f32.mrb[0].mxu0
        %1504 = vmatprep.mubr.f32.mxu0 0.0
        %1505 = vmatmul.mubr.f32.gmra.mrb[0].mxu0 %v1171
        %v1506 = vpop.f32.mrb[0].mxu0
        %v1507 = vadd.f32 %v1051, %v1506
        %v1508 = vpop.f32.mrb[0].mxu0
        %1509 = vmatprep.mubr.f32.mxu0 0.0
        %1510 = vmatmul.mubr.f32.gmra.mrb[0].mxu0 %v1174
        %v1511 = vpop.f32.mrb[0].mxu0
        %v1512 = vadd.f32 %v1051, %v1511
        %v1513 = vpop.f32.mrb[0].mxu0
        %1514 = vmatprep.mubr.f32.mxu0 0.0
        %1515 = vmatmul.mubr.f32.gmra.mrb[0].mxu0 %v1177
        %v1516 = vpop.f32.mrb[0].mxu0
        %v1517 = vadd.f32 %v1051, %v1516
        %v1518 = vpop.f32.mrb[0].mxu0
        %1519 = vmatprep.mubr.f32.mxu0 0.0
        %1520 = vmatmul.mubr.f32.gmra.mrb[0].mxu0 %v1180
        %v1521 = vpop.f32.mrb[0].mxu0
        %v1522 = vadd.f32 %v1051, %v1521
        %v1523 = vpop.f32.mrb[0].mxu0
        %1524 = vmatprep.mubr.f32.mxu0 0.0
        %1525 = vmatmul.mubr.f32.gmra.mrb[0].mxu0 %v1183
        %v1526 = vpop.f32.mrb[0].mxu0
        %v1527 = vadd.f32 %v1051, %v1526
        %v1528 = vpop.f32.mrb[0].mxu0
        %1529 = vmatprep.mubr.f32.mxu0 0.0
        %1530 = vmatmul.mubr.f32.gmra.mrb[0].mxu0 %v1186
        %v1531 = vpop.f32.mrb[0].mxu0
        %v1532 = vadd.f32 %v1051, %v1531
        %v1533 = vpop.f32.mrb[0].mxu0
        %1534 = vmatprep.mubr.f32.mxu0 0.0
        %1535 = vmatmul.mubr.f32.gmra.mrb[0].mxu0 %v1189
        %v1536 = vpop.f32.mrb[0].mxu0
        %v1537 = vadd.f32 %v1051, %v1536
        %v1538 = vpop.f32.mrb[0].mxu0
        %1539 = vmatprep.mubr.f32.mxu0 0.0
        %1540 = vmatmul.mubr.f32.gmra.mrb[0].mxu0 %v1192
        %v1541 = vpop.f32.mrb[0].mxu0
        %v1542 = vadd.f32 %v1051, %v1541
        %v1543 = vpop.f32.mrb[0].mxu0
        %1544 = vmatprep.mubr.f32.mxu0 0.0
        %1545 = vmatmul.mubr.f32.gmra.mrb[0].mxu0 %v1195
        %v1546 = vpop.f32.mrb[0].mxu0
        %v1547 = vadd.f32 %v1051, %v1546
        %v1548 = vpop.f32.mrb[0].mxu0
        %1549 = vmatprep.mubr.f32.mxu0 0.0
        %1550 = vmatmul.mubr.f32.gmra.mrb[0].mxu0 %v1198
        %v1551 = vpop.f32.mrb[0].mxu0
        %v1552 = vadd.f32 %v1051, %v1551
        %v1553 = vpop.f32.mrb[0].mxu0
        %1554 = vmatprep.mubr.f32.mxu0 0.0
        %1555 = vmatmul.mubr.f32.gmra.mrb[0].mxu0 %v1201
        %v1556 = vpop.f32.mrb[0].mxu0
        %v1557 = vadd.f32 %v1051, %v1556
        %v1558 = vpop.f32.mrb[0].mxu0
        %1559 = vmatprep.mubr.f32.mxu0 0.0
        %1560 = vmatmul.mubr.f32.gmra.mrb[0].mxu0 %v1204
        %v1561 = vpop.f32.mrb[0].mxu0
        %v1562 = vadd.f32 %v1051, %v1561
        %v1563 = vpop.f32.mrb[0].mxu0
        %1564 = vmatprep.mubr.f32.mxu0 0.0
        %1565 = vmatmul.mubr.f32.gmra.mrb[0].mxu0 %v1207
        %v1566 = vpop.f32.mrb[0].mxu0
        %v1567 = vadd.f32 %v1051, %v1566
        %v1568 = vpop.f32.mrb[0].mxu0
        %1569 = vmatprep.mubr.f32.mxu0 0.0
        %1570 = vmatmul.mubr.f32.gmra.mrb[0].mxu0 %v1210
        %v1571 = vpop.f32.mrb[0].mxu0
        %v1572 = vadd.f32 %v1051, %v1571
        %v1573 = vpop.f32.mrb[0].mxu0
        %1574 = vmatprep.mubr.f32.mxu0 0.0
        %1575 = vmatmul.mubr.f32.gmra.mrb[0].mxu0 %v1213
        %v1576 = vpop.f32.mrb[0].mxu0
        %v1577 = vadd.f32 %v1051, %v1576
        %v1578 = vpop.f32.mrb[0].mxu0
        %1579 = vmatprep.mubr.f32.mxu0 0.0
        %1580 = vmatmul.mubr.f32.gmra.mrb[0].mxu0 %v1216
        %v1581 = vpop.f32.mrb[0].mxu0
        %v1582 = vadd.f32 %v1051, %v1581
        %v1583 = vpop.f32.mrb[0].mxu0
        %1584 = vmatprep.mubr.f32.mxu0 0.0
        %1585 = vmatmul.mubr.f32.gmra.mrb[0].mxu0 %v1219
        %v1586 = vpop.f32.mrb[0].mxu0
        %v1587 = vadd.f32 %v1051, %v1586
        %v1588 = vpop.f32.mrb[0].mxu0
        %1589 = vmatprep.mubr.f32.mxu0 0.0
        %1590 = vmatmul.mubr.f32.gmra.mrb[0].mxu0 %v1222
        %v1591 = vpop.f32.mrb[0].mxu0
        %v1592 = vadd.f32 %v1051, %v1591
        %v1593 = vpop.f32.mrb[0].mxu0
        %1594 = vmatprep.mubr.f32.mxu0 0.0
        %1595 = vmatmul.mubr.f32.gmra.mrb[0].mxu0 %v1225
        %v1596 = vpop.f32.mrb[0].mxu0
        %v1597 = vadd.f32 %v1051, %v1596
        %v1598 = vpop.f32.mrb[0].mxu0
        %1599 = vmatprep.mubr.f32.mxu0 0.0
        %1600 = vmatmul.mubr.f32.gmra.mrb[0].mxu0 %v1228
        %v1601 = vpop.f32.mrb[0].mxu0
        %v1602 = vadd.f32 %v1051, %v1601
        %v1603 = vpop.f32.mrb[0].mxu0
        %1604 = vmatprep.mubr.f32.mxu0 0.0
        %1605 = vmatmul.mubr.f32.gmra.mrb[0].mxu0 %v1231
        %v1606 = vpop.f32.mrb[0].mxu0
        %v1607 = vadd.f32 %v1051, %v1606
        %v1608 = vpop.f32.mrb[0].mxu0
        %1609 = vmatprep.mubr.f32.mxu0 0.0
        %1610 = vmatmul.mubr.f32.gmra.mrb[0].mxu0 %v1234
        %v1611 = vpop.f32.mrb[0].mxu0
        %v1612 = vadd.f32 %v1051, %v1611
        %v1613 = vpop.f32.mrb[0].mxu0
        %1614 = vmatprep.mubr.f32.mxu0 0.0
        %1615 = vmatmul.mubr.f32.gmra.mrb[0].mxu0 %v1237
        %v1616 = vpop.f32.mrb[0].mxu0
        %v1617 = vadd.f32 %v1051, %v1616
        %v1618 = vpop.f32.mrb[0].mxu0
        %1619 = vmatprep.mubr.f32.mxu0 0.0
        %1620 = vmatmul.mubr.f32.gmra.mrb[0].mxu0 %v1240
        %v1621 = vpop.f32.mrb[0].mxu0
        %v1622 = vadd.f32 %v1051, %v1621
        %v1623 = vpop.f32.mrb[0].mxu0
        %1624 = vmatprep.mubr.f32.mxu0 0.0
        %1625 = vmatmul.mubr.f32.gmra.mrb[0].mxu0 %v1243
        %v1626 = vpop.f32.mrb[0].mxu0
        %v1627 = vadd.f32 %v1051, %v1626
        %v1628 = vpop.f32.mrb[0].mxu0
        %1629 = vdwg.mxu0
        %v1630 = vmax.f32 %v1312, 0.0
        %v1631 = vmax.f32 %v1317, 0.0
        %v1632 = vmax.f32 %v1322, 0.0
        %v1633 = vmax.f32 %v1327, 0.0
        %v1634 = vmax.f32 %v1332, 0.0
        %v1635 = vmax.f32 %v1337, 0.0
        %v1636 = vmax.f32 %v1342, 0.0
        %v1637 = vmax.f32 %v1347, 0.0
        %v1638 = vmax.f32 %v1352, 0.0
        %v1639 = vmax.f32 %v1357, 0.0
        %v1640 = vmax.f32 %v1362, 0.0
        %v1641 = vmax.f32 %v1367, 0.0
        %v1642 = vmax.f32 %v1372, 0.0
        %v1643 = vmax.f32 %v1377, 0.0
        %v1644 = vmax.f32 %v1382, 0.0
        %v1645 = vmax.f32 %v1387, 0.0
        %v1646 = vmax.f32 %v1392, 0.0
        %v1647 = vmax.f32 %v1397, 0.0
        %v1648 = vmax.f32 %v1402, 0.0
        %v1649 = vmax.f32 %v1407, 0.0
        %v1650 = vmax.f32 %v1412, 0.0
        %v1651 = vmax.f32 %v1417, 0.0
        %v1652 = vmax.f32 %v1422, 0.0
        %v1653 = vmax.f32 %v1427, 0.0
        %v1654 = vmax.f32 %v1432, 0.0
        %v1655 = vmax.f32 %v1437, 0.0
        %v1656 = vmax.f32 %v1442, 0.0
        %v1657 = vmax.f32 %v1447, 0.0
        %v1658 = vmax.f32 %v1452, 0.0
        %v1659 = vmax.f32 %v1457, 0.0
        %v1660 = vmax.f32 %v1462, 0.0
        %v1661 = vmax.f32 %v1467, 0.0
        %v1662 = vmax.f32 %v1472, 0.0
        %v1663 = vmax.f32 %v1477, 0.0
        %v1664 = vmax.f32 %v1482, 0.0
        %v1665 = vmax.f32 %v1487, 0.0
        %v1666 = vmax.f32 %v1492, 0.0
        %v1667 = vmax.f32 %v1497, 0.0
        %v1668 = vmax.f32 %v1502, 0.0
        %v1669 = vmax.f32 %v1507, 0.0
        %v1670 = vmax.f32 %v1512, 0.0
        %v1671 = vmax.f32 %v1517, 0.0
        %v1672 = vmax.f32 %v1522, 0.0
        %v1673 = vmax.f32 %v1527, 0.0
        %v1674 = vmax.f32 %v1532, 0.0
        %v1675 = vmax.f32 %v1537, 0.0
        %v1676 = vmax.f32 %v1542, 0.0
        %v1677 = vmax.f32 %v1547, 0.0
        %v1678 = vmax.f32 %v1552, 0.0
        %v1679 = vmax.f32 %v1557, 0.0
        %v1680 = vmax.f32 %v1562, 0.0
        %v1681 = vmax.f32 %v1567, 0.0
        %v1682 = vmax.f32 %v1572, 0.0
        %v1683 = vmax.f32 %v1577, 0.0
        %v1684 = vmax.f32 %v1582, 0.0
        %v1685 = vmax.f32 %v1587, 0.0
        %v1686 = vmax.f32 %v1592, 0.0
        %v1687 = vmax.f32 %v1597, 0.0
        %v1688 = vmax.f32 %v1602, 0.0
        %v1689 = vmax.f32 %v1607, 0.0
        %v1690 = vmax.f32 %v1612, 0.0
        %v1691 = vmax.f32 %v1617, 0.0
        %v1692 = vmax.f32 %v1622, 0.0
        %v1693 = vmax.f32 %v1627, 0.0
        %v1694 = vld [vmem:[%s1 + $0x18] sm:$0xff]
        %v1695 = vld [vmem:[%s1 + $0x20] sm:$0xff]
        %v1696 = vld [vmem:[%s2 + $0x2] sm:$0x1]
        %v1697 = vlaneseq
        %v1698 = vshrl.u32 %v1697, 7
        %v1699 = vsub.s32 0, %v1698
        %v1700 = vrot.slane %v1696, %v1699
        %v1702 = vsel %vm1052, %v1630, 0
        %v1705 = vsel %vm1052, %v1631, 0
        %v1708 = vsel %vm1052, %v1632, 0
        %v1711 = vsel %vm1052, %v1633, 0
        %v1714 = vsel %vm1052, %v1634, 0
        %v1717 = vsel %vm1052, %v1635, 0
        %v1720 = vsel %vm1052, %v1636, 0
        %v1723 = vsel %vm1052, %v1637, 0
        %v1726 = vsel %vm1052, %v1638, 0
        %v1729 = vsel %vm1052, %v1639, 0
        %v1732 = vsel %vm1052, %v1640, 0
        %v1735 = vsel %vm1052, %v1641, 0
        %v1738 = vsel %vm1052, %v1642, 0
        %v1741 = vsel %vm1052, %v1643, 0
        %v1744 = vsel %vm1052, %v1644, 0
        %v1747 = vsel %vm1052, %v1645, 0
        %v1750 = vsel %vm1052, %v1646, 0
        %v1753 = vsel %vm1052, %v1647, 0
        %v1756 = vsel %vm1052, %v1648, 0
        %v1759 = vsel %vm1052, %v1649, 0
        %v1762 = vsel %vm1052, %v1650, 0
        %v1765 = vsel %vm1052, %v1651, 0
        %v1768 = vsel %vm1052, %v1652, 0
        %v1771 = vsel %vm1052, %v1653, 0
        %v1774 = vsel %vm1052, %v1654, 0
        %v1777 = vsel %vm1052, %v1655, 0
        %v1780 = vsel %vm1052, %v1656, 0
        %v1783 = vsel %vm1052, %v1657, 0
        %v1786 = vsel %vm1052, %v1658, 0
        %v1789 = vsel %vm1052, %v1659, 0
        %v1792 = vsel %vm1052, %v1660, 0
        %v1795 = vsel %vm1052, %v1661, 0
        %v1798 = vsel %vm1052, %v1662, 0
        %v1801 = vsel %vm1052, %v1663, 0
        %v1804 = vsel %vm1052, %v1664, 0
        %v1807 = vsel %vm1052, %v1665, 0
        %v1810 = vsel %vm1052, %v1666, 0
        %v1813 = vsel %vm1052, %v1667, 0
        %v1816 = vsel %vm1052, %v1668, 0
        %v1819 = vsel %vm1052, %v1669, 0
        %v1822 = vsel %vm1052, %v1670, 0
        %v1825 = vsel %vm1052, %v1671, 0
        %v1828 = vsel %vm1052, %v1672, 0
        %v1831 = vsel %vm1052, %v1673, 0
        %v1834 = vsel %vm1052, %v1674, 0
        %v1837 = vsel %vm1052, %v1675, 0
        %v1840 = vsel %vm1052, %v1676, 0
        %v1843 = vsel %vm1052, %v1677, 0
        %v1846 = vsel %vm1052, %v1678, 0
        %v1849 = vsel %vm1052, %v1679, 0
        %v1852 = vsel %vm1052, %v1680, 0
        %v1855 = vsel %vm1052, %v1681, 0
        %v1858 = vsel %vm1052, %v1682, 0
        %v1861 = vsel %vm1052, %v1683, 0
        %v1864 = vsel %vm1052, %v1684, 0
        %v1867 = vsel %vm1052, %v1685, 0
        %v1870 = vsel %vm1052, %v1686, 0
        %v1873 = vsel %vm1052, %v1687, 0
        %v1876 = vsel %vm1052, %v1688, 0
        %v1879 = vsel %vm1052, %v1689, 0
        %v1882 = vsel %vm1052, %v1690, 0
        %v1885 = vsel %vm1052, %v1691, 0
        %v1888 = vsel %vm1052, %v1692, 0
        %v1891 = vsel %vm1052, %v1693, 0
        %1893 = vmatprep.subr.mxu0 0.0
        %1894 = vmatpush1.msra.mxu0 %v1694
        %1895 = vmatprep.subr.mxu0 0.0
        %1896 = vmatpush1.msra.mxu0 %v1695
        %1897 = vmatprep.subr.mxu0 0.0
        %1898 = vmatpush1.msra.mxu0 0.0
        %1899 = vmatprep.subr.mxu0 0.0
        %1900 = vmatpush1.msra.mxu0 0.0
        %1901 = vmatprep.subr.mxu0 0.0
        %1902 = vmatpush1.msra.mxu0 0.0
        %1903 = vmatprep.subr.mxu0 0.0
        %1904 = vmatpush1.msra.mxu0 0.0
        %1905 = vmatprep.subr.mxu0 0.0
        %1906 = vmatpush1.msra.mxu0 0.0
        %1907 = vmatprep.subr.mxu0 0.0
        %1908 = vmatpush1.msra.mxu0 0.0
        %1909 = vmatprep.subr.mxu0 0.0
        %1910 = vmatpush1.msra.mxu0 0.0
        %1911 = vmatprep.subr.mxu0 0.0
        %1912 = vmatpush1.msra.mxu0 0.0
        %1913 = vmatprep.subr.mxu0 0.0
        %1914 = vmatpush1.msra.mxu0 0.0
        %1915 = vmatprep.subr.mxu0 0.0
        %1916 = vmatpush1.msra.mxu0 0.0
        %1917 = vmatprep.subr.mxu0 0.0
        %1918 = vmatpush1.msra.mxu0 0.0
        %1919 = vmatprep.subr.mxu0 0.0
        %1920 = vmatpush1.msra.mxu0 0.0
        %1921 = vmatprep.subr.mxu0 0.0
        %1922 = vmatpush1.msra.mxu0 0.0
        %1923 = vmatprep.subr.mxu0 0.0
        %1924 = vmatpush1.msra.mxu0 0.0
        %1925 = vmatprep.subr.mxu0 0.0
        %1926 = vmatpush1.msra.mxu0 0.0
        %1927 = vmatprep.subr.mxu0 0.0
        %1928 = vmatpush1.msra.mxu0 0.0
        %1929 = vmatprep.subr.mxu0 0.0
        %1930 = vmatpush1.msra.mxu0 0.0
        %1931 = vmatprep.subr.mxu0 0.0
        %1932 = vmatpush1.msra.mxu0 0.0
        %1933 = vmatprep.subr.mxu0 0.0
        %1934 = vmatpush1.msra.mxu0 0.0
        %1935 = vmatprep.subr.mxu0 0.0
        %1936 = vmatpush1.msra.mxu0 0.0
        %1937 = vmatprep.subr.mxu0 0.0
        %1938 = vmatpush1.msra.mxu0 0.0
        %1939 = vmatprep.subr.mxu0 0.0
        %1940 = vmatpush1.msra.mxu0 0.0
        %1941 = vmatprep.subr.mxu0 0.0
        %1942 = vmatpush1.msra.mxu0 0.0
        %1943 = vmatprep.subr.mxu0 0.0
        %1944 = vmatpush1.msra.mxu0 0.0
        %1945 = vmatprep.subr.mxu0 0.0
        %1946 = vmatpush1.msra.mxu0 0.0
        %1947 = vmatprep.subr.mxu0 0.0
        %1948 = vmatpush1.msra.mxu0 0.0
        %1949 = vmatprep.subr.mxu0 0.0
        %1950 = vmatpush1.msra.mxu0 0.0
        %1951 = vmatprep.subr.mxu0 0.0
        %1952 = vmatpush1.msra.mxu0 0.0
        %1953 = vmatprep.subr.mxu0 0.0
        %1954 = vmatpush1.msra.mxu0 0.0
        %1955 = vmatprep.subr.mxu0 0.0
        %1956 = vmatpush1.msra.mxu0 0.0
        %1957 = vmatprep.mubr.f32.mxu0 0.0
        %1958 = vmatmul.mubr.f32.gmra.mrb[0].mxu0 %v1702
        %v1959 = vpop.f32.mrb[0].mxu0
        %v1960 = vadd.f32 %v1700, %v1959
        %v1961 = vpop.f32.mrb[0].mxu0
        %1962 = vmatprep.mubr.f32.mxu0 0.0
        %1963 = vmatmul.mubr.f32.gmra.mrb[0].mxu0 %v1705
        %v1964 = vpop.f32.mrb[0].mxu0
        %v1965 = vadd.f32 %v1700, %v1964
        %v1966 = vpop.f32.mrb[0].mxu0
        %1967 = vmatprep.mubr.f32.mxu0 0.0
        %1968 = vmatmul.mubr.f32.gmra.mrb[0].mxu0 %v1708
        %v1969 = vpop.f32.mrb[0].mxu0
        %v1970 = vadd.f32 %v1700, %v1969
        %v1971 = vpop.f32.mrb[0].mxu0
        %1972 = vmatprep.mubr.f32.mxu0 0.0
        %1973 = vmatmul.mubr.f32.gmra.mrb[0].mxu0 %v1711
        %v1974 = vpop.f32.mrb[0].mxu0
        %v1975 = vadd.f32 %v1700, %v1974
        %v1976 = vpop.f32.mrb[0].mxu0
        %1977 = vmatprep.mubr.f32.mxu0 0.0
        %1978 = vmatmul.mubr.f32.gmra.mrb[0].mxu0 %v1714
        %v1979 = vpop.f32.mrb[0].mxu0
        %v1980 = vadd.f32 %v1700, %v1979
        %v1981 = vpop.f32.mrb[0].mxu0
        %1982 = vmatprep.mubr.f32.mxu0 0.0
        %1983 = vmatmul.mubr.f32.gmra.mrb[0].mxu0 %v1717
        %v1984 = vpop.f32.mrb[0].mxu0
        %v1985 = vadd.f32 %v1700, %v1984
        %v1986 = vpop.f32.mrb[0].mxu0
        %1987 = vmatprep.mubr.f32.mxu0 0.0
        %1988 = vmatmul.mubr.f32.gmra.mrb[0].mxu0 %v1720
        %v1989 = vpop.f32.mrb[0].mxu0
        %v1990 = vadd.f32 %v1700, %v1989
        %v1991 = vpop.f32.mrb[0].mxu0
        %1992 = vmatprep.mubr.f32.mxu0 0.0
        %1993 = vmatmul.mubr.f32.gmra.mrb[0].mxu0 %v1723
        %v1994 = vpop.f32.mrb[0].mxu0
        %v1995 = vadd.f32 %v1700, %v1994
        %v1996 = vpop.f32.mrb[0].mxu0
        %1997 = vmatprep.mubr.f32.mxu0 0.0
        %1998 = vmatmul.mubr.f32.gmra.mrb[0].mxu0 %v1726
        %v1999 = vpop.f32.mrb[0].mxu0
        %v2000 = vadd.f32 %v1700, %v1999
        %v2001 = vpop.f32.mrb[0].mxu0
        %2002 = vmatprep.mubr.f32.mxu0 0.0
        %2003 = vmatmul.mubr.f32.gmra.mrb[0].mxu0 %v1729
        %v2004 = vpop.f32.mrb[0].mxu0
        %v2005 = vadd.f32 %v1700, %v2004
        %v2006 = vpop.f32.mrb[0].mxu0
        %2007 = vmatprep.mubr.f32.mxu0 0.0
        %2008 = vmatmul.mubr.f32.gmra.mrb[0].mxu0 %v1732
        %v2009 = vpop.f32.mrb[0].mxu0
        %v2010 = vadd.f32 %v1700, %v2009
        %v2011 = vpop.f32.mrb[0].mxu0
        %2012 = vmatprep.mubr.f32.mxu0 0.0
        %2013 = vmatmul.mubr.f32.gmra.mrb[0].mxu0 %v1735
        %v2014 = vpop.f32.mrb[0].mxu0
        %v2015 = vadd.f32 %v1700, %v2014
        %v2016 = vpop.f32.mrb[0].mxu0
        %2017 = vmatprep.mubr.f32.mxu0 0.0
        %2018 = vmatmul.mubr.f32.gmra.mrb[0].mxu0 %v1738
        %v2019 = vpop.f32.mrb[0].mxu0
        %v2020 = vadd.f32 %v1700, %v2019
        %v2021 = vpop.f32.mrb[0].mxu0
        %2022 = vmatprep.mubr.f32.mxu0 0.0
        %2023 = vmatmul.mubr.f32.gmra.mrb[0].mxu0 %v1741
        %v2024 = vpop.f32.mrb[0].mxu0
        %v2025 = vadd.f32 %v1700, %v2024
        %v2026 = vpop.f32.mrb[0].mxu0
        %2027 = vmatprep.mubr.f32.mxu0 0.0
        %2028 = vmatmul.mubr.f32.gmra.mrb[0].mxu0 %v1744
        %v2029 = vpop.f32.mrb[0].mxu0
        %v2030 = vadd.f32 %v1700, %v2029
        %v2031 = vpop.f32.mrb[0].mxu0
        %2032 = vmatprep.mubr.f32.mxu0 0.0
        %2033 = vmatmul.mubr.f32.gmra.mrb[0].mxu0 %v1747
        %v2034 = vpop.f32.mrb[0].mxu0
        %v2035 = vadd.f32 %v1700, %v2034
        %v2036 = vpop.f32.mrb[0].mxu0
        %2037 = vmatprep.mubr.f32.mxu0 0.0
        %2038 = vmatmul.mubr.f32.gmra.mrb[0].mxu0 %v1750
        %v2039 = vpop.f32.mrb[0].mxu0
        %v2040 = vadd.f32 %v1700, %v2039
        %v2041 = vpop.f32.mrb[0].mxu0
        %2042 = vmatprep.mubr.f32.mxu0 0.0
        %2043 = vmatmul.mubr.f32.gmra.mrb[0].mxu0 %v1753
        %v2044 = vpop.f32.mrb[0].mxu0
        %v2045 = vadd.f32 %v1700, %v2044
        %v2046 = vpop.f32.mrb[0].mxu0
        %2047 = vmatprep.mubr.f32.mxu0 0.0
        %2048 = vmatmul.mubr.f32.gmra.mrb[0].mxu0 %v1756
        %v2049 = vpop.f32.mrb[0].mxu0
        %v2050 = vadd.f32 %v1700, %v2049
        %v2051 = vpop.f32.mrb[0].mxu0
        %2052 = vmatprep.mubr.f32.mxu0 0.0
        %2053 = vmatmul.mubr.f32.gmra.mrb[0].mxu0 %v1759
        %v2054 = vpop.f32.mrb[0].mxu0
        %v2055 = vadd.f32 %v1700, %v2054
        %v2056 = vpop.f32.mrb[0].mxu0
        %2057 = vmatprep.mubr.f32.mxu0 0.0
        %2058 = vmatmul.mubr.f32.gmra.mrb[0].mxu0 %v1762
        %v2059 = vpop.f32.mrb[0].mxu0
        %v2060 = vadd.f32 %v1700, %v2059
        %v2061 = vpop.f32.mrb[0].mxu0
        %2062 = vmatprep.mubr.f32.mxu0 0.0
        %2063 = vmatmul.mubr.f32.gmra.mrb[0].mxu0 %v1765
        %v2064 = vpop.f32.mrb[0].mxu0
        %v2065 = vadd.f32 %v1700, %v2064
        %v2066 = vpop.f32.mrb[0].mxu0
        %2067 = vmatprep.mubr.f32.mxu0 0.0
        %2068 = vmatmul.mubr.f32.gmra.mrb[0].mxu0 %v1768
        %v2069 = vpop.f32.mrb[0].mxu0
        %v2070 = vadd.f32 %v1700, %v2069
        %v2071 = vpop.f32.mrb[0].mxu0
        %2072 = vmatprep.mubr.f32.mxu0 0.0
        %2073 = vmatmul.mubr.f32.gmra.mrb[0].mxu0 %v1771
        %v2074 = vpop.f32.mrb[0].mxu0
        %v2075 = vadd.f32 %v1700, %v2074
        %v2076 = vpop.f32.mrb[0].mxu0
        %2077 = vmatprep.mubr.f32.mxu0 0.0
        %2078 = vmatmul.mubr.f32.gmra.mrb[0].mxu0 %v1774
        %v2079 = vpop.f32.mrb[0].mxu0
        %v2080 = vadd.f32 %v1700, %v2079
        %v2081 = vpop.f32.mrb[0].mxu0
        %2082 = vmatprep.mubr.f32.mxu0 0.0
        %2083 = vmatmul.mubr.f32.gmra.mrb[0].mxu0 %v1777
        %v2084 = vpop.f32.mrb[0].mxu0
        %v2085 = vadd.f32 %v1700, %v2084
        %v2086 = vpop.f32.mrb[0].mxu0
        %2087 = vmatprep.mubr.f32.mxu0 0.0
        %2088 = vmatmul.mubr.f32.gmra.mrb[0].mxu0 %v1780
        %v2089 = vpop.f32.mrb[0].mxu0
        %v2090 = vadd.f32 %v1700, %v2089
        %v2091 = vpop.f32.mrb[0].mxu0
        %2092 = vmatprep.mubr.f32.mxu0 0.0
        %2093 = vmatmul.mubr.f32.gmra.mrb[0].mxu0 %v1783
        %v2094 = vpop.f32.mrb[0].mxu0
        %v2095 = vadd.f32 %v1700, %v2094
        %v2096 = vpop.f32.mrb[0].mxu0
        %2097 = vmatprep.mubr.f32.mxu0 0.0
        %2098 = vmatmul.mubr.f32.gmra.mrb[0].mxu0 %v1786
        %v2099 = vpop.f32.mrb[0].mxu0
        %v2100 = vadd.f32 %v1700, %v2099
        %v2101 = vpop.f32.mrb[0].mxu0
        %2102 = vmatprep.mubr.f32.mxu0 0.0
        %2103 = vmatmul.mubr.f32.gmra.mrb[0].mxu0 %v1789
        %v2104 = vpop.f32.mrb[0].mxu0
        %v2105 = vadd.f32 %v1700, %v2104
        %v2106 = vpop.f32.mrb[0].mxu0
        %2107 = vmatprep.mubr.f32.mxu0 0.0
        %2108 = vmatmul.mubr.f32.gmra.mrb[0].mxu0 %v1792
        %v2109 = vpop.f32.mrb[0].mxu0
        %v2110 = vadd.f32 %v1700, %v2109
        %v2111 = vpop.f32.mrb[0].mxu0
        %2112 = vmatprep.mubr.f32.mxu0 0.0
        %2113 = vmatmul.mubr.f32.gmra.mrb[0].mxu0 %v1795
        %v2114 = vpop.f32.mrb[0].mxu0
        %v2115 = vadd.f32 %v1700, %v2114
        %v2116 = vpop.f32.mrb[0].mxu0
        %2117 = vmatprep.mubr.f32.mxu0 0.0
        %2118 = vmatmul.mubr.f32.gmra.mrb[0].mxu0 %v1798
        %v2119 = vpop.f32.mrb[0].mxu0
        %v2120 = vadd.f32 %v1700, %v2119
        %v2121 = vpop.f32.mrb[0].mxu0
        %2122 = vmatprep.mubr.f32.mxu0 0.0
        %2123 = vmatmul.mubr.f32.gmra.mrb[0].mxu0 %v1801
        %v2124 = vpop.f32.mrb[0].mxu0
        %v2125 = vadd.f32 %v1700, %v2124
        %v2126 = vpop.f32.mrb[0].mxu0
        %2127 = vmatprep.mubr.f32.mxu0 0.0
        %2128 = vmatmul.mubr.f32.gmra.mrb[0].mxu0 %v1804
        %v2129 = vpop.f32.mrb[0].mxu0
        %v2130 = vadd.f32 %v1700, %v2129
        %v2131 = vpop.f32.mrb[0].mxu0
        %2132 = vmatprep.mubr.f32.mxu0 0.0
        %2133 = vmatmul.mubr.f32.gmra.mrb[0].mxu0 %v1807
        %v2134 = vpop.f32.mrb[0].mxu0
        %v2135 = vadd.f32 %v1700, %v2134
        %v2136 = vpop.f32.mrb[0].mxu0
        %2137 = vmatprep.mubr.f32.mxu0 0.0
        %2138 = vmatmul.mubr.f32.gmra.mrb[0].mxu0 %v1810
        %v2139 = vpop.f32.mrb[0].mxu0
        %v2140 = vadd.f32 %v1700, %v2139
        %v2141 = vpop.f32.mrb[0].mxu0
        %2142 = vmatprep.mubr.f32.mxu0 0.0
        %2143 = vmatmul.mubr.f32.gmra.mrb[0].mxu0 %v1813
        %v2144 = vpop.f32.mrb[0].mxu0
        %v2145 = vadd.f32 %v1700, %v2144
        %v2146 = vpop.f32.mrb[0].mxu0
        %2147 = vmatprep.mubr.f32.mxu0 0.0
        %2148 = vmatmul.mubr.f32.gmra.mrb[0].mxu0 %v1816
        %v2149 = vpop.f32.mrb[0].mxu0
        %v2150 = vadd.f32 %v1700, %v2149
        %v2151 = vpop.f32.mrb[0].mxu0
        %2152 = vmatprep.mubr.f32.mxu0 0.0
        %2153 = vmatmul.mubr.f32.gmra.mrb[0].mxu0 %v1819
        %v2154 = vpop.f32.mrb[0].mxu0
        %v2155 = vadd.f32 %v1700, %v2154
        %v2156 = vpop.f32.mrb[0].mxu0
        %2157 = vmatprep.mubr.f32.mxu0 0.0
        %2158 = vmatmul.mubr.f32.gmra.mrb[0].mxu0 %v1822
        %v2159 = vpop.f32.mrb[0].mxu0
        %v2160 = vadd.f32 %v1700, %v2159
        %v2161 = vpop.f32.mrb[0].mxu0
        %2162 = vmatprep.mubr.f32.mxu0 0.0
        %2163 = vmatmul.mubr.f32.gmra.mrb[0].mxu0 %v1825
        %v2164 = vpop.f32.mrb[0].mxu0
        %v2165 = vadd.f32 %v1700, %v2164
        %v2166 = vpop.f32.mrb[0].mxu0
        %2167 = vmatprep.mubr.f32.mxu0 0.0
        %2168 = vmatmul.mubr.f32.gmra.mrb[0].mxu0 %v1828
        %v2169 = vpop.f32.mrb[0].mxu0
        %v2170 = vadd.f32 %v1700, %v2169
        %v2171 = vpop.f32.mrb[0].mxu0
        %2172 = vmatprep.mubr.f32.mxu0 0.0
        %2173 = vmatmul.mubr.f32.gmra.mrb[0].mxu0 %v1831
        %v2174 = vpop.f32.mrb[0].mxu0
        %v2175 = vadd.f32 %v1700, %v2174
        %v2176 = vpop.f32.mrb[0].mxu0
        %2177 = vmatprep.mubr.f32.mxu0 0.0
        %2178 = vmatmul.mubr.f32.gmra.mrb[0].mxu0 %v1834
        %v2179 = vpop.f32.mrb[0].mxu0
        %v2180 = vadd.f32 %v1700, %v2179
        %v2181 = vpop.f32.mrb[0].mxu0
        %2182 = vmatprep.mubr.f32.mxu0 0.0
        %2183 = vmatmul.mubr.f32.gmra.mrb[0].mxu0 %v1837
        %v2184 = vpop.f32.mrb[0].mxu0
        %v2185 = vadd.f32 %v1700, %v2184
        %v2186 = vpop.f32.mrb[0].mxu0
        %2187 = vmatprep.mubr.f32.mxu0 0.0
        %2188 = vmatmul.mubr.f32.gmra.mrb[0].mxu0 %v1840
        %v2189 = vpop.f32.mrb[0].mxu0
        %v2190 = vadd.f32 %v1700, %v2189
        %v2191 = vpop.f32.mrb[0].mxu0
        %2192 = vmatprep.mubr.f32.mxu0 0.0
        %2193 = vmatmul.mubr.f32.gmra.mrb[0].mxu0 %v1843
        %v2194 = vpop.f32.mrb[0].mxu0
        %v2195 = vadd.f32 %v1700, %v2194
        %v2196 = vpop.f32.mrb[0].mxu0
        %2197 = vmatprep.mubr.f32.mxu0 0.0
        %2198 = vmatmul.mubr.f32.gmra.mrb[0].mxu0 %v1846
        %v2199 = vpop.f32.mrb[0].mxu0
        %v2200 = vadd.f32 %v1700, %v2199
        %v2201 = vpop.f32.mrb[0].mxu0
        %2202 = vmatprep.mubr.f32.mxu0 0.0
        %2203 = vmatmul.mubr.f32.gmra.mrb[0].mxu0 %v1849
        %v2204 = vpop.f32.mrb[0].mxu0
        %v2205 = vadd.f32 %v1700, %v2204
        %v2206 = vpop.f32.mrb[0].mxu0
        %2207 = vmatprep.mubr.f32.mxu0 0.0
        %2208 = vmatmul.mubr.f32.gmra.mrb[0].mxu0 %v1852
        %v2209 = vpop.f32.mrb[0].mxu0
        %v2210 = vadd.f32 %v1700, %v2209
        %v2211 = vpop.f32.mrb[0].mxu0
        %2212 = vmatprep.mubr.f32.mxu0 0.0
        %2213 = vmatmul.mubr.f32.gmra.mrb[0].mxu0 %v1855
        %v2214 = vpop.f32.mrb[0].mxu0
        %v2215 = vadd.f32 %v1700, %v2214
        %v2216 = vpop.f32.mrb[0].mxu0
        %2217 = vmatprep.mubr.f32.mxu0 0.0
        %2218 = vmatmul.mubr.f32.gmra.mrb[0].mxu0 %v1858
        %v2219 = vpop.f32.mrb[0].mxu0
        %v2220 = vadd.f32 %v1700, %v2219
        %v2221 = vpop.f32.mrb[0].mxu0
        %2222 = vmatprep.mubr.f32.mxu0 0.0
        %2223 = vmatmul.mubr.f32.gmra.mrb[0].mxu0 %v1861
        %v2224 = vpop.f32.mrb[0].mxu0
        %v2225 = vadd.f32 %v1700, %v2224
        %v2226 = vpop.f32.mrb[0].mxu0
        %2227 = vmatprep.mubr.f32.mxu0 0.0
        %2228 = vmatmul.mubr.f32.gmra.mrb[0].mxu0 %v1864
        %v2229 = vpop.f32.mrb[0].mxu0
        %v2230 = vadd.f32 %v1700, %v2229
        %v2231 = vpop.f32.mrb[0].mxu0
        %2232 = vmatprep.mubr.f32.mxu0 0.0
        %2233 = vmatmul.mubr.f32.gmra.mrb[0].mxu0 %v1867
        %v2234 = vpop.f32.mrb[0].mxu0
        %v2235 = vadd.f32 %v1700, %v2234
        %v2236 = vpop.f32.mrb[0].mxu0
        %2237 = vmatprep.mubr.f32.mxu0 0.0
        %2238 = vmatmul.mubr.f32.gmra.mrb[0].mxu0 %v1870
        %v2239 = vpop.f32.mrb[0].mxu0
        %v2240 = vadd.f32 %v1700, %v2239
        %v2241 = vpop.f32.mrb[0].mxu0
        %2242 = vmatprep.mubr.f32.mxu0 0.0
        %2243 = vmatmul.mubr.f32.gmra.mrb[0].mxu0 %v1873
        %v2244 = vpop.f32.mrb[0].mxu0
        %v2245 = vadd.f32 %v1700, %v2244
        %v2246 = vpop.f32.mrb[0].mxu0
        %2247 = vmatprep.mubr.f32.mxu0 0.0
        %2248 = vmatmul.mubr.f32.gmra.mrb[0].mxu0 %v1876
        %v2249 = vpop.f32.mrb[0].mxu0
        %v2250 = vadd.f32 %v1700, %v2249
        %v2251 = vpop.f32.mrb[0].mxu0
        %2252 = vmatprep.mubr.f32.mxu0 0.0
        %2253 = vmatmul.mubr.f32.gmra.mrb[0].mxu0 %v1879
        %v2254 = vpop.f32.mrb[0].mxu0
        %v2255 = vadd.f32 %v1700, %v2254
        %v2256 = vpop.f32.mrb[0].mxu0
        %2257 = vmatprep.mubr.f32.mxu0 0.0
        %2258 = vmatmul.mubr.f32.gmra.mrb[0].mxu0 %v1882
        %v2259 = vpop.f32.mrb[0].mxu0
        %v2260 = vadd.f32 %v1700, %v2259
        %v2261 = vpop.f32.mrb[0].mxu0
        %2262 = vmatprep.mubr.f32.mxu0 0.0
        %2263 = vmatmul.mubr.f32.gmra.mrb[0].mxu0 %v1885
        %v2264 = vpop.f32.mrb[0].mxu0
        %v2265 = vadd.f32 %v1700, %v2264
        %v2266 = vpop.f32.mrb[0].mxu0
        %2267 = vmatprep.mubr.f32.mxu0 0.0
        %2268 = vmatmul.mubr.f32.gmra.mrb[0].mxu0 %v1888
        %v2269 = vpop.f32.mrb[0].mxu0
        %v2270 = vadd.f32 %v1700, %v2269
        %v2271 = vpop.f32.mrb[0].mxu0
        %2272 = vmatprep.mubr.f32.mxu0 0.0
        %2273 = vmatmul.mubr.f32.gmra.mrb[0].mxu0 %v1891
        %v2274 = vpop.f32.mrb[0].mxu0
        %v2275 = vadd.f32 %v1700, %v2274
        %v2276 = vpop.f32.mrb[0].mxu0
        %2277 = vdwg.mxu0
        %v2278 = vmax.f32 %v1960, 0.0
        %v2279 = vmax.f32 %v1965, 0.0
        %v2280 = vmax.f32 %v1970, 0.0
        %v2281 = vmax.f32 %v1975, 0.0
        %v2282 = vmax.f32 %v1980, 0.0
        %v2283 = vmax.f32 %v1985, 0.0
        %v2284 = vmax.f32 %v1990, 0.0
        %v2285 = vmax.f32 %v1995, 0.0
        %v2286 = vmax.f32 %v2000, 0.0
        %v2287 = vmax.f32 %v2005, 0.0
        %v2288 = vmax.f32 %v2010, 0.0
        %v2289 = vmax.f32 %v2015, 0.0
        %v2290 = vmax.f32 %v2020, 0.0
        %v2291 = vmax.f32 %v2025, 0.0
        %v2292 = vmax.f32 %v2030, 0.0
        %v2293 = vmax.f32 %v2035, 0.0
        %v2294 = vmax.f32 %v2040, 0.0
        %v2295 = vmax.f32 %v2045, 0.0
        %v2296 = vmax.f32 %v2050, 0.0
        %v2297 = vmax.f32 %v2055, 0.0
        %v2298 = vmax.f32 %v2060, 0.0
        %v2299 = vmax.f32 %v2065, 0.0
        %v2300 = vmax.f32 %v2070, 0.0
        %v2301 = vmax.f32 %v2075, 0.0
        %v2302 = vmax.f32 %v2080, 0.0
        %v2303 = vmax.f32 %v2085, 0.0
        %v2304 = vmax.f32 %v2090, 0.0
        %v2305 = vmax.f32 %v2095, 0.0
        %v2306 = vmax.f32 %v2100, 0.0
        %v2307 = vmax.f32 %v2105, 0.0
        %v2308 = vmax.f32 %v2110, 0.0
        %v2309 = vmax.f32 %v2115, 0.0
        %v2310 = vmax.f32 %v2120, 0.0
        %v2311 = vmax.f32 %v2125, 0.0
        %v2312 = vmax.f32 %v2130, 0.0
        %v2313 = vmax.f32 %v2135, 0.0
        %v2314 = vmax.f32 %v2140, 0.0
        %v2315 = vmax.f32 %v2145, 0.0
        %v2316 = vmax.f32 %v2150, 0.0
        %v2317 = vmax.f32 %v2155, 0.0
        %v2318 = vmax.f32 %v2160, 0.0
        %v2319 = vmax.f32 %v2165, 0.0
        %v2320 = vmax.f32 %v2170, 0.0
        %v2321 = vmax.f32 %v2175, 0.0
        %v2322 = vmax.f32 %v2180, 0.0
        %v2323 = vmax.f32 %v2185, 0.0
        %v2324 = vmax.f32 %v2190, 0.0
        %v2325 = vmax.f32 %v2195, 0.0
        %v2326 = vmax.f32 %v2200, 0.0
        %v2327 = vmax.f32 %v2205, 0.0
        %v2328 = vmax.f32 %v2210, 0.0
        %v2329 = vmax.f32 %v2215, 0.0
        %v2330 = vmax.f32 %v2220, 0.0
        %v2331 = vmax.f32 %v2225, 0.0
        %v2332 = vmax.f32 %v2230, 0.0
        %v2333 = vmax.f32 %v2235, 0.0
        %v2334 = vmax.f32 %v2240, 0.0
        %v2335 = vmax.f32 %v2245, 0.0
        %v2336 = vmax.f32 %v2250, 0.0
        %v2337 = vmax.f32 %v2255, 0.0
        %v2338 = vmax.f32 %v2260, 0.0
        %v2339 = vmax.f32 %v2265, 0.0
        %v2340 = vmax.f32 %v2270, 0.0
        %v2341 = vmax.f32 %v2275, 0.0
        %vm2342 = vcmask 261120
        %v2343 = vsel %vm2342, %v2278, -inf
        %v2344 = vrot.slane %v2343, 4
        %v2345 = vmax.f32 %v2343, %v2344
        %v2346 = vrot.slane %v2345, 2
        %v2347 = vmax.f32 %v2345, %v2346
        %v2348 = vrot.slane %v2347, 1
        %v2349 = vmax.f32 %v2347, %v2348
        %v2350 = vsel %vm2342, %v2279, -inf
        %v2351 = vrot.slane %v2350, 4
        %v2352 = vmax.f32 %v2350, %v2351
        %v2353 = vrot.slane %v2352, 2
        %v2354 = vmax.f32 %v2352, %v2353
        %v2355 = vrot.slane %v2354, 1
        %v2356 = vmax.f32 %v2354, %v2355
        %v2357 = vsel %vm2342, %v2280, -inf
        %v2358 = vrot.slane %v2357, 4
        %v2359 = vmax.f32 %v2357, %v2358
        %v2360 = vrot.slane %v2359, 2
        %v2361 = vmax.f32 %v2359, %v2360
        %v2362 = vrot.slane %v2361, 1
        %v2363 = vmax.f32 %v2361, %v2362
        %v2364 = vsel %vm2342, %v2281, -inf
        %v2365 = vrot.slane %v2364, 4
        %v2366 = vmax.f32 %v2364, %v2365
        %v2367 = vrot.slane %v2366, 2
        %v2368 = vmax.f32 %v2366, %v2367
        %v2369 = vrot.slane %v2368, 1
        %v2370 = vmax.f32 %v2368, %v2369
        %v2371 = vsel %vm2342, %v2282, -inf
        %v2372 = vrot.slane %v2371, 4
        %v2373 = vmax.f32 %v2371, %v2372
        %v2374 = vrot.slane %v2373, 2
        %v2375 = vmax.f32 %v2373, %v2374
        %v2376 = vrot.slane %v2375, 1
        %v2377 = vmax.f32 %v2375, %v2376
        %v2378 = vsel %vm2342, %v2283, -inf
        %v2379 = vrot.slane %v2378, 4
        %v2380 = vmax.f32 %v2378, %v2379
        %v2381 = vrot.slane %v2380, 2
        %v2382 = vmax.f32 %v2380, %v2381
        %v2383 = vrot.slane %v2382, 1
        %v2384 = vmax.f32 %v2382, %v2383
        %v2385 = vsel %vm2342, %v2284, -inf
        %v2386 = vrot.slane %v2385, 4
        %v2387 = vmax.f32 %v2385, %v2386
        %v2388 = vrot.slane %v2387, 2
        %v2389 = vmax.f32 %v2387, %v2388
        %v2390 = vrot.slane %v2389, 1
        %v2391 = vmax.f32 %v2389, %v2390
        %v2392 = vsel %vm2342, %v2285, -inf
        %v2393 = vrot.slane %v2392, 4
        %v2394 = vmax.f32 %v2392, %v2393
        %v2395 = vrot.slane %v2394, 2
        %v2396 = vmax.f32 %v2394, %v2395
        %v2397 = vrot.slane %v2396, 1
        %v2398 = vmax.f32 %v2396, %v2397
        %v2399 = vsel %vm2342, %v2286, -inf
        %v2400 = vrot.slane %v2399, 4
        %v2401 = vmax.f32 %v2399, %v2400
        %v2402 = vrot.slane %v2401, 2
        %v2403 = vmax.f32 %v2401, %v2402
        %v2404 = vrot.slane %v2403, 1
        %v2405 = vmax.f32 %v2403, %v2404
        %v2406 = vsel %vm2342, %v2287, -inf
        %v2407 = vrot.slane %v2406, 4
        %v2408 = vmax.f32 %v2406, %v2407
        %v2409 = vrot.slane %v2408, 2
        %v2410 = vmax.f32 %v2408, %v2409
        %v2411 = vrot.slane %v2410, 1
        %v2412 = vmax.f32 %v2410, %v2411
        %v2413 = vsel %vm2342, %v2288, -inf
        %v2414 = vrot.slane %v2413, 4
        %v2415 = vmax.f32 %v2413, %v2414
        %v2416 = vrot.slane %v2415, 2
        %v2417 = vmax.f32 %v2415, %v2416
        %v2418 = vrot.slane %v2417, 1
        %v2419 = vmax.f32 %v2417, %v2418
        %v2420 = vsel %vm2342, %v2289, -inf
        %v2421 = vrot.slane %v2420, 4
        %v2422 = vmax.f32 %v2420, %v2421
        %v2423 = vrot.slane %v2422, 2
        %v2424 = vmax.f32 %v2422, %v2423
        %v2425 = vrot.slane %v2424, 1
        %v2426 = vmax.f32 %v2424, %v2425
        %v2427 = vsel %vm2342, %v2290, -inf
        %v2428 = vrot.slane %v2427, 4
        %v2429 = vmax.f32 %v2427, %v2428
        %v2430 = vrot.slane %v2429, 2
        %v2431 = vmax.f32 %v2429, %v2430
        %v2432 = vrot.slane %v2431, 1
        %v2433 = vmax.f32 %v2431, %v2432
        %v2434 = vsel %vm2342, %v2291, -inf
        %v2435 = vrot.slane %v2434, 4
        %v2436 = vmax.f32 %v2434, %v2435
        %v2437 = vrot.slane %v2436, 2
        %v2438 = vmax.f32 %v2436, %v2437
        %v2439 = vrot.slane %v2438, 1
        %v2440 = vmax.f32 %v2438, %v2439
        %v2441 = vsel %vm2342, %v2292, -inf
        %v2442 = vrot.slane %v2441, 4
        %v2443 = vmax.f32 %v2441, %v2442
        %v2444 = vrot.slane %v2443, 2
        %v2445 = vmax.f32 %v2443, %v2444
        %v2446 = vrot.slane %v2445, 1
        %v2447 = vmax.f32 %v2445, %v2446
        %v2448 = vsel %vm2342, %v2293, -inf
        %v2449 = vrot.slane %v2448, 4
        %v2450 = vmax.f32 %v2448, %v2449
        %v2451 = vrot.slane %v2450, 2
        %v2452 = vmax.f32 %v2450, %v2451
        %v2453 = vrot.slane %v2452, 1
        %v2454 = vmax.f32 %v2452, %v2453
        %v2455 = vsel %vm2342, %v2294, -inf
        %v2456 = vrot.slane %v2455, 4
        %v2457 = vmax.f32 %v2455, %v2456
        %v2458 = vrot.slane %v2457, 2
        %v2459 = vmax.f32 %v2457, %v2458
        %v2460 = vrot.slane %v2459, 1
        %v2461 = vmax.f32 %v2459, %v2460
        %v2462 = vsel %vm2342, %v2295, -inf
        %v2463 = vrot.slane %v2462, 4
        %v2464 = vmax.f32 %v2462, %v2463
        %v2465 = vrot.slane %v2464, 2
        %v2466 = vmax.f32 %v2464, %v2465
        %v2467 = vrot.slane %v2466, 1
        %v2468 = vmax.f32 %v2466, %v2467
        %v2469 = vsel %vm2342, %v2296, -inf
        %v2470 = vrot.slane %v2469, 4
        %v2471 = vmax.f32 %v2469, %v2470
        %v2472 = vrot.slane %v2471, 2
        %v2473 = vmax.f32 %v2471, %v2472
        %v2474 = vrot.slane %v2473, 1
        %v2475 = vmax.f32 %v2473, %v2474
        %v2476 = vsel %vm2342, %v2297, -inf
        %v2477 = vrot.slane %v2476, 4
        %v2478 = vmax.f32 %v2476, %v2477
        %v2479 = vrot.slane %v2478, 2
        %v2480 = vmax.f32 %v2478, %v2479
        %v2481 = vrot.slane %v2480, 1
        %v2482 = vmax.f32 %v2480, %v2481
        %v2483 = vsel %vm2342, %v2298, -inf
        %v2484 = vrot.slane %v2483, 4
        %v2485 = vmax.f32 %v2483, %v2484
        %v2486 = vrot.slane %v2485, 2
        %v2487 = vmax.f32 %v2485, %v2486
        %v2488 = vrot.slane %v2487, 1
        %v2489 = vmax.f32 %v2487, %v2488
        %v2490 = vsel %vm2342, %v2299, -inf
        %v2491 = vrot.slane %v2490, 4
        %v2492 = vmax.f32 %v2490, %v2491
        %v2493 = vrot.slane %v2492, 2
        %v2494 = vmax.f32 %v2492, %v2493
        %v2495 = vrot.slane %v2494, 1
        %v2496 = vmax.f32 %v2494, %v2495
        %v2497 = vsel %vm2342, %v2300, -inf
        %v2498 = vrot.slane %v2497, 4
        %v2499 = vmax.f32 %v2497, %v2498
        %v2500 = vrot.slane %v2499, 2
        %v2501 = vmax.f32 %v2499, %v2500
        %v2502 = vrot.slane %v2501, 1
        %v2503 = vmax.f32 %v2501, %v2502
        %v2504 = vsel %vm2342, %v2301, -inf
        %v2505 = vrot.slane %v2504, 4
        %v2506 = vmax.f32 %v2504, %v2505
        %v2507 = vrot.slane %v2506, 2
        %v2508 = vmax.f32 %v2506, %v2507
        %v2509 = vrot.slane %v2508, 1
        %v2510 = vmax.f32 %v2508, %v2509
        %v2511 = vsel %vm2342, %v2302, -inf
        %v2512 = vrot.slane %v2511, 4
        %v2513 = vmax.f32 %v2511, %v2512
        %v2514 = vrot.slane %v2513, 2
        %v2515 = vmax.f32 %v2513, %v2514
        %v2516 = vrot.slane %v2515, 1
        %v2517 = vmax.f32 %v2515, %v2516
        %v2518 = vsel %vm2342, %v2303, -inf
        %v2519 = vrot.slane %v2518, 4
        %v2520 = vmax.f32 %v2518, %v2519
        %v2521 = vrot.slane %v2520, 2
        %v2522 = vmax.f32 %v2520, %v2521
        %v2523 = vrot.slane %v2522, 1
        %v2524 = vmax.f32 %v2522, %v2523
        %v2525 = vsel %vm2342, %v2304, -inf
        %v2526 = vrot.slane %v2525, 4
        %v2527 = vmax.f32 %v2525, %v2526
        %v2528 = vrot.slane %v2527, 2
        %v2529 = vmax.f32 %v2527, %v2528
        %v2530 = vrot.slane %v2529, 1
        %v2531 = vmax.f32 %v2529, %v2530
        %v2532 = vsel %vm2342, %v2305, -inf
        %v2533 = vrot.slane %v2532, 4
        %v2534 = vmax.f32 %v2532, %v2533
        %v2535 = vrot.slane %v2534, 2
        %v2536 = vmax.f32 %v2534, %v2535
        %v2537 = vrot.slane %v2536, 1
        %v2538 = vmax.f32 %v2536, %v2537
        %v2539 = vsel %vm2342, %v2306, -inf
        %v2540 = vrot.slane %v2539, 4
        %v2541 = vmax.f32 %v2539, %v2540
        %v2542 = vrot.slane %v2541, 2
        %v2543 = vmax.f32 %v2541, %v2542
        %v2544 = vrot.slane %v2543, 1
        %v2545 = vmax.f32 %v2543, %v2544
        %v2546 = vsel %vm2342, %v2307, -inf
        %v2547 = vrot.slane %v2546, 4
        %v2548 = vmax.f32 %v2546, %v2547
        %v2549 = vrot.slane %v2548, 2
        %v2550 = vmax.f32 %v2548, %v2549
        %v2551 = vrot.slane %v2550, 1
        %v2552 = vmax.f32 %v2550, %v2551
        %v2553 = vsel %vm2342, %v2308, -inf
        %v2554 = vrot.slane %v2553, 4
        %v2555 = vmax.f32 %v2553, %v2554
        %v2556 = vrot.slane %v2555, 2
        %v2557 = vmax.f32 %v2555, %v2556
        %v2558 = vrot.slane %v2557, 1
        %v2559 = vmax.f32 %v2557, %v2558
        %v2560 = vsel %vm2342, %v2309, -inf
        %v2561 = vrot.slane %v2560, 4
        %v2562 = vmax.f32 %v2560, %v2561
        %v2563 = vrot.slane %v2562, 2
        %v2564 = vmax.f32 %v2562, %v2563
        %v2565 = vrot.slane %v2564, 1
        %v2566 = vmax.f32 %v2564, %v2565
        %v2567 = vsel %vm2342, %v2310, -inf
        %v2568 = vrot.slane %v2567, 4
        %v2569 = vmax.f32 %v2567, %v2568
        %v2570 = vrot.slane %v2569, 2
        %v2571 = vmax.f32 %v2569, %v2570
        %v2572 = vrot.slane %v2571, 1
        %v2573 = vmax.f32 %v2571, %v2572
        %v2574 = vsel %vm2342, %v2311, -inf
        %v2575 = vrot.slane %v2574, 4
        %v2576 = vmax.f32 %v2574, %v2575
        %v2577 = vrot.slane %v2576, 2
        %v2578 = vmax.f32 %v2576, %v2577
        %v2579 = vrot.slane %v2578, 1
        %v2580 = vmax.f32 %v2578, %v2579
        %v2581 = vsel %vm2342, %v2312, -inf
        %v2582 = vrot.slane %v2581, 4
        %v2583 = vmax.f32 %v2581, %v2582
        %v2584 = vrot.slane %v2583, 2
        %v2585 = vmax.f32 %v2583, %v2584
        %v2586 = vrot.slane %v2585, 1
        %v2587 = vmax.f32 %v2585, %v2586
        %v2588 = vsel %vm2342, %v2313, -inf
        %v2589 = vrot.slane %v2588, 4
        %v2590 = vmax.f32 %v2588, %v2589
        %v2591 = vrot.slane %v2590, 2
        %v2592 = vmax.f32 %v2590, %v2591
        %v2593 = vrot.slane %v2592, 1
        %v2594 = vmax.f32 %v2592, %v2593
        %v2595 = vsel %vm2342, %v2314, -inf
        %v2596 = vrot.slane %v2595, 4
        %v2597 = vmax.f32 %v2595, %v2596
        %v2598 = vrot.slane %v2597, 2
        %v2599 = vmax.f32 %v2597, %v2598
        %v2600 = vrot.slane %v2599, 1
        %v2601 = vmax.f32 %v2599, %v2600
        %v2602 = vsel %vm2342, %v2315, -inf
        %v2603 = vrot.slane %v2602, 4
        %v2604 = vmax.f32 %v2602, %v2603
        %v2605 = vrot.slane %v2604, 2
        %v2606 = vmax.f32 %v2604, %v2605
        %v2607 = vrot.slane %v2606, 1
        %v2608 = vmax.f32 %v2606, %v2607
        %v2609 = vsel %vm2342, %v2316, -inf
        %v2610 = vrot.slane %v2609, 4
        %v2611 = vmax.f32 %v2609, %v2610
        %v2612 = vrot.slane %v2611, 2
        %v2613 = vmax.f32 %v2611, %v2612
        %v2614 = vrot.slane %v2613, 1
        %v2615 = vmax.f32 %v2613, %v2614
        %v2616 = vsel %vm2342, %v2317, -inf
        %v2617 = vrot.slane %v2616, 4
        %v2618 = vmax.f32 %v2616, %v2617
        %v2619 = vrot.slane %v2618, 2
        %v2620 = vmax.f32 %v2618, %v2619
        %v2621 = vrot.slane %v2620, 1
        %v2622 = vmax.f32 %v2620, %v2621
        %v2623 = vsel %vm2342, %v2318, -inf
        %v2624 = vrot.slane %v2623, 4
        %v2625 = vmax.f32 %v2623, %v2624
        %v2626 = vrot.slane %v2625, 2
        %v2627 = vmax.f32 %v2625, %v2626
        %v2628 = vrot.slane %v2627, 1
        %v2629 = vmax.f32 %v2627, %v2628
        %v2630 = vsel %vm2342, %v2319, -inf
        %v2631 = vrot.slane %v2630, 4
        %v2632 = vmax.f32 %v2630, %v2631
        %v2633 = vrot.slane %v2632, 2
        %v2634 = vmax.f32 %v2632, %v2633
        %v2635 = vrot.slane %v2634, 1
        %v2636 = vmax.f32 %v2634, %v2635
        %v2637 = vsel %vm2342, %v2320, -inf
        %v2638 = vrot.slane %v2637, 4
        %v2639 = vmax.f32 %v2637, %v2638
        %v2640 = vrot.slane %v2639, 2
        %v2641 = vmax.f32 %v2639, %v2640
        %v2642 = vrot.slane %v2641, 1
        %v2643 = vmax.f32 %v2641, %v2642
        %v2644 = vsel %vm2342, %v2321, -inf
        %v2645 = vrot.slane %v2644, 4
        %v2646 = vmax.f32 %v2644, %v2645
        %v2647 = vrot.slane %v2646, 2
        %v2648 = vmax.f32 %v2646, %v2647
        %v2649 = vrot.slane %v2648, 1
        %v2650 = vmax.f32 %v2648, %v2649
        %v2651 = vsel %vm2342, %v2322, -inf
        %v2652 = vrot.slane %v2651, 4
        %v2653 = vmax.f32 %v2651, %v2652
        %v2654 = vrot.slane %v2653, 2
        %v2655 = vmax.f32 %v2653, %v2654
        %v2656 = vrot.slane %v2655, 1
        %v2657 = vmax.f32 %v2655, %v2656
        %v2658 = vsel %vm2342, %v2323, -inf
        %v2659 = vrot.slane %v2658, 4
        %v2660 = vmax.f32 %v2658, %v2659
        %v2661 = vrot.slane %v2660, 2
        %v2662 = vmax.f32 %v2660, %v2661
        %v2663 = vrot.slane %v2662, 1
        %v2664 = vmax.f32 %v2662, %v2663
        %v2665 = vsel %vm2342, %v2324, -inf
        %v2666 = vrot.slane %v2665, 4
        %v2667 = vmax.f32 %v2665, %v2666
        %v2668 = vrot.slane %v2667, 2
        %v2669 = vmax.f32 %v2667, %v2668
        %v2670 = vrot.slane %v2669, 1
        %v2671 = vmax.f32 %v2669, %v2670
        %v2672 = vsel %vm2342, %v2325, -inf
        %v2673 = vrot.slane %v2672, 4
        %v2674 = vmax.f32 %v2672, %v2673
        %v2675 = vrot.slane %v2674, 2
        %v2676 = vmax.f32 %v2674, %v2675
        %v2677 = vrot.slane %v2676, 1
        %v2678 = vmax.f32 %v2676, %v2677
        %v2679 = vsel %vm2342, %v2326, -inf
        %v2680 = vrot.slane %v2679, 4
        %v2681 = vmax.f32 %v2679, %v2680
        %v2682 = vrot.slane %v2681, 2
        %v2683 = vmax.f32 %v2681, %v2682
        %v2684 = vrot.slane %v2683, 1
        %v2685 = vmax.f32 %v2683, %v2684
        %v2686 = vsel %vm2342, %v2327, -inf
        %v2687 = vrot.slane %v2686, 4
        %v2688 = vmax.f32 %v2686, %v2687
        %v2689 = vrot.slane %v2688, 2
        %v2690 = vmax.f32 %v2688, %v2689
        %v2691 = vrot.slane %v2690, 1
        %v2692 = vmax.f32 %v2690, %v2691
        %v2693 = vsel %vm2342, %v2328, -inf
        %v2694 = vrot.slane %v2693, 4
        %v2695 = vmax.f32 %v2693, %v2694
        %v2696 = vrot.slane %v2695, 2
        %v2697 = vmax.f32 %v2695, %v2696
        %v2698 = vrot.slane %v2697, 1
        %v2699 = vmax.f32 %v2697, %v2698
        %v2700 = vsel %vm2342, %v2329, -inf
        %v2701 = vrot.slane %v2700, 4
        %v2702 = vmax.f32 %v2700, %v2701
        %v2703 = vrot.slane %v2702, 2
        %v2704 = vmax.f32 %v2702, %v2703
        %v2705 = vrot.slane %v2704, 1
        %v2706 = vmax.f32 %v2704, %v2705
        %v2707 = vsel %vm2342, %v2330, -inf
        %v2708 = vrot.slane %v2707, 4
        %v2709 = vmax.f32 %v2707, %v2708
        %v2710 = vrot.slane %v2709, 2
        %v2711 = vmax.f32 %v2709, %v2710
        %v2712 = vrot.slane %v2711, 1
        %v2713 = vmax.f32 %v2711, %v2712
        %v2714 = vsel %vm2342, %v2331, -inf
        %v2715 = vrot.slane %v2714, 4
        %v2716 = vmax.f32 %v2714, %v2715
        %v2717 = vrot.slane %v2716, 2
        %v2718 = vmax.f32 %v2716, %v2717
        %v2719 = vrot.slane %v2718, 1
        %v2720 = vmax.f32 %v2718, %v2719
        %v2721 = vsel %vm2342, %v2332, -inf
        %v2722 = vrot.slane %v2721, 4
        %v2723 = vmax.f32 %v2721, %v2722
        %v2724 = vrot.slane %v2723, 2
        %v2725 = vmax.f32 %v2723, %v2724
        %v2726 = vrot.slane %v2725, 1
        %v2727 = vmax.f32 %v2725, %v2726
        %v2728 = vsel %vm2342, %v2333, -inf
        %v2729 = vrot.slane %v2728, 4
        %v2730 = vmax.f32 %v2728, %v2729
        %v2731 = vrot.slane %v2730, 2
        %v2732 = vmax.f32 %v2730, %v2731
        %v2733 = vrot.slane %v2732, 1
        %v2734 = vmax.f32 %v2732, %v2733
        %v2735 = vsel %vm2342, %v2334, -inf
        %v2736 = vrot.slane %v2735, 4
        %v2737 = vmax.f32 %v2735, %v2736
        %v2738 = vrot.slane %v2737, 2
        %v2739 = vmax.f32 %v2737, %v2738
        %v2740 = vrot.slane %v2739, 1
        %v2741 = vmax.f32 %v2739, %v2740
        %v2742 = vsel %vm2342, %v2335, -inf
        %v2743 = vrot.slane %v2742, 4
        %v2744 = vmax.f32 %v2742, %v2743
        %v2745 = vrot.slane %v2744, 2
        %v2746 = vmax.f32 %v2744, %v2745
        %v2747 = vrot.slane %v2746, 1
        %v2748 = vmax.f32 %v2746, %v2747
        %v2749 = vsel %vm2342, %v2336, -inf
        %v2750 = vrot.slane %v2749, 4
        %v2751 = vmax.f32 %v2749, %v2750
        %v2752 = vrot.slane %v2751, 2
        %v2753 = vmax.f32 %v2751, %v2752
        %v2754 = vrot.slane %v2753, 1
        %v2755 = vmax.f32 %v2753, %v2754
        %v2756 = vsel %vm2342, %v2337, -inf
        %v2757 = vrot.slane %v2756, 4
        %v2758 = vmax.f32 %v2756, %v2757
        %v2759 = vrot.slane %v2758, 2
        %v2760 = vmax.f32 %v2758, %v2759
        %v2761 = vrot.slane %v2760, 1
        %v2762 = vmax.f32 %v2760, %v2761
        %v2763 = vsel %vm2342, %v2338, -inf
        %v2764 = vrot.slane %v2763, 4
        %v2765 = vmax.f32 %v2763, %v2764
        %v2766 = vrot.slane %v2765, 2
        %v2767 = vmax.f32 %v2765, %v2766
        %v2768 = vrot.slane %v2767, 1
        %v2769 = vmax.f32 %v2767, %v2768
        %v2770 = vsel %vm2342, %v2339, -inf
        %v2771 = vrot.slane %v2770, 4
        %v2772 = vmax.f32 %v2770, %v2771
        %v2773 = vrot.slane %v2772, 2
        %v2774 = vmax.f32 %v2772, %v2773
        %v2775 = vrot.slane %v2774, 1
        %v2776 = vmax.f32 %v2774, %v2775
        %v2777 = vsel %vm2342, %v2340, -inf
        %v2778 = vrot.slane %v2777, 4
        %v2779 = vmax.f32 %v2777, %v2778
        %v2780 = vrot.slane %v2779, 2
        %v2781 = vmax.f32 %v2779, %v2780
        %v2782 = vrot.slane %v2781, 1
        %v2783 = vmax.f32 %v2781, %v2782
        %v2784 = vsel %vm2342, %v2341, -inf
        %v2785 = vrot.slane %v2784, 4
        %v2786 = vmax.f32 %v2784, %v2785
        %v2787 = vrot.slane %v2786, 2
        %v2788 = vmax.f32 %v2786, %v2787
        %v2789 = vrot.slane %v2788, 1
        %v2790 = vmax.f32 %v2788, %v2789
        %vm2855 = vcmask 1041409
        %v2856 = vsel %vm2855, %v2356, %v2349
        %vm2857 = vcmask 1042434
        %v2858 = vsel %vm2857, %v2363, %v2856
        %vm2859 = vcmask 1043459
        %v2860 = vsel %vm2859, %v2370, %v2858
        %vm2861 = vcmask 1044484
        %v2862 = vsel %vm2861, %v2377, %v2860
        %vm2863 = vcmask 1045509
        %v2864 = vsel %vm2863, %v2384, %v2862
        %vm2865 = vcmask 1046534
        %v2866 = vsel %vm2865, %v2391, %v2864
        %vm2867 = vcmask 1047559
        %v2868 = vsel %vm2867, %v2398, %v2866
        %v2869 = vsel %vm2855, %v2412, %v2405
        %v2870 = vsel %vm2857, %v2419, %v2869
        %v2871 = vsel %vm2859, %v2426, %v2870
        %v2872 = vsel %vm2861, %v2433, %v2871
        %v2873 = vsel %vm2863, %v2440, %v2872
        %v2874 = vsel %vm2865, %v2447, %v2873
        %v2875 = vsel %vm2867, %v2454, %v2874
        %v2876 = vsel %vm2855, %v2468, %v2461
        %v2877 = vsel %vm2857, %v2475, %v2876
        %v2878 = vsel %vm2859, %v2482, %v2877
        %v2879 = vsel %vm2861, %v2489, %v2878
        %v2880 = vsel %vm2863, %v2496, %v2879
        %v2881 = vsel %vm2865, %v2503, %v2880
        %v2882 = vsel %vm2867, %v2510, %v2881
        %v2883 = vsel %vm2855, %v2524, %v2517
        %v2884 = vsel %vm2857, %v2531, %v2883
        %v2885 = vsel %vm2859, %v2538, %v2884
        %v2886 = vsel %vm2861, %v2545, %v2885
        %v2887 = vsel %vm2863, %v2552, %v2886
        %v2888 = vsel %vm2865, %v2559, %v2887
        %v2889 = vsel %vm2867, %v2566, %v2888
        %v2890 = vsel %vm2855, %v2580, %v2573
        %v2891 = vsel %vm2857, %v2587, %v2890
        %v2892 = vsel %vm2859, %v2594, %v2891
        %v2893 = vsel %vm2861, %v2601, %v2892
        %v2894 = vsel %vm2863, %v2608, %v2893
        %v2895 = vsel %vm2865, %v2615, %v2894
        %v2896 = vsel %vm2867, %v2622, %v2895
        %v2897 = vsel %vm2855, %v2636, %v2629
        %v2898 = vsel %vm2857, %v2643, %v2897
        %v2899 = vsel %vm2859, %v2650, %v2898
        %v2900 = vsel %vm2861, %v2657, %v2899
        %v2901 = vsel %vm2863, %v2664, %v2900
        %v2902 = vsel %vm2865, %v2671, %v2901
        %v2903 = vsel %vm2867, %v2678, %v2902
        %v2904 = vsel %vm2855, %v2692, %v2685
        %v2905 = vsel %vm2857, %v2699, %v2904
        %v2906 = vsel %vm2859, %v2706, %v2905
        %v2907 = vsel %vm2861, %v2713, %v2906
        %v2908 = vsel %vm2863, %v2720, %v2907
        %v2909 = vsel %vm2865, %v2727, %v2908
        %v2910 = vsel %vm2867, %v2734, %v2909
        %v2911 = vsel %vm2855, %v2748, %v2741
        %v2912 = vsel %vm2857, %v2755, %v2911
        %v2913 = vsel %vm2859, %v2762, %v2912
        %v2914 = vsel %vm2861, %v2769, %v2913
        %v2915 = vsel %vm2863, %v2776, %v2914
        %v2916 = vsel %vm2865, %v2783, %v2915
        %v2917 = vsel %vm2867, %v2790, %v2916
        %vm2926 = vcmask 523264
        %v2928 = vsel %vm2926, %v169, 0
        %v2931 = vsel %vm2926, %v170, 0
        %v2934 = vsel %vm2926, %v171, 0
        %v2937 = vsel %vm2926, %v172, 0
        %v2940 = vsel %vm2926, %v173, 0
        %v2943 = vsel %vm2926, %v174, 0
        %v2946 = vsel %vm2926, %v175, 0
        %v2949 = vsel %vm2926, %v176, 0
        %v2952 = vsel %vm2926, %v177, 0
        %v2955 = vsel %vm2926, %v178, 0
        %v2958 = vsel %vm2926, %v179, 0
        %v2961 = vsel %vm2926, %v180, 0
        %v2964 = vsel %vm2926, %v181, 0
        %v2967 = vsel %vm2926, %v182, 0
        %v2970 = vsel %vm2926, %v183, 0
        %v2973 = vsel %vm2926, %v184, 0
        %v2976 = vsel %vm2926, %v185, 0
        %v2979 = vsel %vm2926, %v186, 0
        %v2982 = vsel %vm2926, %v187, 0
        %v2985 = vsel %vm2926, %v188, 0
        %v2988 = vsel %vm2926, %v189, 0
        %v2991 = vsel %vm2926, %v190, 0
        %v2994 = vsel %vm2926, %v191, 0
        %v2997 = vsel %vm2926, %v192, 0
        %v3000 = vsel %vm2926, %v193, 0
        %v3003 = vsel %vm2926, %v194, 0
        %v3006 = vsel %vm2926, %v195, 0
        %v3009 = vsel %vm2926, %v196, 0
        %v3012 = vsel %vm2926, %v197, 0
        %v3015 = vsel %vm2926, %v198, 0
        %v3018 = vsel %vm2926, %v199, 0
        %v3021 = vsel %vm2926, %v200, 0
        %3023 = vmatprep.subr.mxu0 0.0
        %3024 = vmatpush1.msra.mxu0 %v2868
        %3025 = vmatprep.subr.mxu0 0.0
        %3026 = vmatpush1.msra.mxu0 %v2875
        %3027 = vmatprep.subr.mxu0 0.0
        %3028 = vmatpush1.msra.mxu0 %v2882
        %3029 = vmatprep.subr.mxu0 0.0
        %3030 = vmatpush1.msra.mxu0 %v2889
        %3031 = vmatprep.subr.mxu0 0.0
        %3032 = vmatpush1.msra.mxu0 %v2896
        %3033 = vmatprep.subr.mxu0 0.0
        %3034 = vmatpush1.msra.mxu0 %v2903
        %3035 = vmatprep.subr.mxu0 0.0
        %3036 = vmatpush1.msra.mxu0 %v2910
        %3037 = vmatprep.subr.mxu0 0.0
        %3038 = vmatpush1.msra.mxu0 %v2917
        %3039 = vmatprep.subr.mxu0 0.0
        %3040 = vmatpush1.msra.mxu0 0.0
        %3041 = vmatprep.subr.mxu0 0.0
        %3042 = vmatpush1.msra.mxu0 0.0
        %3043 = vmatprep.subr.mxu0 0.0
        %3044 = vmatpush1.msra.mxu0 0.0
        %3045 = vmatprep.subr.mxu0 0.0
        %3046 = vmatpush1.msra.mxu0 0.0
        %3047 = vmatprep.subr.mxu0 0.0
        %3048 = vmatpush1.msra.mxu0 0.0
        %3049 = vmatprep.subr.mxu0 0.0
        %3050 = vmatpush1.msra.mxu0 0.0
        %3051 = vmatprep.subr.mxu0 0.0
        %3052 = vmatpush1.msra.mxu0 0.0
        %3053 = vmatprep.subr.mxu0 0.0
        %3054 = vmatpush1.msra.mxu0 0.0
        %3055 = vmatprep.subr.mxu0 0.0
        %3056 = vmatpush1.msra.mxu0 0.0
        %3057 = vmatprep.subr.mxu0 0.0
        %3058 = vmatpush1.msra.mxu0 0.0
        %3059 = vmatprep.subr.mxu0 0.0
        %3060 = vmatpush1.msra.mxu0 0.0
        %3061 = vmatprep.subr.mxu0 0.0
        %3062 = vmatpush1.msra.mxu0 0.0
        %3063 = vmatprep.subr.mxu0 0.0
        %3064 = vmatpush1.msra.mxu0 0.0
        %3065 = vmatprep.subr.mxu0 0.0
        %3066 = vmatpush1.msra.mxu0 0.0
        %3067 = vmatprep.subr.mxu0 0.0
        %3068 = vmatpush1.msra.mxu0 0.0
        %3069 = vmatprep.subr.mxu0 0.0
        %3070 = vmatpush1.msra.mxu0 0.0
        %3071 = vmatprep.subr.mxu0 0.0
        %3072 = vmatpush1.msra.mxu0 0.0
        %3073 = vmatprep.subr.mxu0 0.0
        %3074 = vmatpush1.msra.mxu0 0.0
        %3075 = vmatprep.subr.mxu0 0.0
        %3076 = vmatpush1.msra.mxu0 0.0
        %3077 = vmatprep.subr.mxu0 0.0
        %3078 = vmatpush1.msra.mxu0 0.0
        %3079 = vmatprep.subr.mxu0 0.0
        %3080 = vmatpush1.msra.mxu0 0.0
        %3081 = vmatprep.subr.mxu0 0.0
        %3082 = vmatpush1.msra.mxu0 0.0
        %3083 = vmatprep.subr.mxu0 0.0
        %3084 = vmatpush1.msra.mxu0 0.0
        %3085 = vmatprep.subr.mxu0 0.0
        %3086 = vmatpush1.msra.mxu0 0.0
        %3087 = vmatprep.mubr.f32.mxu0 0.0
        %3088 = vmatmul.mubr.f32.gmra.mrb[0].mxu0 %v2928
        %v3089 = vpop.f32.mrb[0].mxu0
        %v3090 = vadd.f32 0.0, %v3089
        %v3091 = vpop.f32.mrb[0].mxu0
        %3092 = vmatprep.mubr.f32.mxu0 0.0
        %3093 = vmatmul.mubr.f32.gmra.mrb[0].mxu0 %v2931
        %v3094 = vpop.f32.mrb[0].mxu0
        %v3095 = vadd.f32 0.0, %v3094
        %v3096 = vpop.f32.mrb[0].mxu0
        %3097 = vmatprep.mubr.f32.mxu0 0.0
        %3098 = vmatmul.mubr.f32.gmra.mrb[0].mxu0 %v2934
        %v3099 = vpop.f32.mrb[0].mxu0
        %v3100 = vadd.f32 0.0, %v3099
        %v3101 = vpop.f32.mrb[0].mxu0
        %3102 = vmatprep.mubr.f32.mxu0 0.0
        %3103 = vmatmul.mubr.f32.gmra.mrb[0].mxu0 %v2937
        %v3104 = vpop.f32.mrb[0].mxu0
        %v3105 = vadd.f32 0.0, %v3104
        %v3106 = vpop.f32.mrb[0].mxu0
        %3107 = vmatprep.mubr.f32.mxu0 0.0
        %3108 = vmatmul.mubr.f32.gmra.mrb[0].mxu0 %v2940
        %v3109 = vpop.f32.mrb[0].mxu0
        %v3110 = vadd.f32 0.0, %v3109
        %v3111 = vpop.f32.mrb[0].mxu0
        %3112 = vmatprep.mubr.f32.mxu0 0.0
        %3113 = vmatmul.mubr.f32.gmra.mrb[0].mxu0 %v2943
        %v3114 = vpop.f32.mrb[0].mxu0
        %v3115 = vadd.f32 0.0, %v3114
        %v3116 = vpop.f32.mrb[0].mxu0
        %3117 = vmatprep.mubr.f32.mxu0 0.0
        %3118 = vmatmul.mubr.f32.gmra.mrb[0].mxu0 %v2946
        %v3119 = vpop.f32.mrb[0].mxu0
        %v3120 = vadd.f32 0.0, %v3119
        %v3121 = vpop.f32.mrb[0].mxu0
        %3122 = vmatprep.mubr.f32.mxu0 0.0
        %3123 = vmatmul.mubr.f32.gmra.mrb[0].mxu0 %v2949
        %v3124 = vpop.f32.mrb[0].mxu0
        %v3125 = vadd.f32 0.0, %v3124
        %v3126 = vpop.f32.mrb[0].mxu0
        %3127 = vmatprep.mubr.f32.mxu0 0.0
        %3128 = vmatmul.mubr.f32.gmra.mrb[0].mxu0 %v2952
        %v3129 = vpop.f32.mrb[0].mxu0
        %v3130 = vadd.f32 0.0, %v3129
        %v3131 = vpop.f32.mrb[0].mxu0
        %3132 = vmatprep.mubr.f32.mxu0 0.0
        %3133 = vmatmul.mubr.f32.gmra.mrb[0].mxu0 %v2955
        %v3134 = vpop.f32.mrb[0].mxu0
        %v3135 = vadd.f32 0.0, %v3134
        %v3136 = vpop.f32.mrb[0].mxu0
        %3137 = vmatprep.mubr.f32.mxu0 0.0
        %3138 = vmatmul.mubr.f32.gmra.mrb[0].mxu0 %v2958
        %v3139 = vpop.f32.mrb[0].mxu0
        %v3140 = vadd.f32 0.0, %v3139
        %v3141 = vpop.f32.mrb[0].mxu0
        %3142 = vmatprep.mubr.f32.mxu0 0.0
        %3143 = vmatmul.mubr.f32.gmra.mrb[0].mxu0 %v2961
        %v3144 = vpop.f32.mrb[0].mxu0
        %v3145 = vadd.f32 0.0, %v3144
        %v3146 = vpop.f32.mrb[0].mxu0
        %3147 = vmatprep.mubr.f32.mxu0 0.0
        %3148 = vmatmul.mubr.f32.gmra.mrb[0].mxu0 %v2964
        %v3149 = vpop.f32.mrb[0].mxu0
        %v3150 = vadd.f32 0.0, %v3149
        %v3151 = vpop.f32.mrb[0].mxu0
        %3152 = vmatprep.mubr.f32.mxu0 0.0
        %3153 = vmatmul.mubr.f32.gmra.mrb[0].mxu0 %v2967
        %v3154 = vpop.f32.mrb[0].mxu0
        %v3155 = vadd.f32 0.0, %v3154
        %v3156 = vpop.f32.mrb[0].mxu0
        %3157 = vmatprep.mubr.f32.mxu0 0.0
        %3158 = vmatmul.mubr.f32.gmra.mrb[0].mxu0 %v2970
        %v3159 = vpop.f32.mrb[0].mxu0
        %v3160 = vadd.f32 0.0, %v3159
        %v3161 = vpop.f32.mrb[0].mxu0
        %3162 = vmatprep.mubr.f32.mxu0 0.0
        %3163 = vmatmul.mubr.f32.gmra.mrb[0].mxu0 %v2973
        %v3164 = vpop.f32.mrb[0].mxu0
        %v3165 = vadd.f32 0.0, %v3164
        %v3166 = vpop.f32.mrb[0].mxu0
        %3167 = vmatprep.mubr.f32.mxu0 0.0
        %3168 = vmatmul.mubr.f32.gmra.mrb[0].mxu0 %v2976
        %v3169 = vpop.f32.mrb[0].mxu0
        %v3170 = vadd.f32 0.0, %v3169
        %v3171 = vpop.f32.mrb[0].mxu0
        %3172 = vmatprep.mubr.f32.mxu0 0.0
        %3173 = vmatmul.mubr.f32.gmra.mrb[0].mxu0 %v2979
        %v3174 = vpop.f32.mrb[0].mxu0
        %v3175 = vadd.f32 0.0, %v3174
        %v3176 = vpop.f32.mrb[0].mxu0
        %3177 = vmatprep.mubr.f32.mxu0 0.0
        %3178 = vmatmul.mubr.f32.gmra.mrb[0].mxu0 %v2982
        %v3179 = vpop.f32.mrb[0].mxu0
        %v3180 = vadd.f32 0.0, %v3179
        %v3181 = vpop.f32.mrb[0].mxu0
        %3182 = vmatprep.mubr.f32.mxu0 0.0
        %3183 = vmatmul.mubr.f32.gmra.mrb[0].mxu0 %v2985
        %v3184 = vpop.f32.mrb[0].mxu0
        %v3185 = vadd.f32 0.0, %v3184
        %v3186 = vpop.f32.mrb[0].mxu0
        %3187 = vmatprep.mubr.f32.mxu0 0.0
        %3188 = vmatmul.mubr.f32.gmra.mrb[0].mxu0 %v2988
        %v3189 = vpop.f32.mrb[0].mxu0
        %v3190 = vadd.f32 0.0, %v3189
        %v3191 = vpop.f32.mrb[0].mxu0
        %3192 = vmatprep.mubr.f32.mxu0 0.0
        %3193 = vmatmul.mubr.f32.gmra.mrb[0].mxu0 %v2991
        %v3194 = vpop.f32.mrb[0].mxu0
        %v3195 = vadd.f32 0.0, %v3194
        %v3196 = vpop.f32.mrb[0].mxu0
        %3197 = vmatprep.mubr.f32.mxu0 0.0
        %3198 = vmatmul.mubr.f32.gmra.mrb[0].mxu0 %v2994
        %v3199 = vpop.f32.mrb[0].mxu0
        %v3200 = vadd.f32 0.0, %v3199
        %v3201 = vpop.f32.mrb[0].mxu0
        %3202 = vmatprep.mubr.f32.mxu0 0.0
        %3203 = vmatmul.mubr.f32.gmra.mrb[0].mxu0 %v2997
        %v3204 = vpop.f32.mrb[0].mxu0
        %v3205 = vadd.f32 0.0, %v3204
        %v3206 = vpop.f32.mrb[0].mxu0
        %3207 = vmatprep.mubr.f32.mxu0 0.0
        %3208 = vmatmul.mubr.f32.gmra.mrb[0].mxu0 %v3000
        %v3209 = vpop.f32.mrb[0].mxu0
        %v3210 = vadd.f32 0.0, %v3209
        %v3211 = vpop.f32.mrb[0].mxu0
        %3212 = vmatprep.mubr.f32.mxu0 0.0
        %3213 = vmatmul.mubr.f32.gmra.mrb[0].mxu0 %v3003
        %v3214 = vpop.f32.mrb[0].mxu0
        %v3215 = vadd.f32 0.0, %v3214
        %v3216 = vpop.f32.mrb[0].mxu0
        %3217 = vmatprep.mubr.f32.mxu0 0.0
        %3218 = vmatmul.mubr.f32.gmra.mrb[0].mxu0 %v3006
        %v3219 = vpop.f32.mrb[0].mxu0
        %v3220 = vadd.f32 0.0, %v3219
        %v3221 = vpop.f32.mrb[0].mxu0
        %3222 = vmatprep.mubr.f32.mxu0 0.0
        %3223 = vmatmul.mubr.f32.gmra.mrb[0].mxu0 %v3009
        %v3224 = vpop.f32.mrb[0].mxu0
        %v3225 = vadd.f32 0.0, %v3224
        %v3226 = vpop.f32.mrb[0].mxu0
        %3227 = vmatprep.mubr.f32.mxu0 0.0
        %3228 = vmatmul.mubr.f32.gmra.mrb[0].mxu0 %v3012
        %v3229 = vpop.f32.mrb[0].mxu0
        %v3230 = vadd.f32 0.0, %v3229
        %v3231 = vpop.f32.mrb[0].mxu0
        %3232 = vmatprep.mubr.f32.mxu0 0.0
        %3233 = vmatmul.mubr.f32.gmra.mrb[0].mxu0 %v3015
        %v3234 = vpop.f32.mrb[0].mxu0
        %v3235 = vadd.f32 0.0, %v3234
        %v3236 = vpop.f32.mrb[0].mxu0
        %3237 = vmatprep.mubr.f32.mxu0 0.0
        %3238 = vmatmul.mubr.f32.gmra.mrb[0].mxu0 %v3018
        %v3239 = vpop.f32.mrb[0].mxu0
        %v3240 = vadd.f32 0.0, %v3239
        %v3241 = vpop.f32.mrb[0].mxu0
        %3242 = vmatprep.mubr.f32.mxu0 0.0
        %3243 = vmatmul.mubr.f32.gmra.mrb[0].mxu0 %v3021
        %v3244 = vpop.f32.mrb[0].mxu0
        %v3245 = vadd.f32 0.0, %v3244
        %v3246 = vpop.f32.mrb[0].mxu0
        %3247 = vdwg.mxu0
        %v3248 = vld [vmem:[%s1 + $0x28] sm:$0x7]
        %v3249 = vld [vmem:[%s1 + $0x30] sm:$0xff]
        %v3250 = vld [vmem:[%s1 + $0x38] sm:$0xff]
        %v3251 = vld [vmem:[%s1 + $0x40] sm:$0xff]
        %v3252 = vld [vmem:[%s1 + $0x48] sm:$0xff]
        %v3254 = vsel %vm2342, %v3090, 0
        %v3257 = vsel %vm2342, %v3095, 0
        %v3260 = vsel %vm2342, %v3100, 0
        %v3263 = vsel %vm2342, %v3105, 0
        %v3266 = vsel %vm2342, %v3110, 0
        %v3269 = vsel %vm2342, %v3115, 0
        %v3272 = vsel %vm2342, %v3120, 0
        %v3275 = vsel %vm2342, %v3125, 0
        %v3278 = vsel %vm2342, %v3130, 0
        %v3281 = vsel %vm2342, %v3135, 0
        %v3284 = vsel %vm2342, %v3140, 0
        %v3287 = vsel %vm2342, %v3145, 0
        %v3290 = vsel %vm2342, %v3150, 0
        %v3293 = vsel %vm2342, %v3155, 0
        %v3296 = vsel %vm2342, %v3160, 0
        %v3299 = vsel %vm2342, %v3165, 0
        %v3302 = vsel %vm2342, %v3170, 0
        %v3305 = vsel %vm2342, %v3175, 0
        %v3308 = vsel %vm2342, %v3180, 0
        %v3311 = vsel %vm2342, %v3185, 0
        %v3314 = vsel %vm2342, %v3190, 0
        %v3317 = vsel %vm2342, %v3195, 0
        %v3320 = vsel %vm2342, %v3200, 0
        %v3323 = vsel %vm2342, %v3205, 0
        %v3326 = vsel %vm2342, %v3210, 0
        %v3329 = vsel %vm2342, %v3215, 0
        %v3332 = vsel %vm2342, %v3220, 0
        %v3335 = vsel %vm2342, %v3225, 0
        %v3338 = vsel %vm2342, %v3230, 0
        %v3341 = vsel %vm2342, %v3235, 0
        %v3344 = vsel %vm2342, %v3240, 0
        %v3347 = vsel %vm2342, %v3245, 0
        %3349 = vmatprep.subr.mxu0 0.0
        %3350 = vmatpush1.msra.mxu0 %v3249
        %3351 = vmatprep.subr.mxu0 0.0
        %3352 = vmatpush1.msra.mxu0 %v3250
        %3353 = vmatprep.subr.mxu0 0.0
        %3354 = vmatpush1.msra.mxu0 %v3251
        %3355 = vmatprep.subr.mxu0 0.0
        %3356 = vmatpush1.msra.mxu0 %v3252
        %3357 = vmatprep.subr.mxu0 0.0
        %3358 = vmatpush1.msra.mxu0 0.0
        %3359 = vmatprep.subr.mxu0 0.0
        %3360 = vmatpush1.msra.mxu0 0.0
        %3361 = vmatprep.subr.mxu0 0.0
        %3362 = vmatpush1.msra.mxu0 0.0
        %3363 = vmatprep.subr.mxu0 0.0
        %3364 = vmatpush1.msra.mxu0 0.0
        %3365 = vmatprep.subr.mxu0 0.0
        %3366 = vmatpush1.msra.mxu0 0.0
        %3367 = vmatprep.subr.mxu0 0.0
        %3368 = vmatpush1.msra.mxu0 0.0
        %3369 = vmatprep.subr.mxu0 0.0
        %3370 = vmatpush1.msra.mxu0 0.0
        %3371 = vmatprep.subr.mxu0 0.0
        %3372 = vmatpush1.msra.mxu0 0.0
        %3373 = vmatprep.subr.mxu0 0.0
        %3374 = vmatpush1.msra.mxu0 0.0
        %3375 = vmatprep.subr.mxu0 0.0
        %3376 = vmatpush1.msra.mxu0 0.0
        %3377 = vmatprep.subr.mxu0 0.0
        %3378 = vmatpush1.msra.mxu0 0.0
        %3379 = vmatprep.subr.mxu0 0.0
        %3380 = vmatpush1.msra.mxu0 0.0
        %3381 = vmatprep.subr.mxu0 0.0
        %3382 = vmatpush1.msra.mxu0 0.0
        %3383 = vmatprep.subr.mxu0 0.0
        %3384 = vmatpush1.msra.mxu0 0.0
        %3385 = vmatprep.subr.mxu0 0.0
        %3386 = vmatpush1.msra.mxu0 0.0
        %3387 = vmatprep.subr.mxu0 0.0
        %3388 = vmatpush1.msra.mxu0 0.0
        %3389 = vmatprep.subr.mxu0 0.0
        %3390 = vmatpush1.msra.mxu0 0.0
        %3391 = vmatprep.subr.mxu0 0.0
        %3392 = vmatpush1.msra.mxu0 0.0
        %3393 = vmatprep.subr.mxu0 0.0
        %3394 = vmatpush1.msra.mxu0 0.0
        %3395 = vmatprep.subr.mxu0 0.0
        %3396 = vmatpush1.msra.mxu0 0.0
        %3397 = vmatprep.subr.mxu0 0.0
        %3398 = vmatpush1.msra.mxu0 0.0
        %3399 = vmatprep.subr.mxu0 0.0
        %3400 = vmatpush1.msra.mxu0 0.0
        %3401 = vmatprep.subr.mxu0 0.0
        %3402 = vmatpush1.msra.mxu0 0.0
        %3403 = vmatprep.subr.mxu0 0.0
        %3404 = vmatpush1.msra.mxu0 0.0
        %3405 = vmatprep.subr.mxu0 0.0
        %3406 = vmatpush1.msra.mxu0 0.0
        %3407 = vmatprep.subr.mxu0 0.0
        %3408 = vmatpush1.msra.mxu0 0.0
        %3409 = vmatprep.subr.mxu0 0.0
        %3410 = vmatpush1.msra.mxu0 0.0
        %3411 = vmatprep.subr.mxu0 0.0
        %3412 = vmatpush1.msra.mxu0 0.0
        %3413 = vmatprep.mubr.f32.mxu0 0.0
        %3414 = vmatmul.mubr.f32.gmra.mrb[0].mxu0 %v3254
        %v3415 = vpop.f32.mrb[0].mxu0
        %v3416 = vadd.f32 0.0, %v3415
        %v3417 = vpop.f32.mrb[0].mxu0
        %3418 = vmatprep.mubr.f32.mxu0 0.0
        %3419 = vmatmul.mubr.f32.gmra.mrb[0].mxu0 %v3257
        %v3420 = vpop.f32.mrb[0].mxu0
        %v3421 = vadd.f32 0.0, %v3420
        %v3422 = vpop.f32.mrb[0].mxu0
        %3423 = vmatprep.mubr.f32.mxu0 0.0
        %3424 = vmatmul.mubr.f32.gmra.mrb[0].mxu0 %v3260
        %v3425 = vpop.f32.mrb[0].mxu0
        %v3426 = vadd.f32 0.0, %v3425
        %v3427 = vpop.f32.mrb[0].mxu0
        %3428 = vmatprep.mubr.f32.mxu0 0.0
        %3429 = vmatmul.mubr.f32.gmra.mrb[0].mxu0 %v3263
        %v3430 = vpop.f32.mrb[0].mxu0
        %v3431 = vadd.f32 0.0, %v3430
        %v3432 = vpop.f32.mrb[0].mxu0
        %3433 = vmatprep.mubr.f32.mxu0 0.0
        %3434 = vmatmul.mubr.f32.gmra.mrb[0].mxu0 %v3266
        %v3435 = vpop.f32.mrb[0].mxu0
        %v3436 = vadd.f32 0.0, %v3435
        %v3437 = vpop.f32.mrb[0].mxu0
        %3438 = vmatprep.mubr.f32.mxu0 0.0
        %3439 = vmatmul.mubr.f32.gmra.mrb[0].mxu0 %v3269
        %v3440 = vpop.f32.mrb[0].mxu0
        %v3441 = vadd.f32 0.0, %v3440
        %v3442 = vpop.f32.mrb[0].mxu0
        %3443 = vmatprep.mubr.f32.mxu0 0.0
        %3444 = vmatmul.mubr.f32.gmra.mrb[0].mxu0 %v3272
        %v3445 = vpop.f32.mrb[0].mxu0
        %v3446 = vadd.f32 0.0, %v3445
        %v3447 = vpop.f32.mrb[0].mxu0
        %3448 = vmatprep.mubr.f32.mxu0 0.0
        %3449 = vmatmul.mubr.f32.gmra.mrb[0].mxu0 %v3275
        %v3450 = vpop.f32.mrb[0].mxu0
        %v3451 = vadd.f32 0.0, %v3450
        %v3452 = vpop.f32.mrb[0].mxu0
        %3453 = vmatprep.mubr.f32.mxu0 0.0
        %3454 = vmatmul.mubr.f32.gmra.mrb[0].mxu0 %v3278
        %v3455 = vpop.f32.mrb[0].mxu0
        %v3456 = vadd.f32 0.0, %v3455
        %v3457 = vpop.f32.mrb[0].mxu0
        %3458 = vmatprep.mubr.f32.mxu0 0.0
        %3459 = vmatmul.mubr.f32.gmra.mrb[0].mxu0 %v3281
        %v3460 = vpop.f32.mrb[0].mxu0
        %v3461 = vadd.f32 0.0, %v3460
        %v3462 = vpop.f32.mrb[0].mxu0
        %3463 = vmatprep.mubr.f32.mxu0 0.0
        %3464 = vmatmul.mubr.f32.gmra.mrb[0].mxu0 %v3284
        %v3465 = vpop.f32.mrb[0].mxu0
        %v3466 = vadd.f32 0.0, %v3465
        %v3467 = vpop.f32.mrb[0].mxu0
        %3468 = vmatprep.mubr.f32.mxu0 0.0
        %3469 = vmatmul.mubr.f32.gmra.mrb[0].mxu0 %v3287
        %v3470 = vpop.f32.mrb[0].mxu0
        %v3471 = vadd.f32 0.0, %v3470
        %v3472 = vpop.f32.mrb[0].mxu0
        %3473 = vmatprep.mubr.f32.mxu0 0.0
        %3474 = vmatmul.mubr.f32.gmra.mrb[0].mxu0 %v3290
        %v3475 = vpop.f32.mrb[0].mxu0
        %v3476 = vadd.f32 0.0, %v3475
        %v3477 = vpop.f32.mrb[0].mxu0
        %3478 = vmatprep.mubr.f32.mxu0 0.0
        %3479 = vmatmul.mubr.f32.gmra.mrb[0].mxu0 %v3293
        %v3480 = vpop.f32.mrb[0].mxu0
        %v3481 = vadd.f32 0.0, %v3480
        %v3482 = vpop.f32.mrb[0].mxu0
        %3483 = vmatprep.mubr.f32.mxu0 0.0
        %3484 = vmatmul.mubr.f32.gmra.mrb[0].mxu0 %v3296
        %v3485 = vpop.f32.mrb[0].mxu0
        %v3486 = vadd.f32 0.0, %v3485
        %v3487 = vpop.f32.mrb[0].mxu0
        %3488 = vmatprep.mubr.f32.mxu0 0.0
        %3489 = vmatmul.mubr.f32.gmra.mrb[0].mxu0 %v3299
        %v3490 = vpop.f32.mrb[0].mxu0
        %v3491 = vadd.f32 0.0, %v3490
        %v3492 = vpop.f32.mrb[0].mxu0
        %3493 = vmatprep.mubr.f32.mxu0 0.0
        %3494 = vmatmul.mubr.f32.gmra.mrb[0].mxu0 %v3302
        %v3495 = vpop.f32.mrb[0].mxu0
        %v3496 = vadd.f32 0.0, %v3495
        %v3497 = vpop.f32.mrb[0].mxu0
        %3498 = vmatprep.mubr.f32.mxu0 0.0
        %3499 = vmatmul.mubr.f32.gmra.mrb[0].mxu0 %v3305
        %v3500 = vpop.f32.mrb[0].mxu0
        %v3501 = vadd.f32 0.0, %v3500
        %v3502 = vpop.f32.mrb[0].mxu0
        %3503 = vmatprep.mubr.f32.mxu0 0.0
        %3504 = vmatmul.mubr.f32.gmra.mrb[0].mxu0 %v3308
        %v3505 = vpop.f32.mrb[0].mxu0
        %v3506 = vadd.f32 0.0, %v3505
        %v3507 = vpop.f32.mrb[0].mxu0
        %3508 = vmatprep.mubr.f32.mxu0 0.0
        %3509 = vmatmul.mubr.f32.gmra.mrb[0].mxu0 %v3311
        %v3510 = vpop.f32.mrb[0].mxu0
        %v3511 = vadd.f32 0.0, %v3510
        %v3512 = vpop.f32.mrb[0].mxu0
        %3513 = vmatprep.mubr.f32.mxu0 0.0
        %3514 = vmatmul.mubr.f32.gmra.mrb[0].mxu0 %v3314
        %v3515 = vpop.f32.mrb[0].mxu0
        %v3516 = vadd.f32 0.0, %v3515
        %v3517 = vpop.f32.mrb[0].mxu0
        %3518 = vmatprep.mubr.f32.mxu0 0.0
        %3519 = vmatmul.mubr.f32.gmra.mrb[0].mxu0 %v3317
        %v3520 = vpop.f32.mrb[0].mxu0
        %v3521 = vadd.f32 0.0, %v3520
        %v3522 = vpop.f32.mrb[0].mxu0
        %3523 = vmatprep.mubr.f32.mxu0 0.0
        %3524 = vmatmul.mubr.f32.gmra.mrb[0].mxu0 %v3320
        %v3525 = vpop.f32.mrb[0].mxu0
        %v3526 = vadd.f32 0.0, %v3525
        %v3527 = vpop.f32.mrb[0].mxu0
        %3528 = vmatprep.mubr.f32.mxu0 0.0
        %3529 = vmatmul.mubr.f32.gmra.mrb[0].mxu0 %v3323
        %v3530 = vpop.f32.mrb[0].mxu0
        %v3531 = vadd.f32 0.0, %v3530
        %v3532 = vpop.f32.mrb[0].mxu0
        %3533 = vmatprep.mubr.f32.mxu0 0.0
        %3534 = vmatmul.mubr.f32.gmra.mrb[0].mxu0 %v3326
        %v3535 = vpop.f32.mrb[0].mxu0
        %v3536 = vadd.f32 0.0, %v3535
        %v3537 = vpop.f32.mrb[0].mxu0
        %3538 = vmatprep.mubr.f32.mxu0 0.0
        %3539 = vmatmul.mubr.f32.gmra.mrb[0].mxu0 %v3329
        %v3540 = vpop.f32.mrb[0].mxu0
        %v3541 = vadd.f32 0.0, %v3540
        %v3542 = vpop.f32.mrb[0].mxu0
        %3543 = vmatprep.mubr.f32.mxu0 0.0
        %3544 = vmatmul.mubr.f32.gmra.mrb[0].mxu0 %v3332
        %v3545 = vpop.f32.mrb[0].mxu0
        %v3546 = vadd.f32 0.0, %v3545
        %v3547 = vpop.f32.mrb[0].mxu0
        %3548 = vmatprep.mubr.f32.mxu0 0.0
        %3549 = vmatmul.mubr.f32.gmra.mrb[0].mxu0 %v3335
        %v3550 = vpop.f32.mrb[0].mxu0
        %v3551 = vadd.f32 0.0, %v3550
        %v3552 = vpop.f32.mrb[0].mxu0
        %3553 = vmatprep.mubr.f32.mxu0 0.0
        %3554 = vmatmul.mubr.f32.gmra.mrb[0].mxu0 %v3338
        %v3555 = vpop.f32.mrb[0].mxu0
        %v3556 = vadd.f32 0.0, %v3555
        %v3557 = vpop.f32.mrb[0].mxu0
        %3558 = vmatprep.mubr.f32.mxu0 0.0
        %3559 = vmatmul.mubr.f32.gmra.mrb[0].mxu0 %v3341
        %v3560 = vpop.f32.mrb[0].mxu0
        %v3561 = vadd.f32 0.0, %v3560
        %v3562 = vpop.f32.mrb[0].mxu0
        %3563 = vmatprep.mubr.f32.mxu0 0.0
        %3564 = vmatmul.mubr.f32.gmra.mrb[0].mxu0 %v3344
        %v3565 = vpop.f32.mrb[0].mxu0
        %v3566 = vadd.f32 0.0, %v3565
        %v3567 = vpop.f32.mrb[0].mxu0
        %3568 = vmatprep.mubr.f32.mxu0 0.0
        %3569 = vmatmul.mubr.f32.gmra.mrb[0].mxu0 %v3347
        %v3570 = vpop.f32.mrb[0].mxu0
        %v3571 = vadd.f32 0.0, %v3570
        %v3572 = vpop.f32.mrb[0].mxu0
        %3573 = vdwg.mxu0
        %3574 = vrot.lane.b32.xlu0 %v169, 58
        %v3575 = vpop.permute.xlu0 %3574
        %3576 = vrot.lane.b32.xlu0 %v170, 58
        %v3577 = vpop.permute.xlu0 %3576
        %3578 = vrot.lane.b32.xlu0 %v171, 58
        %v3579 = vpop.permute.xlu0 %3578
        %3580 = vrot.lane.b32.xlu0 %v172, 58
        %v3581 = vpop.permute.xlu0 %3580
        %3582 = vrot.lane.b32.xlu0 %v173, 58
        %v3583 = vpop.permute.xlu0 %3582
        %3584 = vrot.lane.b32.xlu0 %v174, 58
        %v3585 = vpop.permute.xlu0 %3584
        %3586 = vrot.lane.b32.xlu0 %v175, 58
        %v3587 = vpop.permute.xlu0 %3586
        %3588 = vrot.lane.b32.xlu0 %v176, 58
        %v3589 = vpop.permute.xlu0 %3588
        %3590 = vrot.lane.b32.xlu0 %v177, 58
        %v3591 = vpop.permute.xlu0 %3590
        %3592 = vrot.lane.b32.xlu0 %v178, 58
        %v3593 = vpop.permute.xlu0 %3592
        %3594 = vrot.lane.b32.xlu0 %v179, 58
        %v3595 = vpop.permute.xlu0 %3594
        %3596 = vrot.lane.b32.xlu0 %v180, 58
        %v3597 = vpop.permute.xlu0 %3596
        %3598 = vrot.lane.b32.xlu0 %v181, 58
        %v3599 = vpop.permute.xlu0 %3598
        %3600 = vrot.lane.b32.xlu0 %v182, 58
        %v3601 = vpop.permute.xlu0 %3600
        %3602 = vrot.lane.b32.xlu0 %v183, 58
        %v3603 = vpop.permute.xlu0 %3602
        %3604 = vrot.lane.b32.xlu0 %v184, 58
        %v3605 = vpop.permute.xlu0 %3604
        %3606 = vrot.lane.b32.xlu0 %v185, 58
        %v3607 = vpop.permute.xlu0 %3606
        %3608 = vrot.lane.b32.xlu0 %v186, 58
        %v3609 = vpop.permute.xlu0 %3608
        %3610 = vrot.lane.b32.xlu0 %v187, 58
        %v3611 = vpop.permute.xlu0 %3610
        %3612 = vrot.lane.b32.xlu0 %v188, 58
        %v3613 = vpop.permute.xlu0 %3612
        %3614 = vrot.lane.b32.xlu0 %v189, 58
        %v3615 = vpop.permute.xlu0 %3614
        %3616 = vrot.lane.b32.xlu0 %v190, 58
        %v3617 = vpop.permute.xlu0 %3616
        %3618 = vrot.lane.b32.xlu0 %v191, 58
        %v3619 = vpop.permute.xlu0 %3618
        %3620 = vrot.lane.b32.xlu0 %v192, 58
        %v3621 = vpop.permute.xlu0 %3620
        %3622 = vrot.lane.b32.xlu0 %v193, 58
        %v3623 = vpop.permute.xlu0 %3622
        %3624 = vrot.lane.b32.xlu0 %v194, 58
        %v3625 = vpop.permute.xlu0 %3624
        %3626 = vrot.lane.b32.xlu0 %v195, 58
        %v3627 = vpop.permute.xlu0 %3626
        %3628 = vrot.lane.b32.xlu0 %v196, 58
        %v3629 = vpop.permute.xlu0 %3628
        %3630 = vrot.lane.b32.xlu0 %v197, 58
        %v3631 = vpop.permute.xlu0 %3630
        %3632 = vrot.lane.b32.xlu0 %v198, 58
        %v3633 = vpop.permute.xlu0 %3632
        %3634 = vrot.lane.b32.xlu0 %v199, 58
        %v3635 = vpop.permute.xlu0 %3634
        %3636 = vrot.lane.b32.xlu0 %v200, 58
        %v3637 = vpop.permute.xlu0 %3636
        %vm3638 = vcmask 23552
        %v3639 = vsel %vm3638, %v3575, 0
        %v3641 = vsel %vm3638, %v3577, 0
        %v3643 = vsel %vm3638, %v3579, 0
        %v3645 = vsel %vm3638, %v3581, 0
        %v3647 = vsel %vm3638, %v3583, 0
        %v3649 = vsel %vm3638, %v3585, 0
        %v3651 = vsel %vm3638, %v3587, 0
        %v3653 = vsel %vm3638, %v3589, 0
        %v3655 = vsel %vm3638, %v3591, 0
        %v3657 = vsel %vm3638, %v3593, 0
        %v3659 = vsel %vm3638, %v3595, 0
        %v3661 = vsel %vm3638, %v3597, 0
        %v3663 = vsel %vm3638, %v3599, 0
        %v3665 = vsel %vm3638, %v3601, 0
        %v3667 = vsel %vm3638, %v3603, 0
        %v3669 = vsel %vm3638, %v3605, 0
        %v3671 = vsel %vm3638, %v3607, 0
        %v3673 = vsel %vm3638, %v3609, 0
        %v3675 = vsel %vm3638, %v3611, 0
        %v3677 = vsel %vm3638, %v3613, 0
        %v3679 = vsel %vm3638, %v3615, 0
        %v3681 = vsel %vm3638, %v3617, 0
        %v3683 = vsel %vm3638, %v3619, 0
        %v3685 = vsel %vm3638, %v3621, 0
        %v3687 = vsel %vm3638, %v3623, 0
        %v3689 = vsel %vm3638, %v3625, 0
        %v3691 = vsel %vm3638, %v3627, 0
        %v3693 = vsel %vm3638, %v3629, 0
        %v3695 = vsel %vm3638, %v3631, 0
        %v3697 = vsel %vm3638, %v3633, 0
        %v3699 = vsel %vm3638, %v3635, 0
        %v3701 = vsel %vm3638, %v3637, 0
        %vm3703 = vcmask 1042432
        %v3705 = vsel %vm3703, %v3248, 0
        %3707 = vmatprep.subr.mxu0 0.0
        %3708 = vmatpush1.msra.mxu0 %v3705
        %3709 = vmatprep.subr.mxu0 0.0
        %3710 = vmatpush1.msra.mxu0 0.0
        %3711 = vmatprep.subr.mxu0 0.0
        %3712 = vmatpush1.msra.mxu0 0.0
        %3713 = vmatprep.subr.mxu0 0.0
        %3714 = vmatpush1.msra.mxu0 0.0
        %3715 = vmatprep.subr.mxu0 0.0
        %3716 = vmatpush1.msra.mxu0 0.0
        %3717 = vmatprep.subr.mxu0 0.0
        %3718 = vmatpush1.msra.mxu0 0.0
        %3719 = vmatprep.subr.mxu0 0.0
        %3720 = vmatpush1.msra.mxu0 0.0
        %3721 = vmatprep.subr.mxu0 0.0
        %3722 = vmatpush1.msra.mxu0 0.0
        %3723 = vmatprep.subr.mxu0 0.0
        %3724 = vmatpush1.msra.mxu0 0.0
        %3725 = vmatprep.subr.mxu0 0.0
        %3726 = vmatpush1.msra.mxu0 0.0
        %3727 = vmatprep.subr.mxu0 0.0
        %3728 = vmatpush1.msra.mxu0 0.0
        %3729 = vmatprep.subr.mxu0 0.0
        %3730 = vmatpush1.msra.mxu0 0.0
        %3731 = vmatprep.subr.mxu0 0.0
        %3732 = vmatpush1.msra.mxu0 0.0
        %3733 = vmatprep.subr.mxu0 0.0
        %3734 = vmatpush1.msra.mxu0 0.0
        %3735 = vmatprep.subr.mxu0 0.0
        %3736 = vmatpush1.msra.mxu0 0.0
        %3737 = vmatprep.subr.mxu0 0.0
        %3738 = vmatpush1.msra.mxu0 0.0
        %3739 = vmatprep.subr.mxu0 0.0
        %3740 = vmatpush1.msra.mxu0 0.0
        %3741 = vmatprep.subr.mxu0 0.0
        %3742 = vmatpush1.msra.mxu0 0.0
        %3743 = vmatprep.subr.mxu0 0.0
        %3744 = vmatpush1.msra.mxu0 0.0
        %3745 = vmatprep.subr.mxu0 0.0
        %3746 = vmatpush1.msra.mxu0 0.0
        %3747 = vmatprep.subr.mxu0 0.0
        %3748 = vmatpush1.msra.mxu0 0.0
        %3749 = vmatprep.subr.mxu0 0.0
        %3750 = vmatpush1.msra.mxu0 0.0
        %3751 = vmatprep.subr.mxu0 0.0
        %3752 = vmatpush1.msra.mxu0 0.0
        %3753 = vmatprep.subr.mxu0 0.0
        %3754 = vmatpush1.msra.mxu0 0.0
        %3755 = vmatprep.subr.mxu0 0.0
        %3756 = vmatpush1.msra.mxu0 0.0
        %3757 = vmatprep.subr.mxu0 0.0
        %3758 = vmatpush1.msra.mxu0 0.0
        %3759 = vmatprep.subr.mxu0 0.0
        %3760 = vmatpush1.msra.mxu0 0.0
        %3761 = vmatprep.subr.mxu0 0.0
        %3762 = vmatpush1.msra.mxu0 0.0
        %3763 = vmatprep.subr.mxu0 0.0
        %3764 = vmatpush1.msra.mxu0 0.0
        %3765 = vmatprep.subr.mxu0 0.0
        %3766 = vmatpush1.msra.mxu0 0.0
        %3767 = vmatprep.subr.mxu0 0.0
        %3768 = vmatpush1.msra.mxu0 0.0
        %3769 = vmatprep.subr.mxu0 0.0
        %3770 = vmatpush1.msra.mxu0 0.0
        %3771 = vmatprep.mubr.f32.mxu0 0.0
        %3772 = vmatmul.mubr.f32.gmra.mrb[0].mxu0 %v3639
        %v3773 = vpop.f32.mrb[0].mxu0
        %v3774 = vadd.f32 %v3416, %v3773
        %v3775 = vpop.f32.mrb[0].mxu0
        %3776 = vmatprep.mubr.f32.mxu0 0.0
        %3777 = vmatmul.mubr.f32.gmra.mrb[0].mxu0 %v3641
        %v3778 = vpop.f32.mrb[0].mxu0
        %v3779 = vadd.f32 %v3421, %v3778
        %v3780 = vpop.f32.mrb[0].mxu0
        %3781 = vmatprep.mubr.f32.mxu0 0.0
        %3782 = vmatmul.mubr.f32.gmra.mrb[0].mxu0 %v3643
        %v3783 = vpop.f32.mrb[0].mxu0
        %v3784 = vadd.f32 %v3426, %v3783
        %v3785 = vpop.f32.mrb[0].mxu0
        %3786 = vmatprep.mubr.f32.mxu0 0.0
        %3787 = vmatmul.mubr.f32.gmra.mrb[0].mxu0 %v3645
        %v3788 = vpop.f32.mrb[0].mxu0
        %v3789 = vadd.f32 %v3431, %v3788
        %v3790 = vpop.f32.mrb[0].mxu0
        %3791 = vmatprep.mubr.f32.mxu0 0.0
        %3792 = vmatmul.mubr.f32.gmra.mrb[0].mxu0 %v3647
        %v3793 = vpop.f32.mrb[0].mxu0
        %v3794 = vadd.f32 %v3436, %v3793
        %v3795 = vpop.f32.mrb[0].mxu0
        %3796 = vmatprep.mubr.f32.mxu0 0.0
        %3797 = vmatmul.mubr.f32.gmra.mrb[0].mxu0 %v3649
        %v3798 = vpop.f32.mrb[0].mxu0
        %v3799 = vadd.f32 %v3441, %v3798
        %v3800 = vpop.f32.mrb[0].mxu0
        %3801 = vmatprep.mubr.f32.mxu0 0.0
        %3802 = vmatmul.mubr.f32.gmra.mrb[0].mxu0 %v3651
        %v3803 = vpop.f32.mrb[0].mxu0
        %v3804 = vadd.f32 %v3446, %v3803
        %v3805 = vpop.f32.mrb[0].mxu0
        %3806 = vmatprep.mubr.f32.mxu0 0.0
        %3807 = vmatmul.mubr.f32.gmra.mrb[0].mxu0 %v3653
        %v3808 = vpop.f32.mrb[0].mxu0
        %v3809 = vadd.f32 %v3451, %v3808
        %v3810 = vpop.f32.mrb[0].mxu0
        %3811 = vmatprep.mubr.f32.mxu0 0.0
        %3812 = vmatmul.mubr.f32.gmra.mrb[0].mxu0 %v3655
        %v3813 = vpop.f32.mrb[0].mxu0
        %v3814 = vadd.f32 %v3456, %v3813
        %v3815 = vpop.f32.mrb[0].mxu0
        %3816 = vmatprep.mubr.f32.mxu0 0.0
        %3817 = vmatmul.mubr.f32.gmra.mrb[0].mxu0 %v3657
        %v3818 = vpop.f32.mrb[0].mxu0
        %v3819 = vadd.f32 %v3461, %v3818
        %v3820 = vpop.f32.mrb[0].mxu0
        %3821 = vmatprep.mubr.f32.mxu0 0.0
        %3822 = vmatmul.mubr.f32.gmra.mrb[0].mxu0 %v3659
        %v3823 = vpop.f32.mrb[0].mxu0
        %v3824 = vadd.f32 %v3466, %v3823
        %v3825 = vpop.f32.mrb[0].mxu0
        %3826 = vmatprep.mubr.f32.mxu0 0.0
        %3827 = vmatmul.mubr.f32.gmra.mrb[0].mxu0 %v3661
        %v3828 = vpop.f32.mrb[0].mxu0
        %v3829 = vadd.f32 %v3471, %v3828
        %v3830 = vpop.f32.mrb[0].mxu0
        %3831 = vmatprep.mubr.f32.mxu0 0.0
        %3832 = vmatmul.mubr.f32.gmra.mrb[0].mxu0 %v3663
        %v3833 = vpop.f32.mrb[0].mxu0
        %v3834 = vadd.f32 %v3476, %v3833
        %v3835 = vpop.f32.mrb[0].mxu0
        %3836 = vmatprep.mubr.f32.mxu0 0.0
        %3837 = vmatmul.mubr.f32.gmra.mrb[0].mxu0 %v3665
        %v3838 = vpop.f32.mrb[0].mxu0
        %v3839 = vadd.f32 %v3481, %v3838
        %v3840 = vpop.f32.mrb[0].mxu0
        %3841 = vmatprep.mubr.f32.mxu0 0.0
        %3842 = vmatmul.mubr.f32.gmra.mrb[0].mxu0 %v3667
        %v3843 = vpop.f32.mrb[0].mxu0
        %v3844 = vadd.f32 %v3486, %v3843
        %v3845 = vpop.f32.mrb[0].mxu0
        %3846 = vmatprep.mubr.f32.mxu0 0.0
        %3847 = vmatmul.mubr.f32.gmra.mrb[0].mxu0 %v3669
        %v3848 = vpop.f32.mrb[0].mxu0
        %v3849 = vadd.f32 %v3491, %v3848
        %v3850 = vpop.f32.mrb[0].mxu0
        %3851 = vmatprep.mubr.f32.mxu0 0.0
        %3852 = vmatmul.mubr.f32.gmra.mrb[0].mxu0 %v3671
        %v3853 = vpop.f32.mrb[0].mxu0
        %v3854 = vadd.f32 %v3496, %v3853
        %v3855 = vpop.f32.mrb[0].mxu0
        %3856 = vmatprep.mubr.f32.mxu0 0.0
        %3857 = vmatmul.mubr.f32.gmra.mrb[0].mxu0 %v3673
        %v3858 = vpop.f32.mrb[0].mxu0
        %v3859 = vadd.f32 %v3501, %v3858
        %v3860 = vpop.f32.mrb[0].mxu0
        %3861 = vmatprep.mubr.f32.mxu0 0.0
        %3862 = vmatmul.mubr.f32.gmra.mrb[0].mxu0 %v3675
        %v3863 = vpop.f32.mrb[0].mxu0
        %v3864 = vadd.f32 %v3506, %v3863
        %v3865 = vpop.f32.mrb[0].mxu0
        %3866 = vmatprep.mubr.f32.mxu0 0.0
        %3867 = vmatmul.mubr.f32.gmra.mrb[0].mxu0 %v3677
        %v3868 = vpop.f32.mrb[0].mxu0
        %v3869 = vadd.f32 %v3511, %v3868
        %v3870 = vpop.f32.mrb[0].mxu0
        %3871 = vmatprep.mubr.f32.mxu0 0.0
        %3872 = vmatmul.mubr.f32.gmra.mrb[0].mxu0 %v3679
        %v3873 = vpop.f32.mrb[0].mxu0
        %v3874 = vadd.f32 %v3516, %v3873
        %v3875 = vpop.f32.mrb[0].mxu0
        %3876 = vmatprep.mubr.f32.mxu0 0.0
        %3877 = vmatmul.mubr.f32.gmra.mrb[0].mxu0 %v3681
        %v3878 = vpop.f32.mrb[0].mxu0
        %v3879 = vadd.f32 %v3521, %v3878
        %v3880 = vpop.f32.mrb[0].mxu0
        %3881 = vmatprep.mubr.f32.mxu0 0.0
        %3882 = vmatmul.mubr.f32.gmra.mrb[0].mxu0 %v3683
        %v3883 = vpop.f32.mrb[0].mxu0
        %v3884 = vadd.f32 %v3526, %v3883
        %v3885 = vpop.f32.mrb[0].mxu0
        %3886 = vmatprep.mubr.f32.mxu0 0.0
        %3887 = vmatmul.mubr.f32.gmra.mrb[0].mxu0 %v3685
        %v3888 = vpop.f32.mrb[0].mxu0
        %v3889 = vadd.f32 %v3531, %v3888
        %v3890 = vpop.f32.mrb[0].mxu0
        %3891 = vmatprep.mubr.f32.mxu0 0.0
        %3892 = vmatmul.mubr.f32.gmra.mrb[0].mxu0 %v3687
        %v3893 = vpop.f32.mrb[0].mxu0
        %v3894 = vadd.f32 %v3536, %v3893
        %v3895 = vpop.f32.mrb[0].mxu0
        %3896 = vmatprep.mubr.f32.mxu0 0.0
        %3897 = vmatmul.mubr.f32.gmra.mrb[0].mxu0 %v3689
        %v3898 = vpop.f32.mrb[0].mxu0
        %v3899 = vadd.f32 %v3541, %v3898
        %v3900 = vpop.f32.mrb[0].mxu0
        %3901 = vmatprep.mubr.f32.mxu0 0.0
        %3902 = vmatmul.mubr.f32.gmra.mrb[0].mxu0 %v3691
        %v3903 = vpop.f32.mrb[0].mxu0
        %v3904 = vadd.f32 %v3546, %v3903
        %v3905 = vpop.f32.mrb[0].mxu0
        %3906 = vmatprep.mubr.f32.mxu0 0.0
        %3907 = vmatmul.mubr.f32.gmra.mrb[0].mxu0 %v3693
        %v3908 = vpop.f32.mrb[0].mxu0
        %v3909 = vadd.f32 %v3551, %v3908
        %v3910 = vpop.f32.mrb[0].mxu0
        %3911 = vmatprep.mubr.f32.mxu0 0.0
        %3912 = vmatmul.mubr.f32.gmra.mrb[0].mxu0 %v3695
        %v3913 = vpop.f32.mrb[0].mxu0
        %v3914 = vadd.f32 %v3556, %v3913
        %v3915 = vpop.f32.mrb[0].mxu0
        %3916 = vmatprep.mubr.f32.mxu0 0.0
        %3917 = vmatmul.mubr.f32.gmra.mrb[0].mxu0 %v3697
        %v3918 = vpop.f32.mrb[0].mxu0
        %v3919 = vadd.f32 %v3561, %v3918
        %v3920 = vpop.f32.mrb[0].mxu0
        %3921 = vmatprep.mubr.f32.mxu0 0.0
        %3922 = vmatmul.mubr.f32.gmra.mrb[0].mxu0 %v3699
        %v3923 = vpop.f32.mrb[0].mxu0
        %v3924 = vadd.f32 %v3566, %v3923
        %v3925 = vpop.f32.mrb[0].mxu0
        %3926 = vmatprep.mubr.f32.mxu0 0.0
        %3927 = vmatmul.mubr.f32.gmra.mrb[0].mxu0 %v3701
        %v3928 = vpop.f32.mrb[0].mxu0
        %v3929 = vadd.f32 %v3571, %v3928
        %v3930 = vpop.f32.mrb[0].mxu0
        %3931 = vdwg.mxu0
        %v3932 = vld [vmem:[%s2 + $0x3] sm:$0x1]
        %v3933 = vlaneseq
        %v3934 = vshrl.u32 %v3933, 7
        %v3935 = vsub.s32 0, %v3934
        %v3936 = vrot.slane %v3932, %v3935
        %v3937 = vadd.f32 %v3774, %v3936
        %v3938 = vadd.f32 %v3779, %v3936
        %v3939 = vadd.f32 %v3784, %v3936
        %v3940 = vadd.f32 %v3789, %v3936
        %v3941 = vadd.f32 %v3794, %v3936
        %v3942 = vadd.f32 %v3799, %v3936
        %v3943 = vadd.f32 %v3804, %v3936
        %v3944 = vadd.f32 %v3809, %v3936
        %v3945 = vadd.f32 %v3814, %v3936
        %v3946 = vadd.f32 %v3819, %v3936
        %v3947 = vadd.f32 %v3824, %v3936
        %v3948 = vadd.f32 %v3829, %v3936
        %v3949 = vadd.f32 %v3834, %v3936
        %v3950 = vadd.f32 %v3839, %v3936
        %v3951 = vadd.f32 %v3844, %v3936
        %v3952 = vadd.f32 %v3849, %v3936
        %v3953 = vadd.f32 %v3854, %v3936
        %v3954 = vadd.f32 %v3859, %v3936
        %v3955 = vadd.f32 %v3864, %v3936
        %v3956 = vadd.f32 %v3869, %v3936
        %v3957 = vadd.f32 %v3874, %v3936
        %v3958 = vadd.f32 %v3879, %v3936
        %v3959 = vadd.f32 %v3884, %v3936
        %v3960 = vadd.f32 %v3889, %v3936
        %v3961 = vadd.f32 %v3894, %v3936
        %v3962 = vadd.f32 %v3899, %v3936
        %v3963 = vadd.f32 %v3904, %v3936
        %v3964 = vadd.f32 %v3909, %v3936
        %v3965 = vadd.f32 %v3914, %v3936
        %v3966 = vadd.f32 %v3919, %v3936
        %v3967 = vadd.f32 %v3924, %v3936
        %v3968 = vadd.f32 %v3929, %v3936
        %v3969 = vmax.f32 %v3937, 0.0
        %v3970 = vmax.f32 %v3938, 0.0
        %v3971 = vmax.f32 %v3939, 0.0
        %v3972 = vmax.f32 %v3940, 0.0
        %v3973 = vmax.f32 %v3941, 0.0
        %v3974 = vmax.f32 %v3942, 0.0
        %v3975 = vmax.f32 %v3943, 0.0
        %v3976 = vmax.f32 %v3944, 0.0
        %v3977 = vmax.f32 %v3945, 0.0
        %v3978 = vmax.f32 %v3946, 0.0
        %v3979 = vmax.f32 %v3947, 0.0
        %v3980 = vmax.f32 %v3948, 0.0
        %v3981 = vmax.f32 %v3949, 0.0
        %v3982 = vmax.f32 %v3950, 0.0
        %v3983 = vmax.f32 %v3951, 0.0
        %v3984 = vmax.f32 %v3952, 0.0
        %v3985 = vmax.f32 %v3953, 0.0
        %v3986 = vmax.f32 %v3954, 0.0
        %v3987 = vmax.f32 %v3955, 0.0
        %v3988 = vmax.f32 %v3956, 0.0
        %v3989 = vmax.f32 %v3957, 0.0
        %v3990 = vmax.f32 %v3958, 0.0
        %v3991 = vmax.f32 %v3959, 0.0
        %v3992 = vmax.f32 %v3960, 0.0
        %v3993 = vmax.f32 %v3961, 0.0
        %v3994 = vmax.f32 %v3962, 0.0
        %v3995 = vmax.f32 %v3963, 0.0
        %v3996 = vmax.f32 %v3964, 0.0
        %v3997 = vmax.f32 %v3965, 0.0
        %v3998 = vmax.f32 %v3966, 0.0
        %v3999 = vmax.f32 %v3967, 0.0
        %v4000 = vmax.f32 %v3968, 0.0
        %v4001 = vld [vmem:[%s1 + $0x50] sm:$0xff]
        %v4002 = vld [vmem:[%s1 + $0x58] sm:$0xff]
        %v4003 = vld [vmem:[%s1 + $0x60] sm:$0xff]
        %v4004 = vld [vmem:[%s1 + $0x68] sm:$0xff]
        %v4005 = vld [vmem:[%s2 + $0x4] sm:$0x1]
        %v4006 = vlaneseq
        %v4007 = vshrl.u32 %v4006, 7
        %v4008 = vsub.s32 0, %v4007
        %v4009 = vrot.slane %v4005, %v4008
        %v4011 = vsel %vm2342, %v3969, 0
        %v4014 = vsel %vm2342, %v3970, 0
        %v4017 = vsel %vm2342, %v3971, 0
        %v4020 = vsel %vm2342, %v3972, 0
        %v4023 = vsel %vm2342, %v3973, 0
        %v4026 = vsel %vm2342, %v3974, 0
        %v4029 = vsel %vm2342, %v3975, 0
        %v4032 = vsel %vm2342, %v3976, 0
        %v4035 = vsel %vm2342, %v3977, 0
        %v4038 = vsel %vm2342, %v3978, 0
        %v4041 = vsel %vm2342, %v3979, 0
        %v4044 = vsel %vm2342, %v3980, 0
        %v4047 = vsel %vm2342, %v3981, 0
        %v4050 = vsel %vm2342, %v3982, 0
        %v4053 = vsel %vm2342, %v3983, 0
        %v4056 = vsel %vm2342, %v3984, 0
        %v4059 = vsel %vm2342, %v3985, 0
        %v4062 = vsel %vm2342, %v3986, 0
        %v4065 = vsel %vm2342, %v3987, 0
        %v4068 = vsel %vm2342, %v3988, 0
        %v4071 = vsel %vm2342, %v3989, 0
        %v4074 = vsel %vm2342, %v3990, 0
        %v4077 = vsel %vm2342, %v3991, 0
        %v4080 = vsel %vm2342, %v3992, 0
        %v4083 = vsel %vm2342, %v3993, 0
        %v4086 = vsel %vm2342, %v3994, 0
        %v4089 = vsel %vm2342, %v3995, 0
        %v4092 = vsel %vm2342, %v3996, 0
        %v4095 = vsel %vm2342, %v3997, 0
        %v4098 = vsel %vm2342, %v3998, 0
        %v4101 = vsel %vm2342, %v3999, 0
        %v4104 = vsel %vm2342, %v4000, 0
        %4106 = vmatprep.subr.mxu0 0.0
        %4107 = vmatpush1.msra.mxu0 %v4001
        %4108 = vmatprep.subr.mxu0 0.0
        %4109 = vmatpush1.msra.mxu0 %v4002
        %4110 = vmatprep.subr.mxu0 0.0
        %4111 = vmatpush1.msra.mxu0 %v4003
        %4112 = vmatprep.subr.mxu0 0.0
        %4113 = vmatpush1.msra.mxu0 %v4004
        %4114 = vmatprep.subr.mxu0 0.0
        %4115 = vmatpush1.msra.mxu0 0.0
        %4116 = vmatprep.subr.mxu0 0.0
        %4117 = vmatpush1.msra.mxu0 0.0
        %4118 = vmatprep.subr.mxu0 0.0
        %4119 = vmatpush1.msra.mxu0 0.0
        %4120 = vmatprep.subr.mxu0 0.0
        %4121 = vmatpush1.msra.mxu0 0.0
        %4122 = vmatprep.subr.mxu0 0.0
        %4123 = vmatpush1.msra.mxu0 0.0
        %4124 = vmatprep.subr.mxu0 0.0
        %4125 = vmatpush1.msra.mxu0 0.0
        %4126 = vmatprep.subr.mxu0 0.0
        %4127 = vmatpush1.msra.mxu0 0.0
        %4128 = vmatprep.subr.mxu0 0.0
        %4129 = vmatpush1.msra.mxu0 0.0
        %4130 = vmatprep.subr.mxu0 0.0
        %4131 = vmatpush1.msra.mxu0 0.0
        %4132 = vmatprep.subr.mxu0 0.0
        %4133 = vmatpush1.msra.mxu0 0.0
        %4134 = vmatprep.subr.mxu0 0.0
        %4135 = vmatpush1.msra.mxu0 0.0
        %4136 = vmatprep.subr.mxu0 0.0
        %4137 = vmatpush1.msra.mxu0 0.0
        %4138 = vmatprep.subr.mxu0 0.0
        %4139 = vmatpush1.msra.mxu0 0.0
        %4140 = vmatprep.subr.mxu0 0.0
        %4141 = vmatpush1.msra.mxu0 0.0
        %4142 = vmatprep.subr.mxu0 0.0
        %4143 = vmatpush1.msra.mxu0 0.0
        %4144 = vmatprep.subr.mxu0 0.0
        %4145 = vmatpush1.msra.mxu0 0.0
        %4146 = vmatprep.subr.mxu0 0.0
        %4147 = vmatpush1.msra.mxu0 0.0
        %4148 = vmatprep.subr.mxu0 0.0
        %4149 = vmatpush1.msra.mxu0 0.0
        %4150 = vmatprep.subr.mxu0 0.0
        %4151 = vmatpush1.msra.mxu0 0.0
        %4152 = vmatprep.subr.mxu0 0.0
        %4153 = vmatpush1.msra.mxu0 0.0
        %4154 = vmatprep.subr.mxu0 0.0
        %4155 = vmatpush1.msra.mxu0 0.0
        %4156 = vmatprep.subr.mxu0 0.0
        %4157 = vmatpush1.msra.mxu0 0.0
        %4158 = vmatprep.subr.mxu0 0.0
        %4159 = vmatpush1.msra.mxu0 0.0
        %4160 = vmatprep.subr.mxu0 0.0
        %4161 = vmatpush1.msra.mxu0 0.0
        %4162 = vmatprep.subr.mxu0 0.0
        %4163 = vmatpush1.msra.mxu0 0.0
        %4164 = vmatprep.subr.mxu0 0.0
        %4165 = vmatpush1.msra.mxu0 0.0
        %4166 = vmatprep.subr.mxu0 0.0
        %4167 = vmatpush1.msra.mxu0 0.0
        %4168 = vmatprep.subr.mxu0 0.0
        %4169 = vmatpush1.msra.mxu0 0.0
        %4170 = vmatprep.mubr.f32.mxu0 0.0
        %4171 = vmatmul.mubr.f32.gmra.mrb[0].mxu0 %v4011
        %v4172 = vpop.f32.mrb[0].mxu0
        %v4173 = vadd.f32 %v4009, %v4172
        %v4174 = vpop.f32.mrb[0].mxu0
        %4175 = vmatprep.mubr.f32.mxu0 0.0
        %4176 = vmatmul.mubr.f32.gmra.mrb[0].mxu0 %v4014
        %v4177 = vpop.f32.mrb[0].mxu0
        %v4178 = vadd.f32 %v4009, %v4177
        %v4179 = vpop.f32.mrb[0].mxu0
        %4180 = vmatprep.mubr.f32.mxu0 0.0
        %4181 = vmatmul.mubr.f32.gmra.mrb[0].mxu0 %v4017
        %v4182 = vpop.f32.mrb[0].mxu0
        %v4183 = vadd.f32 %v4009, %v4182
        %v4184 = vpop.f32.mrb[0].mxu0
        %4185 = vmatprep.mubr.f32.mxu0 0.0
        %4186 = vmatmul.mubr.f32.gmra.mrb[0].mxu0 %v4020
        %v4187 = vpop.f32.mrb[0].mxu0
        %v4188 = vadd.f32 %v4009, %v4187
        %v4189 = vpop.f32.mrb[0].mxu0
        %4190 = vmatprep.mubr.f32.mxu0 0.0
        %4191 = vmatmul.mubr.f32.gmra.mrb[0].mxu0 %v4023
        %v4192 = vpop.f32.mrb[0].mxu0
        %v4193 = vadd.f32 %v4009, %v4192
        %v4194 = vpop.f32.mrb[0].mxu0
        %4195 = vmatprep.mubr.f32.mxu0 0.0
        %4196 = vmatmul.mubr.f32.gmra.mrb[0].mxu0 %v4026
        %v4197 = vpop.f32.mrb[0].mxu0
        %v4198 = vadd.f32 %v4009, %v4197
        %v4199 = vpop.f32.mrb[0].mxu0
        %4200 = vmatprep.mubr.f32.mxu0 0.0
        %4201 = vmatmul.mubr.f32.gmra.mrb[0].mxu0 %v4029
        %v4202 = vpop.f32.mrb[0].mxu0
        %v4203 = vadd.f32 %v4009, %v4202
        %v4204 = vpop.f32.mrb[0].mxu0
        %4205 = vmatprep.mubr.f32.mxu0 0.0
        %4206 = vmatmul.mubr.f32.gmra.mrb[0].mxu0 %v4032
        %v4207 = vpop.f32.mrb[0].mxu0
        %v4208 = vadd.f32 %v4009, %v4207
        %v4209 = vpop.f32.mrb[0].mxu0
        %4210 = vmatprep.mubr.f32.mxu0 0.0
        %4211 = vmatmul.mubr.f32.gmra.mrb[0].mxu0 %v4035
        %v4212 = vpop.f32.mrb[0].mxu0
        %v4213 = vadd.f32 %v4009, %v4212
        %v4214 = vpop.f32.mrb[0].mxu0
        %4215 = vmatprep.mubr.f32.mxu0 0.0
        %4216 = vmatmul.mubr.f32.gmra.mrb[0].mxu0 %v4038
        %v4217 = vpop.f32.mrb[0].mxu0
        %v4218 = vadd.f32 %v4009, %v4217
        %v4219 = vpop.f32.mrb[0].mxu0
        %4220 = vmatprep.mubr.f32.mxu0 0.0
        %4221 = vmatmul.mubr.f32.gmra.mrb[0].mxu0 %v4041
        %v4222 = vpop.f32.mrb[0].mxu0
        %v4223 = vadd.f32 %v4009, %v4222
        %v4224 = vpop.f32.mrb[0].mxu0
        %4225 = vmatprep.mubr.f32.mxu0 0.0
        %4226 = vmatmul.mubr.f32.gmra.mrb[0].mxu0 %v4044
        %v4227 = vpop.f32.mrb[0].mxu0
        %v4228 = vadd.f32 %v4009, %v4227
        %v4229 = vpop.f32.mrb[0].mxu0
        %4230 = vmatprep.mubr.f32.mxu0 0.0
        %4231 = vmatmul.mubr.f32.gmra.mrb[0].mxu0 %v4047
        %v4232 = vpop.f32.mrb[0].mxu0
        %v4233 = vadd.f32 %v4009, %v4232
        %v4234 = vpop.f32.mrb[0].mxu0
        %4235 = vmatprep.mubr.f32.mxu0 0.0
        %4236 = vmatmul.mubr.f32.gmra.mrb[0].mxu0 %v4050
        %v4237 = vpop.f32.mrb[0].mxu0
        %v4238 = vadd.f32 %v4009, %v4237
        %v4239 = vpop.f32.mrb[0].mxu0
        %4240 = vmatprep.mubr.f32.mxu0 0.0
        %4241 = vmatmul.mubr.f32.gmra.mrb[0].mxu0 %v4053
        %v4242 = vpop.f32.mrb[0].mxu0
        %v4243 = vadd.f32 %v4009, %v4242
        %v4244 = vpop.f32.mrb[0].mxu0
        %4245 = vmatprep.mubr.f32.mxu0 0.0
        %4246 = vmatmul.mubr.f32.gmra.mrb[0].mxu0 %v4056
        %v4247 = vpop.f32.mrb[0].mxu0
        %v4248 = vadd.f32 %v4009, %v4247
        %v4249 = vpop.f32.mrb[0].mxu0
        %4250 = vmatprep.mubr.f32.mxu0 0.0
        %4251 = vmatmul.mubr.f32.gmra.mrb[0].mxu0 %v4059
        %v4252 = vpop.f32.mrb[0].mxu0
        %v4253 = vadd.f32 %v4009, %v4252
        %v4254 = vpop.f32.mrb[0].mxu0
        %4255 = vmatprep.mubr.f32.mxu0 0.0
        %4256 = vmatmul.mubr.f32.gmra.mrb[0].mxu0 %v4062
        %v4257 = vpop.f32.mrb[0].mxu0
        %v4258 = vadd.f32 %v4009, %v4257
        %v4259 = vpop.f32.mrb[0].mxu0
        %4260 = vmatprep.mubr.f32.mxu0 0.0
        %4261 = vmatmul.mubr.f32.gmra.mrb[0].mxu0 %v4065
        %v4262 = vpop.f32.mrb[0].mxu0
        %v4263 = vadd.f32 %v4009, %v4262
        %v4264 = vpop.f32.mrb[0].mxu0
        %4265 = vmatprep.mubr.f32.mxu0 0.0
        %4266 = vmatmul.mubr.f32.gmra.mrb[0].mxu0 %v4068
        %v4267 = vpop.f32.mrb[0].mxu0
        %v4268 = vadd.f32 %v4009, %v4267
        %v4269 = vpop.f32.mrb[0].mxu0
        %4270 = vmatprep.mubr.f32.mxu0 0.0
        %4271 = vmatmul.mubr.f32.gmra.mrb[0].mxu0 %v4071
        %v4272 = vpop.f32.mrb[0].mxu0
        %v4273 = vadd.f32 %v4009, %v4272
        %v4274 = vpop.f32.mrb[0].mxu0
        %4275 = vmatprep.mubr.f32.mxu0 0.0
        %4276 = vmatmul.mubr.f32.gmra.mrb[0].mxu0 %v4074
        %v4277 = vpop.f32.mrb[0].mxu0
        %v4278 = vadd.f32 %v4009, %v4277
        %v4279 = vpop.f32.mrb[0].mxu0
        %4280 = vmatprep.mubr.f32.mxu0 0.0
        %4281 = vmatmul.mubr.f32.gmra.mrb[0].mxu0 %v4077
        %v4282 = vpop.f32.mrb[0].mxu0
        %v4283 = vadd.f32 %v4009, %v4282
        %v4284 = vpop.f32.mrb[0].mxu0
        %4285 = vmatprep.mubr.f32.mxu0 0.0
        %4286 = vmatmul.mubr.f32.gmra.mrb[0].mxu0 %v4080
        %v4287 = vpop.f32.mrb[0].mxu0
        %v4288 = vadd.f32 %v4009, %v4287
        %v4289 = vpop.f32.mrb[0].mxu0
        %4290 = vmatprep.mubr.f32.mxu0 0.0
        %4291 = vmatmul.mubr.f32.gmra.mrb[0].mxu0 %v4083
        %v4292 = vpop.f32.mrb[0].mxu0
        %v4293 = vadd.f32 %v4009, %v4292
        %v4294 = vpop.f32.mrb[0].mxu0
        %4295 = vmatprep.mubr.f32.mxu0 0.0
        %4296 = vmatmul.mubr.f32.gmra.mrb[0].mxu0 %v4086
        %v4297 = vpop.f32.mrb[0].mxu0
        %v4298 = vadd.f32 %v4009, %v4297
        %v4299 = vpop.f32.mrb[0].mxu0
        %4300 = vmatprep.mubr.f32.mxu0 0.0
        %4301 = vmatmul.mubr.f32.gmra.mrb[0].mxu0 %v4089
        %v4302 = vpop.f32.mrb[0].mxu0
        %v4303 = vadd.f32 %v4009, %v4302
        %v4304 = vpop.f32.mrb[0].mxu0
        %4305 = vmatprep.mubr.f32.mxu0 0.0
        %4306 = vmatmul.mubr.f32.gmra.mrb[0].mxu0 %v4092
        %v4307 = vpop.f32.mrb[0].mxu0
        %v4308 = vadd.f32 %v4009, %v4307
        %v4309 = vpop.f32.mrb[0].mxu0
        %4310 = vmatprep.mubr.f32.mxu0 0.0
        %4311 = vmatmul.mubr.f32.gmra.mrb[0].mxu0 %v4095
        %v4312 = vpop.f32.mrb[0].mxu0
        %v4313 = vadd.f32 %v4009, %v4312
        %v4314 = vpop.f32.mrb[0].mxu0
        %4315 = vmatprep.mubr.f32.mxu0 0.0
        %4316 = vmatmul.mubr.f32.gmra.mrb[0].mxu0 %v4098
        %v4317 = vpop.f32.mrb[0].mxu0
        %v4318 = vadd.f32 %v4009, %v4317
        %v4319 = vpop.f32.mrb[0].mxu0
        %4320 = vmatprep.mubr.f32.mxu0 0.0
        %4321 = vmatmul.mubr.f32.gmra.mrb[0].mxu0 %v4101
        %v4322 = vpop.f32.mrb[0].mxu0
        %v4323 = vadd.f32 %v4009, %v4322
        %v4324 = vpop.f32.mrb[0].mxu0
        %4325 = vmatprep.mubr.f32.mxu0 0.0
        %4326 = vmatmul.mubr.f32.gmra.mrb[0].mxu0 %v4104
        %v4327 = vpop.f32.mrb[0].mxu0
        %v4328 = vadd.f32 %v4009, %v4327
        %v4329 = vpop.f32.mrb[0].mxu0
        %4330 = vdwg.mxu0
        %v4331 = vmax.f32 %v4173, 0.0
        %v4332 = vmax.f32 %v4178, 0.0
        %v4333 = vmax.f32 %v4183, 0.0
        %v4334 = vmax.f32 %v4188, 0.0
        %v4335 = vmax.f32 %v4193, 0.0
        %v4336 = vmax.f32 %v4198, 0.0
        %v4337 = vmax.f32 %v4203, 0.0
        %v4338 = vmax.f32 %v4208, 0.0
        %v4339 = vmax.f32 %v4213, 0.0
        %v4340 = vmax.f32 %v4218, 0.0
        %v4341 = vmax.f32 %v4223, 0.0
        %v4342 = vmax.f32 %v4228, 0.0
        %v4343 = vmax.f32 %v4233, 0.0
        %v4344 = vmax.f32 %v4238, 0.0
        %v4345 = vmax.f32 %v4243, 0.0
        %v4346 = vmax.f32 %v4248, 0.0
        %v4347 = vmax.f32 %v4253, 0.0
        %v4348 = vmax.f32 %v4258, 0.0
        %v4349 = vmax.f32 %v4263, 0.0
        %v4350 = vmax.f32 %v4268, 0.0
        %v4351 = vmax.f32 %v4273, 0.0
        %v4352 = vmax.f32 %v4278, 0.0
        %v4353 = vmax.f32 %v4283, 0.0
        %v4354 = vmax.f32 %v4288, 0.0
        %v4355 = vmax.f32 %v4293, 0.0
        %v4356 = vmax.f32 %v4298, 0.0
        %v4357 = vmax.f32 %v4303, 0.0
        %v4358 = vmax.f32 %v4308, 0.0
        %v4359 = vmax.f32 %v4313, 0.0
        %v4360 = vmax.f32 %v4318, 0.0
        %v4361 = vmax.f32 %v4323, 0.0
        %v4362 = vmax.f32 %v4328, 0.0
        %v4363 = vld [vmem:[%s1 + $0x70] sm:$0xff]
        %v4364 = vld [vmem:[%s1 + $0x78] sm:$0xff]
        %v4365 = vld [vmem:[%s1 + $0x80] sm:$0xff]
        %v4366 = vld [vmem:[%s1 + $0x88] sm:$0xff]
        %v4367 = vld [vmem:[%s2 + $0x5] sm:$0x1]
        %v4368 = vlaneseq
        %v4369 = vshrl.u32 %v4368, 7
        %v4370 = vsub.s32 0, %v4369
        %v4371 = vrot.slane %v4367, %v4370
        %v4373 = vsel %vm2342, %v4331, 0
        %v4376 = vsel %vm2342, %v4332, 0
        %v4379 = vsel %vm2342, %v4333, 0
        %v4382 = vsel %vm2342, %v4334, 0
        %v4385 = vsel %vm2342, %v4335, 0
        %v4388 = vsel %vm2342, %v4336, 0
        %v4391 = vsel %vm2342, %v4337, 0
        %v4394 = vsel %vm2342, %v4338, 0
        %v4397 = vsel %vm2342, %v4339, 0
        %v4400 = vsel %vm2342, %v4340, 0
        %v4403 = vsel %vm2342, %v4341, 0
        %v4406 = vsel %vm2342, %v4342, 0
        %v4409 = vsel %vm2342, %v4343, 0
        %v4412 = vsel %vm2342, %v4344, 0
        %v4415 = vsel %vm2342, %v4345, 0
        %v4418 = vsel %vm2342, %v4346, 0
        %v4421 = vsel %vm2342, %v4347, 0
        %v4424 = vsel %vm2342, %v4348, 0
        %v4427 = vsel %vm2342, %v4349, 0
        %v4430 = vsel %vm2342, %v4350, 0
        %v4433 = vsel %vm2342, %v4351, 0
        %v4436 = vsel %vm2342, %v4352, 0
        %v4439 = vsel %vm2342, %v4353, 0
        %v4442 = vsel %vm2342, %v4354, 0
        %v4445 = vsel %vm2342, %v4355, 0
        %v4448 = vsel %vm2342, %v4356, 0
        %v4451 = vsel %vm2342, %v4357, 0
        %v4454 = vsel %vm2342, %v4358, 0
        %v4457 = vsel %vm2342, %v4359, 0
        %v4460 = vsel %vm2342, %v4360, 0
        %v4463 = vsel %vm2342, %v4361, 0
        %v4466 = vsel %vm2342, %v4362, 0
        %4468 = vmatprep.subr.mxu0 0.0
        %4469 = vmatpush1.msra.mxu0 %v4363
        %4470 = vmatprep.subr.mxu0 0.0
        %4471 = vmatpush1.msra.mxu0 %v4364
        %4472 = vmatprep.subr.mxu0 0.0
        %4473 = vmatpush1.msra.mxu0 %v4365
        %4474 = vmatprep.subr.mxu0 0.0
        %4475 = vmatpush1.msra.mxu0 %v4366
        %4476 = vmatprep.subr.mxu0 0.0
        %4477 = vmatpush1.msra.mxu0 0.0
        %4478 = vmatprep.subr.mxu0 0.0
        %4479 = vmatpush1.msra.mxu0 0.0
        %4480 = vmatprep.subr.mxu0 0.0
        %4481 = vmatpush1.msra.mxu0 0.0
        %4482 = vmatprep.subr.mxu0 0.0
        %4483 = vmatpush1.msra.mxu0 0.0
        %4484 = vmatprep.subr.mxu0 0.0
        %4485 = vmatpush1.msra.mxu0 0.0
        %4486 = vmatprep.subr.mxu0 0.0
        %4487 = vmatpush1.msra.mxu0 0.0
        %4488 = vmatprep.subr.mxu0 0.0
        %4489 = vmatpush1.msra.mxu0 0.0
        %4490 = vmatprep.subr.mxu0 0.0
        %4491 = vmatpush1.msra.mxu0 0.0
        %4492 = vmatprep.subr.mxu0 0.0
        %4493 = vmatpush1.msra.mxu0 0.0
        %4494 = vmatprep.subr.mxu0 0.0
        %4495 = vmatpush1.msra.mxu0 0.0
        %4496 = vmatprep.subr.mxu0 0.0
        %4497 = vmatpush1.msra.mxu0 0.0
        %4498 = vmatprep.subr.mxu0 0.0
        %4499 = vmatpush1.msra.mxu0 0.0
        %4500 = vmatprep.subr.mxu0 0.0
        %4501 = vmatpush1.msra.mxu0 0.0
        %4502 = vmatprep.subr.mxu0 0.0
        %4503 = vmatpush1.msra.mxu0 0.0
        %4504 = vmatprep.subr.mxu0 0.0
        %4505 = vmatpush1.msra.mxu0 0.0
        %4506 = vmatprep.subr.mxu0 0.0
        %4507 = vmatpush1.msra.mxu0 0.0
        %4508 = vmatprep.subr.mxu0 0.0
        %4509 = vmatpush1.msra.mxu0 0.0
        %4510 = vmatprep.subr.mxu0 0.0
        %4511 = vmatpush1.msra.mxu0 0.0
        %4512 = vmatprep.subr.mxu0 0.0
        %4513 = vmatpush1.msra.mxu0 0.0
        %4514 = vmatprep.subr.mxu0 0.0
        %4515 = vmatpush1.msra.mxu0 0.0
        %4516 = vmatprep.subr.mxu0 0.0
        %4517 = vmatpush1.msra.mxu0 0.0
        %4518 = vmatprep.subr.mxu0 0.0
        %4519 = vmatpush1.msra.mxu0 0.0
        %4520 = vmatprep.subr.mxu0 0.0
        %4521 = vmatpush1.msra.mxu0 0.0
        %4522 = vmatprep.subr.mxu0 0.0
        %4523 = vmatpush1.msra.mxu0 0.0
        %4524 = vmatprep.subr.mxu0 0.0
        %4525 = vmatpush1.msra.mxu0 0.0
        %4526 = vmatprep.subr.mxu0 0.0
        %4527 = vmatpush1.msra.mxu0 0.0
        %4528 = vmatprep.subr.mxu0 0.0
        %4529 = vmatpush1.msra.mxu0 0.0
        %4530 = vmatprep.subr.mxu0 0.0
        %4531 = vmatpush1.msra.mxu0 0.0
        %4532 = vmatprep.mubr.f32.mxu0 0.0
        %4533 = vmatmul.mubr.f32.gmra.mrb[0].mxu0 %v4373
        %v4534 = vpop.f32.mrb[0].mxu0
        %v4535 = vadd.f32 %v4371, %v4534
        %v4536 = vpop.f32.mrb[0].mxu0
        %4537 = vmatprep.mubr.f32.mxu0 0.0
        %4538 = vmatmul.mubr.f32.gmra.mrb[0].mxu0 %v4376
        %v4539 = vpop.f32.mrb[0].mxu0
        %v4540 = vadd.f32 %v4371, %v4539
        %v4541 = vpop.f32.mrb[0].mxu0
        %4542 = vmatprep.mubr.f32.mxu0 0.0
        %4543 = vmatmul.mubr.f32.gmra.mrb[0].mxu0 %v4379
        %v4544 = vpop.f32.mrb[0].mxu0
        %v4545 = vadd.f32 %v4371, %v4544
        %v4546 = vpop.f32.mrb[0].mxu0
        %4547 = vmatprep.mubr.f32.mxu0 0.0
        %4548 = vmatmul.mubr.f32.gmra.mrb[0].mxu0 %v4382
        %v4549 = vpop.f32.mrb[0].mxu0
        %v4550 = vadd.f32 %v4371, %v4549
        %v4551 = vpop.f32.mrb[0].mxu0
        %4552 = vmatprep.mubr.f32.mxu0 0.0
        %4553 = vmatmul.mubr.f32.gmra.mrb[0].mxu0 %v4385
        %v4554 = vpop.f32.mrb[0].mxu0
        %v4555 = vadd.f32 %v4371, %v4554
        %v4556 = vpop.f32.mrb[0].mxu0
        %4557 = vmatprep.mubr.f32.mxu0 0.0
        %4558 = vmatmul.mubr.f32.gmra.mrb[0].mxu0 %v4388
        %v4559 = vpop.f32.mrb[0].mxu0
        %v4560 = vadd.f32 %v4371, %v4559
        %v4561 = vpop.f32.mrb[0].mxu0
        %4562 = vmatprep.mubr.f32.mxu0 0.0
        %4563 = vmatmul.mubr.f32.gmra.mrb[0].mxu0 %v4391
        %v4564 = vpop.f32.mrb[0].mxu0
        %v4565 = vadd.f32 %v4371, %v4564
        %v4566 = vpop.f32.mrb[0].mxu0
        %4567 = vmatprep.mubr.f32.mxu0 0.0
        %4568 = vmatmul.mubr.f32.gmra.mrb[0].mxu0 %v4394
        %v4569 = vpop.f32.mrb[0].mxu0
        %v4570 = vadd.f32 %v4371, %v4569
        %v4571 = vpop.f32.mrb[0].mxu0
        %4572 = vmatprep.mubr.f32.mxu0 0.0
        %4573 = vmatmul.mubr.f32.gmra.mrb[0].mxu0 %v4397
        %v4574 = vpop.f32.mrb[0].mxu0
        %v4575 = vadd.f32 %v4371, %v4574
        %v4576 = vpop.f32.mrb[0].mxu0
        %4577 = vmatprep.mubr.f32.mxu0 0.0
        %4578 = vmatmul.mubr.f32.gmra.mrb[0].mxu0 %v4400
        %v4579 = vpop.f32.mrb[0].mxu0
        %v4580 = vadd.f32 %v4371, %v4579
        %v4581 = vpop.f32.mrb[0].mxu0
        %4582 = vmatprep.mubr.f32.mxu0 0.0
        %4583 = vmatmul.mubr.f32.gmra.mrb[0].mxu0 %v4403
        %v4584 = vpop.f32.mrb[0].mxu0
        %v4585 = vadd.f32 %v4371, %v4584
        %v4586 = vpop.f32.mrb[0].mxu0
        %4587 = vmatprep.mubr.f32.mxu0 0.0
        %4588 = vmatmul.mubr.f32.gmra.mrb[0].mxu0 %v4406
        %v4589 = vpop.f32.mrb[0].mxu0
        %v4590 = vadd.f32 %v4371, %v4589
        %v4591 = vpop.f32.mrb[0].mxu0
        %4592 = vmatprep.mubr.f32.mxu0 0.0
        %4593 = vmatmul.mubr.f32.gmra.mrb[0].mxu0 %v4409
        %v4594 = vpop.f32.mrb[0].mxu0
        %v4595 = vadd.f32 %v4371, %v4594
        %v4596 = vpop.f32.mrb[0].mxu0
        %4597 = vmatprep.mubr.f32.mxu0 0.0
        %4598 = vmatmul.mubr.f32.gmra.mrb[0].mxu0 %v4412
        %v4599 = vpop.f32.mrb[0].mxu0
        %v4600 = vadd.f32 %v4371, %v4599
        %v4601 = vpop.f32.mrb[0].mxu0
        %4602 = vmatprep.mubr.f32.mxu0 0.0
        %4603 = vmatmul.mubr.f32.gmra.mrb[0].mxu0 %v4415
        %v4604 = vpop.f32.mrb[0].mxu0
        %v4605 = vadd.f32 %v4371, %v4604
        %v4606 = vpop.f32.mrb[0].mxu0
        %4607 = vmatprep.mubr.f32.mxu0 0.0
        %4608 = vmatmul.mubr.f32.gmra.mrb[0].mxu0 %v4418
        %v4609 = vpop.f32.mrb[0].mxu0
        %v4610 = vadd.f32 %v4371, %v4609
        %v4611 = vpop.f32.mrb[0].mxu0
        %4612 = vmatprep.mubr.f32.mxu0 0.0
        %4613 = vmatmul.mubr.f32.gmra.mrb[0].mxu0 %v4421
        %v4614 = vpop.f32.mrb[0].mxu0
        %v4615 = vadd.f32 %v4371, %v4614
        %v4616 = vpop.f32.mrb[0].mxu0
        %4617 = vmatprep.mubr.f32.mxu0 0.0
        %4618 = vmatmul.mubr.f32.gmra.mrb[0].mxu0 %v4424
        %v4619 = vpop.f32.mrb[0].mxu0
        %v4620 = vadd.f32 %v4371, %v4619
        %v4621 = vpop.f32.mrb[0].mxu0
        %4622 = vmatprep.mubr.f32.mxu0 0.0
        %4623 = vmatmul.mubr.f32.gmra.mrb[0].mxu0 %v4427
        %v4624 = vpop.f32.mrb[0].mxu0
        %v4625 = vadd.f32 %v4371, %v4624
        %v4626 = vpop.f32.mrb[0].mxu0
        %4627 = vmatprep.mubr.f32.mxu0 0.0
        %4628 = vmatmul.mubr.f32.gmra.mrb[0].mxu0 %v4430
        %v4629 = vpop.f32.mrb[0].mxu0
        %v4630 = vadd.f32 %v4371, %v4629
        %v4631 = vpop.f32.mrb[0].mxu0
        %4632 = vmatprep.mubr.f32.mxu0 0.0
        %4633 = vmatmul.mubr.f32.gmra.mrb[0].mxu0 %v4433
        %v4634 = vpop.f32.mrb[0].mxu0
        %v4635 = vadd.f32 %v4371, %v4634
        %v4636 = vpop.f32.mrb[0].mxu0
        %4637 = vmatprep.mubr.f32.mxu0 0.0
        %4638 = vmatmul.mubr.f32.gmra.mrb[0].mxu0 %v4436
        %v4639 = vpop.f32.mrb[0].mxu0
        %v4640 = vadd.f32 %v4371, %v4639
        %v4641 = vpop.f32.mrb[0].mxu0
        %4642 = vmatprep.mubr.f32.mxu0 0.0
        %4643 = vmatmul.mubr.f32.gmra.mrb[0].mxu0 %v4439
        %v4644 = vpop.f32.mrb[0].mxu0
        %v4645 = vadd.f32 %v4371, %v4644
        %v4646 = vpop.f32.mrb[0].mxu0
        %4647 = vmatprep.mubr.f32.mxu0 0.0
        %4648 = vmatmul.mubr.f32.gmra.mrb[0].mxu0 %v4442
        %v4649 = vpop.f32.mrb[0].mxu0
        %v4650 = vadd.f32 %v4371, %v4649
        %v4651 = vpop.f32.mrb[0].mxu0
        %4652 = vmatprep.mubr.f32.mxu0 0.0
        %4653 = vmatmul.mubr.f32.gmra.mrb[0].mxu0 %v4445
        %v4654 = vpop.f32.mrb[0].mxu0
        %v4655 = vadd.f32 %v4371, %v4654
        %v4656 = vpop.f32.mrb[0].mxu0
        %4657 = vmatprep.mubr.f32.mxu0 0.0
        %4658 = vmatmul.mubr.f32.gmra.mrb[0].mxu0 %v4448
        %v4659 = vpop.f32.mrb[0].mxu0
        %v4660 = vadd.f32 %v4371, %v4659
        %v4661 = vpop.f32.mrb[0].mxu0
        %4662 = vmatprep.mubr.f32.mxu0 0.0
        %4663 = vmatmul.mubr.f32.gmra.mrb[0].mxu0 %v4451
        %v4664 = vpop.f32.mrb[0].mxu0
        %v4665 = vadd.f32 %v4371, %v4664
        %v4666 = vpop.f32.mrb[0].mxu0
        %4667 = vmatprep.mubr.f32.mxu0 0.0
        %4668 = vmatmul.mubr.f32.gmra.mrb[0].mxu0 %v4454
        %v4669 = vpop.f32.mrb[0].mxu0
        %v4670 = vadd.f32 %v4371, %v4669
        %v4671 = vpop.f32.mrb[0].mxu0
        %4672 = vmatprep.mubr.f32.mxu0 0.0
        %4673 = vmatmul.mubr.f32.gmra.mrb[0].mxu0 %v4457
        %v4674 = vpop.f32.mrb[0].mxu0
        %v4675 = vadd.f32 %v4371, %v4674
        %v4676 = vpop.f32.mrb[0].mxu0
        %4677 = vmatprep.mubr.f32.mxu0 0.0
        %4678 = vmatmul.mubr.f32.gmra.mrb[0].mxu0 %v4460
        %v4679 = vpop.f32.mrb[0].mxu0
        %v4680 = vadd.f32 %v4371, %v4679
        %v4681 = vpop.f32.mrb[0].mxu0
        %4682 = vmatprep.mubr.f32.mxu0 0.0
        %4683 = vmatmul.mubr.f32.gmra.mrb[0].mxu0 %v4463
        %v4684 = vpop.f32.mrb[0].mxu0
        %v4685 = vadd.f32 %v4371, %v4684
        %v4686 = vpop.f32.mrb[0].mxu0
        %4687 = vmatprep.mubr.f32.mxu0 0.0
        %4688 = vmatmul.mubr.f32.gmra.mrb[0].mxu0 %v4466
        %v4689 = vpop.f32.mrb[0].mxu0
        %v4690 = vadd.f32 %v4371, %v4689
        %v4691 = vpop.f32.mrb[0].mxu0
        %4692 = vdwg.mxu0
        %v4693 = vmax.f32 %v4535, 0.0
        %v4694 = vmax.f32 %v4540, 0.0
        %v4695 = vmax.f32 %v4545, 0.0
        %v4696 = vmax.f32 %v4550, 0.0
        %v4697 = vmax.f32 %v4555, 0.0
        %v4698 = vmax.f32 %v4560, 0.0
        %v4699 = vmax.f32 %v4565, 0.0
        %v4700 = vmax.f32 %v4570, 0.0
        %v4701 = vmax.f32 %v4575, 0.0
        %v4702 = vmax.f32 %v4580, 0.0
        %v4703 = vmax.f32 %v4585, 0.0
        %v4704 = vmax.f32 %v4590, 0.0
        %v4705 = vmax.f32 %v4595, 0.0
        %v4706 = vmax.f32 %v4600, 0.0
        %v4707 = vmax.f32 %v4605, 0.0
        %v4708 = vmax.f32 %v4610, 0.0
        %v4709 = vmax.f32 %v4615, 0.0
        %v4710 = vmax.f32 %v4620, 0.0
        %v4711 = vmax.f32 %v4625, 0.0
        %v4712 = vmax.f32 %v4630, 0.0
        %v4713 = vmax.f32 %v4635, 0.0
        %v4714 = vmax.f32 %v4640, 0.0
        %v4715 = vmax.f32 %v4645, 0.0
        %v4716 = vmax.f32 %v4650, 0.0
        %v4717 = vmax.f32 %v4655, 0.0
        %v4718 = vmax.f32 %v4660, 0.0
        %v4719 = vmax.f32 %v4665, 0.0
        %v4720 = vmax.f32 %v4670, 0.0
        %v4721 = vmax.f32 %v4675, 0.0
        %v4722 = vmax.f32 %v4680, 0.0
        %v4723 = vmax.f32 %v4685, 0.0
        %v4724 = vmax.f32 %v4690, 0.0
        %v4725 = vsel %vm2926, %v4693, -inf
        %v4726 = vrot.slane %v4725, 4
        %v4727 = vmax.f32 %v4725, %v4726
        %v4728 = vrot.slane %v4727, 2
        %v4729 = vmax.f32 %v4727, %v4728
        %v4730 = vrot.slane %v4729, 1
        %v4731 = vmax.f32 %v4729, %v4730
        %v4732 = vsel %vm2926, %v4694, -inf
        %v4733 = vrot.slane %v4732, 4
        %v4734 = vmax.f32 %v4732, %v4733
        %v4735 = vrot.slane %v4734, 2
        %v4736 = vmax.f32 %v4734, %v4735
        %v4737 = vrot.slane %v4736, 1
        %v4738 = vmax.f32 %v4736, %v4737
        %v4739 = vsel %vm2926, %v4695, -inf
        %v4740 = vrot.slane %v4739, 4
        %v4741 = vmax.f32 %v4739, %v4740
        %v4742 = vrot.slane %v4741, 2
        %v4743 = vmax.f32 %v4741, %v4742
        %v4744 = vrot.slane %v4743, 1
        %v4745 = vmax.f32 %v4743, %v4744
        %v4746 = vsel %vm2926, %v4696, -inf
        %v4747 = vrot.slane %v4746, 4
        %v4748 = vmax.f32 %v4746, %v4747
        %v4749 = vrot.slane %v4748, 2
        %v4750 = vmax.f32 %v4748, %v4749
        %v4751 = vrot.slane %v4750, 1
        %v4752 = vmax.f32 %v4750, %v4751
        %v4753 = vsel %vm2926, %v4697, -inf
        %v4754 = vrot.slane %v4753, 4
        %v4755 = vmax.f32 %v4753, %v4754
        %v4756 = vrot.slane %v4755, 2
        %v4757 = vmax.f32 %v4755, %v4756
        %v4758 = vrot.slane %v4757, 1
        %v4759 = vmax.f32 %v4757, %v4758
        %v4760 = vsel %vm2926, %v4698, -inf
        %v4761 = vrot.slane %v4760, 4
        %v4762 = vmax.f32 %v4760, %v4761
        %v4763 = vrot.slane %v4762, 2
        %v4764 = vmax.f32 %v4762, %v4763
        %v4765 = vrot.slane %v4764, 1
        %v4766 = vmax.f32 %v4764, %v4765
        %v4767 = vsel %vm2926, %v4699, -inf
        %v4768 = vrot.slane %v4767, 4
        %v4769 = vmax.f32 %v4767, %v4768
        %v4770 = vrot.slane %v4769, 2
        %v4771 = vmax.f32 %v4769, %v4770
        %v4772 = vrot.slane %v4771, 1
        %v4773 = vmax.f32 %v4771, %v4772
        %v4774 = vsel %vm2926, %v4700, -inf
        %v4775 = vrot.slane %v4774, 4
        %v4776 = vmax.f32 %v4774, %v4775
        %v4777 = vrot.slane %v4776, 2
        %v4778 = vmax.f32 %v4776, %v4777
        %v4779 = vrot.slane %v4778, 1
        %v4780 = vmax.f32 %v4778, %v4779
        %v4781 = vsel %vm2926, %v4701, -inf
        %v4782 = vrot.slane %v4781, 4
        %v4783 = vmax.f32 %v4781, %v4782
        %v4784 = vrot.slane %v4783, 2
        %v4785 = vmax.f32 %v4783, %v4784
        %v4786 = vrot.slane %v4785, 1
        %v4787 = vmax.f32 %v4785, %v4786
        %v4788 = vsel %vm2926, %v4702, -inf
        %v4789 = vrot.slane %v4788, 4
        %v4790 = vmax.f32 %v4788, %v4789
        %v4791 = vrot.slane %v4790, 2
        %v4792 = vmax.f32 %v4790, %v4791
        %v4793 = vrot.slane %v4792, 1
        %v4794 = vmax.f32 %v4792, %v4793
        %v4795 = vsel %vm2926, %v4703, -inf
        %v4796 = vrot.slane %v4795, 4
        %v4797 = vmax.f32 %v4795, %v4796
        %v4798 = vrot.slane %v4797, 2
        %v4799 = vmax.f32 %v4797, %v4798
        %v4800 = vrot.slane %v4799, 1
        %v4801 = vmax.f32 %v4799, %v4800
        %v4802 = vsel %vm2926, %v4704, -inf
        %v4803 = vrot.slane %v4802, 4
        %v4804 = vmax.f32 %v4802, %v4803
        %v4805 = vrot.slane %v4804, 2
        %v4806 = vmax.f32 %v4804, %v4805
        %v4807 = vrot.slane %v4806, 1
        %v4808 = vmax.f32 %v4806, %v4807
        %v4809 = vsel %vm2926, %v4705, -inf
        %v4810 = vrot.slane %v4809, 4
        %v4811 = vmax.f32 %v4809, %v4810
        %v4812 = vrot.slane %v4811, 2
        %v4813 = vmax.f32 %v4811, %v4812
        %v4814 = vrot.slane %v4813, 1
        %v4815 = vmax.f32 %v4813, %v4814
        %v4816 = vsel %vm2926, %v4706, -inf
        %v4817 = vrot.slane %v4816, 4
        %v4818 = vmax.f32 %v4816, %v4817
        %v4819 = vrot.slane %v4818, 2
        %v4820 = vmax.f32 %v4818, %v4819
        %v4821 = vrot.slane %v4820, 1
        %v4822 = vmax.f32 %v4820, %v4821
        %v4823 = vsel %vm2926, %v4707, -inf
        %v4824 = vrot.slane %v4823, 4
        %v4825 = vmax.f32 %v4823, %v4824
        %v4826 = vrot.slane %v4825, 2
        %v4827 = vmax.f32 %v4825, %v4826
        %v4828 = vrot.slane %v4827, 1
        %v4829 = vmax.f32 %v4827, %v4828
        %v4830 = vsel %vm2926, %v4708, -inf
        %v4831 = vrot.slane %v4830, 4
        %v4832 = vmax.f32 %v4830, %v4831
        %v4833 = vrot.slane %v4832, 2
        %v4834 = vmax.f32 %v4832, %v4833
        %v4835 = vrot.slane %v4834, 1
        %v4836 = vmax.f32 %v4834, %v4835
        %v4837 = vsel %vm2926, %v4709, -inf
        %v4838 = vrot.slane %v4837, 4
        %v4839 = vmax.f32 %v4837, %v4838
        %v4840 = vrot.slane %v4839, 2
        %v4841 = vmax.f32 %v4839, %v4840
        %v4842 = vrot.slane %v4841, 1
        %v4843 = vmax.f32 %v4841, %v4842
        %v4844 = vsel %vm2926, %v4710, -inf
        %v4845 = vrot.slane %v4844, 4
        %v4846 = vmax.f32 %v4844, %v4845
        %v4847 = vrot.slane %v4846, 2
        %v4848 = vmax.f32 %v4846, %v4847
        %v4849 = vrot.slane %v4848, 1
        %v4850 = vmax.f32 %v4848, %v4849
        %v4851 = vsel %vm2926, %v4711, -inf
        %v4852 = vrot.slane %v4851, 4
        %v4853 = vmax.f32 %v4851, %v4852
        %v4854 = vrot.slane %v4853, 2
        %v4855 = vmax.f32 %v4853, %v4854
        %v4856 = vrot.slane %v4855, 1
        %v4857 = vmax.f32 %v4855, %v4856
        %v4858 = vsel %vm2926, %v4712, -inf
        %v4859 = vrot.slane %v4858, 4
        %v4860 = vmax.f32 %v4858, %v4859
        %v4861 = vrot.slane %v4860, 2
        %v4862 = vmax.f32 %v4860, %v4861
        %v4863 = vrot.slane %v4862, 1
        %v4864 = vmax.f32 %v4862, %v4863
        %v4865 = vsel %vm2926, %v4713, -inf
        %v4866 = vrot.slane %v4865, 4
        %v4867 = vmax.f32 %v4865, %v4866
        %v4868 = vrot.slane %v4867, 2
        %v4869 = vmax.f32 %v4867, %v4868
        %v4870 = vrot.slane %v4869, 1
        %v4871 = vmax.f32 %v4869, %v4870
        %v4872 = vsel %vm2926, %v4714, -inf
        %v4873 = vrot.slane %v4872, 4
        %v4874 = vmax.f32 %v4872, %v4873
        %v4875 = vrot.slane %v4874, 2
        %v4876 = vmax.f32 %v4874, %v4875
        %v4877 = vrot.slane %v4876, 1
        %v4878 = vmax.f32 %v4876, %v4877
        %v4879 = vsel %vm2926, %v4715, -inf
        %v4880 = vrot.slane %v4879, 4
        %v4881 = vmax.f32 %v4879, %v4880
        %v4882 = vrot.slane %v4881, 2
        %v4883 = vmax.f32 %v4881, %v4882
        %v4884 = vrot.slane %v4883, 1
        %v4885 = vmax.f32 %v4883, %v4884
        %v4886 = vsel %vm2926, %v4716, -inf
        %v4887 = vrot.slane %v4886, 4
        %v4888 = vmax.f32 %v4886, %v4887
        %v4889 = vrot.slane %v4888, 2
        %v4890 = vmax.f32 %v4888, %v4889
        %v4891 = vrot.slane %v4890, 1
        %v4892 = vmax.f32 %v4890, %v4891
        %v4893 = vsel %vm2926, %v4717, -inf
        %v4894 = vrot.slane %v4893, 4
        %v4895 = vmax.f32 %v4893, %v4894
        %v4896 = vrot.slane %v4895, 2
        %v4897 = vmax.f32 %v4895, %v4896
        %v4898 = vrot.slane %v4897, 1
        %v4899 = vmax.f32 %v4897, %v4898
        %v4900 = vsel %vm2926, %v4718, -inf
        %v4901 = vrot.slane %v4900, 4
        %v4902 = vmax.f32 %v4900, %v4901
        %v4903 = vrot.slane %v4902, 2
        %v4904 = vmax.f32 %v4902, %v4903
        %v4905 = vrot.slane %v4904, 1
        %v4906 = vmax.f32 %v4904, %v4905
        %v4907 = vsel %vm2926, %v4719, -inf
        %v4908 = vrot.slane %v4907, 4
        %v4909 = vmax.f32 %v4907, %v4908
        %v4910 = vrot.slane %v4909, 2
        %v4911 = vmax.f32 %v4909, %v4910
        %v4912 = vrot.slane %v4911, 1
        %v4913 = vmax.f32 %v4911, %v4912
        %v4914 = vsel %vm2926, %v4720, -inf
        %v4915 = vrot.slane %v4914, 4
        %v4916 = vmax.f32 %v4914, %v4915
        %v4917 = vrot.slane %v4916, 2
        %v4918 = vmax.f32 %v4916, %v4917
        %v4919 = vrot.slane %v4918, 1
        %v4920 = vmax.f32 %v4918, %v4919
        %v4921 = vsel %vm2926, %v4721, -inf
        %v4922 = vrot.slane %v4921, 4
        %v4923 = vmax.f32 %v4921, %v4922
        %v4924 = vrot.slane %v4923, 2
        %v4925 = vmax.f32 %v4923, %v4924
        %v4926 = vrot.slane %v4925, 1
        %v4927 = vmax.f32 %v4925, %v4926
        %v4928 = vsel %vm2926, %v4722, -inf
        %v4929 = vrot.slane %v4928, 4
        %v4930 = vmax.f32 %v4928, %v4929
        %v4931 = vrot.slane %v4930, 2
        %v4932 = vmax.f32 %v4930, %v4931
        %v4933 = vrot.slane %v4932, 1
        %v4934 = vmax.f32 %v4932, %v4933
        %v4935 = vsel %vm2926, %v4723, -inf
        %v4936 = vrot.slane %v4935, 4
        %v4937 = vmax.f32 %v4935, %v4936
        %v4938 = vrot.slane %v4937, 2
        %v4939 = vmax.f32 %v4937, %v4938
        %v4940 = vrot.slane %v4939, 1
        %v4941 = vmax.f32 %v4939, %v4940
        %v4942 = vsel %vm2926, %v4724, -inf
        %v4943 = vrot.slane %v4942, 4
        %v4944 = vmax.f32 %v4942, %v4943
        %v4945 = vrot.slane %v4944, 2
        %v4946 = vmax.f32 %v4944, %v4945
        %v4947 = vrot.slane %v4946, 1
        %v4948 = vmax.f32 %v4946, %v4947
        %v4949 = vld [vmem:[%s1 + $0x90] sm:$0x7]
        %v4950 = vld [vmem:[%s1 + $0x98] sm:$0xff]
        %v4951 = vld [vmem:[%s1 + $0xa0] sm:$0xff]
        %v4952 = vld [vmem:[%s1 + $0xa8] sm:$0xff]
        %v4953 = vld [vmem:[%s1 + $0xb0] sm:$0xff]
        %v4954 = vld [vmem:[%s1 + $0xb8] sm:$0xff]
        %v4955 = vld [vmem:[%s1 + $0xc0] sm:$0xff]
        %v4956 = vld [vmem:[%s1 + $0xc8] sm:$0xff]
        %v4957 = vld [vmem:[%s1 + $0xd0] sm:$0xff]
        %v4990 = vsel %vm2855, %v4738, %v4731
        %v4991 = vsel %vm2857, %v4745, %v4990
        %v4992 = vsel %vm2859, %v4752, %v4991
        %v4993 = vsel %vm2861, %v4759, %v4992
        %v4994 = vsel %vm2863, %v4766, %v4993
        %v4995 = vsel %vm2865, %v4773, %v4994
        %v4996 = vsel %vm2867, %v4780, %v4995
        %v4997 = vsel %vm2855, %v4794, %v4787
        %v4998 = vsel %vm2857, %v4801, %v4997
        %v4999 = vsel %vm2859, %v4808, %v4998
        %v5000 = vsel %vm2861, %v4815, %v4999
        %v5001 = vsel %vm2863, %v4822, %v5000
        %v5002 = vsel %vm2865, %v4829, %v5001
        %v5003 = vsel %vm2867, %v4836, %v5002
        %v5004 = vsel %vm2855, %v4850, %v4843
        %v5005 = vsel %vm2857, %v4857, %v5004
        %v5006 = vsel %vm2859, %v4864, %v5005
        %v5007 = vsel %vm2861, %v4871, %v5006
        %v5008 = vsel %vm2863, %v4878, %v5007
        %v5009 = vsel %vm2865, %v4885, %v5008
        %v5010 = vsel %vm2867, %v4892, %v5009
        %v5011 = vsel %vm2855, %v4906, %v4899
        %v5012 = vsel %vm2857, %v4913, %v5011
        %v5013 = vsel %vm2859, %v4920, %v5012
        %v5014 = vsel %vm2861, %v4927, %v5013
        %v5015 = vsel %vm2863, %v4934, %v5014
        %v5016 = vsel %vm2865, %v4941, %v5015
        %v5017 = vsel %vm2867, %v4948, %v5016
        %v5018 = vsel %vm2926, %v4996, 0
        %v5020 = vsel %vm2926, %v5003, 0
        %v5022 = vsel %vm2926, %v5010, 0
        %v5024 = vsel %vm2926, %v5017, 0
        %5026 = vmatprep.subr.mxu0 0.0
        %5027 = vmatpush1.msra.mxu0 %v4950
        %5028 = vmatprep.subr.mxu0 0.0
        %5029 = vmatpush1.msra.mxu0 %v4951
        %5030 = vmatprep.subr.mxu0 0.0
        %5031 = vmatpush1.msra.mxu0 %v4952
        %5032 = vmatprep.subr.mxu0 0.0
        %5033 = vmatpush1.msra.mxu0 %v4953
        %5034 = vmatprep.subr.mxu0 0.0
        %5035 = vmatpush1.msra.mxu0 %v4954
        %5036 = vmatprep.subr.mxu0 0.0
        %5037 = vmatpush1.msra.mxu0 %v4955
        %5038 = vmatprep.subr.mxu0 0.0
        %5039 = vmatpush1.msra.mxu0 %v4956
        %5040 = vmatprep.subr.mxu0 0.0
        %5041 = vmatpush1.msra.mxu0 %v4957
        %5042 = vmatprep.subr.mxu0 0.0
        %5043 = vmatpush1.msra.mxu0 0.0
        %5044 = vmatprep.subr.mxu0 0.0
        %5045 = vmatpush1.msra.mxu0 0.0
        %5046 = vmatprep.subr.mxu0 0.0
        %5047 = vmatpush1.msra.mxu0 0.0
        %5048 = vmatprep.subr.mxu0 0.0
        %5049 = vmatpush1.msra.mxu0 0.0
        %5050 = vmatprep.subr.mxu0 0.0
        %5051 = vmatpush1.msra.mxu0 0.0
        %5052 = vmatprep.subr.mxu0 0.0
        %5053 = vmatpush1.msra.mxu0 0.0
        %5054 = vmatprep.subr.mxu0 0.0
        %5055 = vmatpush1.msra.mxu0 0.0
        %5056 = vmatprep.subr.mxu0 0.0
        %5057 = vmatpush1.msra.mxu0 0.0
        %5058 = vmatprep.subr.mxu0 0.0
        %5059 = vmatpush1.msra.mxu0 0.0
        %5060 = vmatprep.subr.mxu0 0.0
        %5061 = vmatpush1.msra.mxu0 0.0
        %5062 = vmatprep.subr.mxu0 0.0
        %5063 = vmatpush1.msra.mxu0 0.0
        %5064 = vmatprep.subr.mxu0 0.0
        %5065 = vmatpush1.msra.mxu0 0.0
        %5066 = vmatprep.subr.mxu0 0.0
        %5067 = vmatpush1.msra.mxu0 0.0
        %5068 = vmatprep.subr.mxu0 0.0
        %5069 = vmatpush1.msra.mxu0 0.0
        %5070 = vmatprep.subr.mxu0 0.0
        %5071 = vmatpush1.msra.mxu0 0.0
        %5072 = vmatprep.subr.mxu0 0.0
        %5073 = vmatpush1.msra.mxu0 0.0
        %5074 = vmatprep.subr.mxu0 0.0
        %5075 = vmatpush1.msra.mxu0 0.0
        %5076 = vmatprep.subr.mxu0 0.0
        %5077 = vmatpush1.msra.mxu0 0.0
        %5078 = vmatprep.subr.mxu0 0.0
        %5079 = vmatpush1.msra.mxu0 0.0
        %5080 = vmatprep.subr.mxu0 0.0
        %5081 = vmatpush1.msra.mxu0 0.0
        %5082 = vmatprep.subr.mxu0 0.0
        %5083 = vmatpush1.msra.mxu0 0.0
        %5084 = vmatprep.subr.mxu0 0.0
        %5085 = vmatpush1.msra.mxu0 0.0
        %5086 = vmatprep.subr.mxu0 0.0
        %5087 = vmatpush1.msra.mxu0 0.0
        %5088 = vmatprep.subr.mxu0 0.0
        %5089 = vmatpush1.msra.mxu0 0.0
        %5090 = vmatprep.mubr.f32.mxu0 0.0
        %5091 = vmatmul.mubr.f32.gmra.mrb[0].mxu0 %v5018
        %v5092 = vpop.f32.mrb[0].mxu0
        %v5093 = vadd.f32 0.0, %v5092
        %v5094 = vpop.f32.mrb[0].mxu0
        %5095 = vmatprep.mubr.f32.mxu0 0.0
        %5096 = vmatmul.mubr.f32.gmra.mrb[0].mxu0 %v5020
        %v5097 = vpop.f32.mrb[0].mxu0
        %v5098 = vadd.f32 0.0, %v5097
        %v5099 = vpop.f32.mrb[0].mxu0
        %5100 = vmatprep.mubr.f32.mxu0 0.0
        %5101 = vmatmul.mubr.f32.gmra.mrb[0].mxu0 %v5022
        %v5102 = vpop.f32.mrb[0].mxu0
        %v5103 = vadd.f32 0.0, %v5102
        %v5104 = vpop.f32.mrb[0].mxu0
        %5105 = vmatprep.mubr.f32.mxu0 0.0
        %5106 = vmatmul.mubr.f32.gmra.mrb[0].mxu0 %v5024
        %v5107 = vpop.f32.mrb[0].mxu0
        %v5108 = vadd.f32 0.0, %v5107
        %v5109 = vpop.f32.mrb[0].mxu0
        %5110 = vdwg.mxu0
        %5111 = vrot.lane.b32.xlu0 %v169, 55
        %v5112 = vpop.permute.xlu0 %5111
        %5113 = vrot.lane.b32.xlu0 %v170, 55
        %v5114 = vpop.permute.xlu0 %5113
        %5115 = vrot.lane.b32.xlu0 %v171, 55
        %v5116 = vpop.permute.xlu0 %5115
        %5117 = vrot.lane.b32.xlu0 %v172, 55
        %v5118 = vpop.permute.xlu0 %5117
        %v5119 = vsel %vm3638, %v5112, 0
        %v5121 = vsel %vm3638, %v5114, 0
        %v5123 = vsel %vm3638, %v5116, 0
        %v5125 = vsel %vm3638, %v5118, 0
        %v5128 = vsel %vm3703, %v4949, 0
        %5130 = vmatprep.subr.mxu0 0.0
        %5131 = vmatpush1.msra.mxu0 %v5128
        %5132 = vmatprep.subr.mxu0 0.0
        %5133 = vmatpush1.msra.mxu0 0.0
        %5134 = vmatprep.subr.mxu0 0.0
        %5135 = vmatpush1.msra.mxu0 0.0
        %5136 = vmatprep.subr.mxu0 0.0
        %5137 = vmatpush1.msra.mxu0 0.0
        %5138 = vmatprep.subr.mxu0 0.0
        %5139 = vmatpush1.msra.mxu0 0.0
        %5140 = vmatprep.subr.mxu0 0.0
        %5141 = vmatpush1.msra.mxu0 0.0
        %5142 = vmatprep.subr.mxu0 0.0
        %5143 = vmatpush1.msra.mxu0 0.0
        %5144 = vmatprep.subr.mxu0 0.0
        %5145 = vmatpush1.msra.mxu0 0.0
        %5146 = vmatprep.subr.mxu0 0.0
        %5147 = vmatpush1.msra.mxu0 0.0
        %5148 = vmatprep.subr.mxu0 0.0
        %5149 = vmatpush1.msra.mxu0 0.0
        %5150 = vmatprep.subr.mxu0 0.0
        %5151 = vmatpush1.msra.mxu0 0.0
        %5152 = vmatprep.subr.mxu0 0.0
        %5153 = vmatpush1.msra.mxu0 0.0
        %5154 = vmatprep.subr.mxu0 0.0
        %5155 = vmatpush1.msra.mxu0 0.0
        %5156 = vmatprep.subr.mxu0 0.0
        %5157 = vmatpush1.msra.mxu0 0.0
        %5158 = vmatprep.subr.mxu0 0.0
        %5159 = vmatpush1.msra.mxu0 0.0
        %5160 = vmatprep.subr.mxu0 0.0
        %5161 = vmatpush1.msra.mxu0 0.0
        %5162 = vmatprep.subr.mxu0 0.0
        %5163 = vmatpush1.msra.mxu0 0.0
        %5164 = vmatprep.subr.mxu0 0.0
        %5165 = vmatpush1.msra.mxu0 0.0
        %5166 = vmatprep.subr.mxu0 0.0
        %5167 = vmatpush1.msra.mxu0 0.0
        %5168 = vmatprep.subr.mxu0 0.0
        %5169 = vmatpush1.msra.mxu0 0.0
        %5170 = vmatprep.subr.mxu0 0.0
        %5171 = vmatpush1.msra.mxu0 0.0
        %5172 = vmatprep.subr.mxu0 0.0
        %5173 = vmatpush1.msra.mxu0 0.0
        %5174 = vmatprep.subr.mxu0 0.0
        %5175 = vmatpush1.msra.mxu0 0.0
        %5176 = vmatprep.subr.mxu0 0.0
        %5177 = vmatpush1.msra.mxu0 0.0
        %5178 = vmatprep.subr.mxu0 0.0
        %5179 = vmatpush1.msra.mxu0 0.0
        %5180 = vmatprep.subr.mxu0 0.0
        %5181 = vmatpush1.msra.mxu0 0.0
        %5182 = vmatprep.subr.mxu0 0.0
        %5183 = vmatpush1.msra.mxu0 0.0
        %5184 = vmatprep.subr.mxu0 0.0
        %5185 = vmatpush1.msra.mxu0 0.0
        %5186 = vmatprep.subr.mxu0 0.0
        %5187 = vmatpush1.msra.mxu0 0.0
        %5188 = vmatprep.subr.mxu0 0.0
        %5189 = vmatpush1.msra.mxu0 0.0
        %5190 = vmatprep.subr.mxu0 0.0
        %5191 = vmatpush1.msra.mxu0 0.0
        %5192 = vmatprep.subr.mxu0 0.0
        %5193 = vmatpush1.msra.mxu0 0.0
        %5194 = vmatprep.mubr.f32.mxu0 0.0
        %5195 = vmatmul.mubr.f32.gmra.mrb[0].mxu0 %v5119
        %v5196 = vpop.f32.mrb[0].mxu0
        %v5197 = vadd.f32 %v5093, %v5196
        %v5198 = vpop.f32.mrb[0].mxu0
        %5199 = vmatprep.mubr.f32.mxu0 0.0
        %5200 = vmatmul.mubr.f32.gmra.mrb[0].mxu0 %v5121
        %v5201 = vpop.f32.mrb[0].mxu0
        %v5202 = vadd.f32 %v5098, %v5201
        %v5203 = vpop.f32.mrb[0].mxu0
        %5204 = vmatprep.mubr.f32.mxu0 0.0
        %5205 = vmatmul.mubr.f32.gmra.mrb[0].mxu0 %v5123
        %v5206 = vpop.f32.mrb[0].mxu0
        %v5207 = vadd.f32 %v5103, %v5206
        %v5208 = vpop.f32.mrb[0].mxu0
        %5209 = vmatprep.mubr.f32.mxu0 0.0
        %5210 = vmatmul.mubr.f32.gmra.mrb[0].mxu0 %v5125
        %v5211 = vpop.f32.mrb[0].mxu0
        %v5212 = vadd.f32 %v5108, %v5211
        %v5213 = vpop.f32.mrb[0].mxu0
        %5214 = vdwg.mxu0
        %v5215 = vld [vmem:[%s2 + $0x6] sm:$0x1]
        %v5216 = vlaneseq
        %v5217 = vshrl.u32 %v5216, 7
        %v5218 = vsub.s32 0, %v5217
        %v5219 = vrot.slane %v5215, %v5218
        %v5220 = vadd.f32 %v5197, %v5219
        %v5221 = vadd.f32 %v5202, %v5219
        %v5222 = vadd.f32 %v5207, %v5219
        %v5223 = vadd.f32 %v5212, %v5219
        %v5224 = vmax.f32 %v5220, 0.0
        %v5225 = vmax.f32 %v5221, 0.0
        %v5226 = vmax.f32 %v5222, 0.0
        %v5227 = vmax.f32 %v5223, 0.0
        %v5228 = vld [vmem:[%s1 + $0xd8] sm:$0xff]
        %v5229 = vld [vmem:[%s1 + $0xe0] sm:$0xff]
        %v5230 = vld [vmem:[%s1 + $0xe8] sm:$0xff]
        %v5231 = vld [vmem:[%s1 + $0xf0] sm:$0xff]
        %v5232 = vld [vmem:[%s1 + $0xf8] sm:$0xff]
        %v5233 = vld [vmem:[%s1 + $0x100] sm:$0xff]
        %v5234 = vld [vmem:[%s1 + $0x108] sm:$0xff]
        %v5235 = vld [vmem:[%s1 + $0x110] sm:$0xff]
        %v5236 = vld [vmem:[%s2 + $0x7] sm:$0x1]
        %v5237 = vlaneseq
        %v5238 = vshrl.u32 %v5237, 7
        %v5239 = vsub.s32 0, %v5238
        %v5240 = vrot.slane %v5236, %v5239
        %v5242 = vsel %vm2926, %v5224, 0
        %v5245 = vsel %vm2926, %v5225, 0
        %v5248 = vsel %vm2926, %v5226, 0
        %v5251 = vsel %vm2926, %v5227, 0
        %5253 = vmatprep.subr.mxu0 0.0
        %5254 = vmatpush1.msra.mxu0 %v5228
        %5255 = vmatprep.subr.mxu0 0.0
        %5256 = vmatpush1.msra.mxu0 %v5229
        %5257 = vmatprep.subr.mxu0 0.0
        %5258 = vmatpush1.msra.mxu0 %v5230
        %5259 = vmatprep.subr.mxu0 0.0
        %5260 = vmatpush1.msra.mxu0 %v5231
        %5261 = vmatprep.subr.mxu0 0.0
        %5262 = vmatpush1.msra.mxu0 %v5232
        %5263 = vmatprep.subr.mxu0 0.0
        %5264 = vmatpush1.msra.mxu0 %v5233
        %5265 = vmatprep.subr.mxu0 0.0
        %5266 = vmatpush1.msra.mxu0 %v5234
        %5267 = vmatprep.subr.mxu0 0.0
        %5268 = vmatpush1.msra.mxu0 %v5235
        %5269 = vmatprep.subr.mxu0 0.0
        %5270 = vmatpush1.msra.mxu0 0.0
        %5271 = vmatprep.subr.mxu0 0.0
        %5272 = vmatpush1.msra.mxu0 0.0
        %5273 = vmatprep.subr.mxu0 0.0
        %5274 = vmatpush1.msra.mxu0 0.0
        %5275 = vmatprep.subr.mxu0 0.0
        %5276 = vmatpush1.msra.mxu0 0.0
        %5277 = vmatprep.subr.mxu0 0.0
        %5278 = vmatpush1.msra.mxu0 0.0
        %5279 = vmatprep.subr.mxu0 0.0
        %5280 = vmatpush1.msra.mxu0 0.0
        %5281 = vmatprep.subr.mxu0 0.0
        %5282 = vmatpush1.msra.mxu0 0.0
        %5283 = vmatprep.subr.mxu0 0.0
        %5284 = vmatpush1.msra.mxu0 0.0
        %5285 = vmatprep.subr.mxu0 0.0
        %5286 = vmatpush1.msra.mxu0 0.0
        %5287 = vmatprep.subr.mxu0 0.0
        %5288 = vmatpush1.msra.mxu0 0.0
        %5289 = vmatprep.subr.mxu0 0.0
        %5290 = vmatpush1.msra.mxu0 0.0
        %5291 = vmatprep.subr.mxu0 0.0
        %5292 = vmatpush1.msra.mxu0 0.0
        %5293 = vmatprep.subr.mxu0 0.0
        %5294 = vmatpush1.msra.mxu0 0.0
        %5295 = vmatprep.subr.mxu0 0.0
        %5296 = vmatpush1.msra.mxu0 0.0
        %5297 = vmatprep.subr.mxu0 0.0
        %5298 = vmatpush1.msra.mxu0 0.0
        %5299 = vmatprep.subr.mxu0 0.0
        %5300 = vmatpush1.msra.mxu0 0.0
        %5301 = vmatprep.subr.mxu0 0.0
        %5302 = vmatpush1.msra.mxu0 0.0
        %5303 = vmatprep.subr.mxu0 0.0
        %5304 = vmatpush1.msra.mxu0 0.0
        %5305 = vmatprep.subr.mxu0 0.0
        %5306 = vmatpush1.msra.mxu0 0.0
        %5307 = vmatprep.subr.mxu0 0.0
        %5308 = vmatpush1.msra.mxu0 0.0
        %5309 = vmatprep.subr.mxu0 0.0
        %5310 = vmatpush1.msra.mxu0 0.0
        %5311 = vmatprep.subr.mxu0 0.0
        %5312 = vmatpush1.msra.mxu0 0.0
        %5313 = vmatprep.subr.mxu0 0.0
        %5314 = vmatpush1.msra.mxu0 0.0
        %5315 = vmatprep.subr.mxu0 0.0
        %5316 = vmatpush1.msra.mxu0 0.0
        %5317 = vmatprep.mubr.f32.mxu0 0.0
        %5318 = vmatmul.mubr.f32.gmra.mrb[0].mxu0 %v5242
        %v5319 = vpop.f32.mrb[0].mxu0
        %v5320 = vadd.f32 %v5240, %v5319
        %v5321 = vpop.f32.mrb[0].mxu0
        %5322 = vmatprep.mubr.f32.mxu0 0.0
        %5323 = vmatmul.mubr.f32.gmra.mrb[0].mxu0 %v5245
        %v5324 = vpop.f32.mrb[0].mxu0
        %v5325 = vadd.f32 %v5240, %v5324
        %v5326 = vpop.f32.mrb[0].mxu0
        %5327 = vmatprep.mubr.f32.mxu0 0.0
        %5328 = vmatmul.mubr.f32.gmra.mrb[0].mxu0 %v5248
        %v5329 = vpop.f32.mrb[0].mxu0
        %v5330 = vadd.f32 %v5240, %v5329
        %v5331 = vpop.f32.mrb[0].mxu0
        %5332 = vmatprep.mubr.f32.mxu0 0.0
        %5333 = vmatmul.mubr.f32.gmra.mrb[0].mxu0 %v5251
        %v5334 = vpop.f32.mrb[0].mxu0
        %v5335 = vadd.f32 %v5240, %v5334
        %v5336 = vpop.f32.mrb[0].mxu0
        %5337 = vdwg.mxu0
        %v5338 = vmax.f32 %v5320, 0.0
        %v5339 = vmax.f32 %v5325, 0.0
        %v5340 = vmax.f32 %v5330, 0.0
        %v5341 = vmax.f32 %v5335, 0.0
        %v5342 = vld [vmem:[%s1 + $0x118] sm:$0xff]
        %v5343 = vld [vmem:[%s1 + $0x120] sm:$0xff]
        %v5344 = vld [vmem:[%s1 + $0x128] sm:$0xff]
        %v5345 = vld [vmem:[%s1 + $0x130] sm:$0xff]
        %v5346 = vld [vmem:[%s1 + $0x138] sm:$0xff]
        %v5347 = vld [vmem:[%s1 + $0x140] sm:$0xff]
        %v5348 = vld [vmem:[%s1 + $0x148] sm:$0xff]
        %v5349 = vld [vmem:[%s1 + $0x150] sm:$0xff]
        %v5350 = vld [vmem:[%s2 + $0x8] sm:$0x1]
        %v5351 = vlaneseq
        %v5352 = vshrl.u32 %v5351, 7
        %v5353 = vsub.s32 0, %v5352
        %v5354 = vrot.slane %v5350, %v5353
        %v5356 = vsel %vm2926, %v5338, 0
        %v5359 = vsel %vm2926, %v5339, 0
        %v5362 = vsel %vm2926, %v5340, 0
        %v5365 = vsel %vm2926, %v5341, 0
        %5367 = vmatprep.subr.mxu0 0.0
        %5368 = vmatpush1.msra.mxu0 %v5342
        %5369 = vmatprep.subr.mxu0 0.0
        %5370 = vmatpush1.msra.mxu0 %v5343
        %5371 = vmatprep.subr.mxu0 0.0
        %5372 = vmatpush1.msra.mxu0 %v5344
        %5373 = vmatprep.subr.mxu0 0.0
        %5374 = vmatpush1.msra.mxu0 %v5345
        %5375 = vmatprep.subr.mxu0 0.0
        %5376 = vmatpush1.msra.mxu0 %v5346
        %5377 = vmatprep.subr.mxu0 0.0
        %5378 = vmatpush1.msra.mxu0 %v5347
        %5379 = vmatprep.subr.mxu0 0.0
        %5380 = vmatpush1.msra.mxu0 %v5348
        %5381 = vmatprep.subr.mxu0 0.0
        %5382 = vmatpush1.msra.mxu0 %v5349
        %5383 = vmatprep.subr.mxu0 0.0
        %5384 = vmatpush1.msra.mxu0 0.0
        %5385 = vmatprep.subr.mxu0 0.0
        %5386 = vmatpush1.msra.mxu0 0.0
        %5387 = vmatprep.subr.mxu0 0.0
        %5388 = vmatpush1.msra.mxu0 0.0
        %5389 = vmatprep.subr.mxu0 0.0
        %5390 = vmatpush1.msra.mxu0 0.0
        %5391 = vmatprep.subr.mxu0 0.0
        %5392 = vmatpush1.msra.mxu0 0.0
        %5393 = vmatprep.subr.mxu0 0.0
        %5394 = vmatpush1.msra.mxu0 0.0
        %5395 = vmatprep.subr.mxu0 0.0
        %5396 = vmatpush1.msra.mxu0 0.0
        %5397 = vmatprep.subr.mxu0 0.0
        %5398 = vmatpush1.msra.mxu0 0.0
        %5399 = vmatprep.subr.mxu0 0.0
        %5400 = vmatpush1.msra.mxu0 0.0
        %5401 = vmatprep.subr.mxu0 0.0
        %5402 = vmatpush1.msra.mxu0 0.0
        %5403 = vmatprep.subr.mxu0 0.0
        %5404 = vmatpush1.msra.mxu0 0.0
        %5405 = vmatprep.subr.mxu0 0.0
        %5406 = vmatpush1.msra.mxu0 0.0
        %5407 = vmatprep.subr.mxu0 0.0
        %5408 = vmatpush1.msra.mxu0 0.0
        %5409 = vmatprep.subr.mxu0 0.0
        %5410 = vmatpush1.msra.mxu0 0.0
        %5411 = vmatprep.subr.mxu0 0.0
        %5412 = vmatpush1.msra.mxu0 0.0
        %5413 = vmatprep.subr.mxu0 0.0
        %5414 = vmatpush1.msra.mxu0 0.0
        %5415 = vmatprep.subr.mxu0 0.0
        %5416 = vmatpush1.msra.mxu0 0.0
        %5417 = vmatprep.subr.mxu0 0.0
        %5418 = vmatpush1.msra.mxu0 0.0
        %5419 = vmatprep.subr.mxu0 0.0
        %5420 = vmatpush1.msra.mxu0 0.0
        %5421 = vmatprep.subr.mxu0 0.0
        %5422 = vmatpush1.msra.mxu0 0.0
        %5423 = vmatprep.subr.mxu0 0.0
        %5424 = vmatpush1.msra.mxu0 0.0
        %5425 = vmatprep.subr.mxu0 0.0
        %5426 = vmatpush1.msra.mxu0 0.0
        %5427 = vmatprep.subr.mxu0 0.0
        %5428 = vmatpush1.msra.mxu0 0.0
        %5429 = vmatprep.subr.mxu0 0.0
        %5430 = vmatpush1.msra.mxu0 0.0
        %5431 = vmatprep.mubr.f32.mxu0 0.0
        %5432 = vmatmul.mubr.f32.gmra.mrb[0].mxu0 %v5356
        %v5433 = vpop.f32.mrb[0].mxu0
        %v5434 = vadd.f32 %v5354, %v5433
        %v5435 = vpop.f32.mrb[0].mxu0
        %5436 = vmatprep.mubr.f32.mxu0 0.0
        %5437 = vmatmul.mubr.f32.gmra.mrb[0].mxu0 %v5359
        %v5438 = vpop.f32.mrb[0].mxu0
        %v5439 = vadd.f32 %v5354, %v5438
        %v5440 = vpop.f32.mrb[0].mxu0
        %5441 = vmatprep.mubr.f32.mxu0 0.0
        %5442 = vmatmul.mubr.f32.gmra.mrb[0].mxu0 %v5362
        %v5443 = vpop.f32.mrb[0].mxu0
        %v5444 = vadd.f32 %v5354, %v5443
        %v5445 = vpop.f32.mrb[0].mxu0
        %5446 = vmatprep.mubr.f32.mxu0 0.0
        %5447 = vmatmul.mubr.f32.gmra.mrb[0].mxu0 %v5365
        %v5448 = vpop.f32.mrb[0].mxu0
        %v5449 = vadd.f32 %v5354, %v5448
        %v5450 = vpop.f32.mrb[0].mxu0
        %5451 = vdwg.mxu0
        %v5452 = vmax.f32 %v5434, 0.0
        %v5453 = vmax.f32 %v5439, 0.0
        %v5454 = vmax.f32 %v5444, 0.0
        %v5455 = vmax.f32 %v5449, 0.0
        %v5456 = vsel %vm2342, %v5452, -inf
        %v5457 = vrot.slane %v5456, 4
        %v5458 = vmax.f32 %v5456, %v5457
        %v5459 = vrot.slane %v5458, 2
        %v5460 = vmax.f32 %v5458, %v5459
        %v5461 = vrot.slane %v5460, 1
        %v5462 = vmax.f32 %v5460, %v5461
        %v5463 = vsel %vm2342, %v5453, -inf
        %v5464 = vrot.slane %v5463, 4
        %v5465 = vmax.f32 %v5463, %v5464
        %v5466 = vrot.slane %v5465, 2
        %v5467 = vmax.f32 %v5465, %v5466
        %v5468 = vrot.slane %v5467, 1
        %v5469 = vmax.f32 %v5467, %v5468
        %v5470 = vsel %vm2342, %v5454, -inf
        %v5471 = vrot.slane %v5470, 4
        %v5472 = vmax.f32 %v5470, %v5471
        %v5473 = vrot.slane %v5472, 2
        %v5474 = vmax.f32 %v5472, %v5473
        %v5475 = vrot.slane %v5474, 1
        %v5476 = vmax.f32 %v5474, %v5475
        %v5477 = vsel %vm2342, %v5455, -inf
        %v5478 = vrot.slane %v5477, 4
        %v5479 = vmax.f32 %v5477, %v5478
        %v5480 = vrot.slane %v5479, 2
        %v5481 = vmax.f32 %v5479, %v5480
        %v5482 = vrot.slane %v5481, 1
        %v5483 = vmax.f32 %v5481, %v5482
        %v5484 = vld [vmem:[%s1 + $0x158] sm:$0xff]
        %v5485 = vld [vmem:[%s1 + $0x160] sm:$0xff]
        %v5486 = vld [vmem:[%s1 + $0x168] sm:$0xff]
        %v5487 = vld [vmem:[%s1 + $0x170] sm:$0xff]
        %v5488 = vld [vmem:[%s2 + $0x9] sm:$0x1]
        %v5489 = vlaneseq
        %v5490 = vshrl.u32 %v5489, 7
        %v5491 = vsub.s32 0, %v5490
        %v5492 = vrot.slane %v5488, %v5491
        %v5497 = vsel %vm2855, %v5469, %v5462
        %v5498 = vsel %vm2857, %v5476, %v5497
        %v5499 = vsel %vm2859, %v5483, %v5498
        %v5500 = vsel %vm2342, %v5499, 0
        %5502 = vmatprep.subr.mxu0 0.0
        %5503 = vmatpush1.msra.mxu0 %v5484
        %5504 = vmatprep.subr.mxu0 0.0
        %5505 = vmatpush1.msra.mxu0 %v5485
        %5506 = vmatprep.subr.mxu0 0.0
        %5507 = vmatpush1.msra.mxu0 %v5486
        %5508 = vmatprep.subr.mxu0 0.0
        %5509 = vmatpush1.msra.mxu0 %v5487
        %5510 = vmatprep.subr.mxu0 0.0
        %5511 = vmatpush1.msra.mxu0 0.0
        %5512 = vmatprep.subr.mxu0 0.0
        %5513 = vmatpush1.msra.mxu0 0.0
        %5514 = vmatprep.subr.mxu0 0.0
        %5515 = vmatpush1.msra.mxu0 0.0
        %5516 = vmatprep.subr.mxu0 0.0
        %5517 = vmatpush1.msra.mxu0 0.0
        %5518 = vmatprep.subr.mxu0 0.0
        %5519 = vmatpush1.msra.mxu0 0.0
        %5520 = vmatprep.subr.mxu0 0.0
        %5521 = vmatpush1.msra.mxu0 0.0
        %5522 = vmatprep.subr.mxu0 0.0
        %5523 = vmatpush1.msra.mxu0 0.0
        %5524 = vmatprep.subr.mxu0 0.0
        %5525 = vmatpush1.msra.mxu0 0.0
        %5526 = vmatprep.subr.mxu0 0.0
        %5527 = vmatpush1.msra.mxu0 0.0
        %5528 = vmatprep.subr.mxu0 0.0
        %5529 = vmatpush1.msra.mxu0 0.0
        %5530 = vmatprep.subr.mxu0 0.0
        %5531 = vmatpush1.msra.mxu0 0.0
        %5532 = vmatprep.subr.mxu0 0.0
        %5533 = vmatpush1.msra.mxu0 0.0
        %5534 = vmatprep.subr.mxu0 0.0
        %5535 = vmatpush1.msra.mxu0 0.0
        %5536 = vmatprep.subr.mxu0 0.0
        %5537 = vmatpush1.msra.mxu0 0.0
        %5538 = vmatprep.subr.mxu0 0.0
        %5539 = vmatpush1.msra.mxu0 0.0
        %5540 = vmatprep.subr.mxu0 0.0
        %5541 = vmatpush1.msra.mxu0 0.0
        %5542 = vmatprep.subr.mxu0 0.0
        %5543 = vmatpush1.msra.mxu0 0.0
        %5544 = vmatprep.subr.mxu0 0.0
        %5545 = vmatpush1.msra.mxu0 0.0
        %5546 = vmatprep.subr.mxu0 0.0
        %5547 = vmatpush1.msra.mxu0 0.0
        %5548 = vmatprep.subr.mxu0 0.0
        %5549 = vmatpush1.msra.mxu0 0.0
        %5550 = vmatprep.subr.mxu0 0.0
        %5551 = vmatpush1.msra.mxu0 0.0
        %5552 = vmatprep.subr.mxu0 0.0
        %5553 = vmatpush1.msra.mxu0 0.0
        %5554 = vmatprep.subr.mxu0 0.0
        %5555 = vmatpush1.msra.mxu0 0.0
        %5556 = vmatprep.subr.mxu0 0.0
        %5557 = vmatpush1.msra.mxu0 0.0
        %5558 = vmatprep.subr.mxu0 0.0
        %5559 = vmatpush1.msra.mxu0 0.0
        %5560 = vmatprep.subr.mxu0 0.0
        %5561 = vmatpush1.msra.mxu0 0.0
        %5562 = vmatprep.subr.mxu0 0.0
        %5563 = vmatpush1.msra.mxu0 0.0
        %5564 = vmatprep.subr.mxu0 0.0
        %5565 = vmatpush1.msra.mxu0 0.0
        %5566 = vmatprep.mubr.f32.mxu0 0.0
        %5567 = vmatmul.mubr.f32.gmra.mrb[0].mxu0 %v5500
        %v5568 = vpop.f32.mrb[0].mxu0
        %v5569 = vadd.f32 %v5492, %v5568
        %v5570 = vpop.f32.mrb[0].mxu0
        %5571 = vdwg.mxu0
        %v5572 = vmax.f32 %v5569, 0.0
        %vm5573 = vcmask 125952
        %v5574 = vsel %vm5573, %v5572, 0.0
        %5575 = vadd.xlane.f32.xlu0 %v5574
        %v5576 = vpop.xlane.xlu0 %5575
        %v5577 = vrcp.pop 16.0
        %v5578 = vmul.f32 %v5576, %v5577
        %v5579 = vsub.f32 %v5572, %v5578
        %v5580 = vmul.f32 %v5579, %v5579
        %v5581 = vsel %vm5573, %v5580, 0.0
        %5582 = vadd.xlane.f32.xlu0 %v5581
        %v5583 = vpop.xlane.xlu0 %5582
        %v5584 = vmul.f32 %v5583, %v5577
        %v5585 = vadd.f32 %v5584, 1e-12
        %v5586 = vrsqrt.pop %v5585
        %v5587 = vmul.f32 %v5579, %v5586
        %v5588 = vld [vmem:[%s1 + $0x178] sm:$0xff]
        %v5589 = vld [vmem:[%s1 + $0x180] sm:$0xff]
        %v5590 = vld [vmem:[%s2 + $0xa] sm:$0x1]
        %v5591 = vlaneseq
        %v5592 = vshrl.u32 %v5591, 7
        %v5593 = vsub.s32 0, %v5592
        %v5594 = vrot.slane %v5590, %v5593
        %v5596 = vsel %vm1052, %v5587, 0
        %5598 = vmatprep.subr.mxu0 0.0
        %5599 = vmatpush1.msra.mxu0 %v5588
        %5600 = vmatprep.subr.mxu0 0.0
        %5601 = vmatpush1.msra.mxu0 %v5589
        %5602 = vmatprep.subr.mxu0 0.0
        %5603 = vmatpush1.msra.mxu0 0.0
        %5604 = vmatprep.subr.mxu0 0.0
        %5605 = vmatpush1.msra.mxu0 0.0
        %5606 = vmatprep.subr.mxu0 0.0
        %5607 = vmatpush1.msra.mxu0 0.0
        %5608 = vmatprep.subr.mxu0 0.0
        %5609 = vmatpush1.msra.mxu0 0.0
        %5610 = vmatprep.subr.mxu0 0.0
        %5611 = vmatpush1.msra.mxu0 0.0
        %5612 = vmatprep.subr.mxu0 0.0
        %5613 = vmatpush1.msra.mxu0 0.0
        %5614 = vmatprep.subr.mxu0 0.0
        %5615 = vmatpush1.msra.mxu0 0.0
        %5616 = vmatprep.subr.mxu0 0.0
        %5617 = vmatpush1.msra.mxu0 0.0
        %5618 = vmatprep.subr.mxu0 0.0
        %5619 = vmatpush1.msra.mxu0 0.0
        %5620 = vmatprep.subr.mxu0 0.0
        %5621 = vmatpush1.msra.mxu0 0.0
        %5622 = vmatprep.subr.mxu0 0.0
        %5623 = vmatpush1.msra.mxu0 0.0
        %5624 = vmatprep.subr.mxu0 0.0
        %5625 = vmatpush1.msra.mxu0 0.0
        %5626 = vmatprep.subr.mxu0 0.0
        %5627 = vmatpush1.msra.mxu0 0.0
        %5628 = vmatprep.subr.mxu0 0.0
        %5629 = vmatpush1.msra.mxu0 0.0
        %5630 = vmatprep.subr.mxu0 0.0
        %5631 = vmatpush1.msra.mxu0 0.0
        %5632 = vmatprep.subr.mxu0 0.0
        %5633 = vmatpush1.msra.mxu0 0.0
        %5634 = vmatprep.subr.mxu0 0.0
        %5635 = vmatpush1.msra.mxu0 0.0
        %5636 = vmatprep.subr.mxu0 0.0
        %5637 = vmatpush1.msra.mxu0 0.0
        %5638 = vmatprep.subr.mxu0 0.0
        %5639 = vmatpush1.msra.mxu0 0.0
        %5640 = vmatprep.subr.mxu0 0.0
        %5641 = vmatpush1.msra.mxu0 0.0
        %5642 = vmatprep.subr.mxu0 0.0
        %5643 = vmatpush1.msra.mxu0 0.0
        %5644 = vmatprep.subr.mxu0 0.0
        %5645 = vmatpush1.msra.mxu0 0.0
        %5646 = vmatprep.subr.mxu0 0.0
        %5647 = vmatpush1.msra.mxu0 0.0
        %5648 = vmatprep.subr.mxu0 0.0
        %5649 = vmatpush1.msra.mxu0 0.0
        %5650 = vmatprep.subr.mxu0 0.0
        %5651 = vmatpush1.msra.mxu0 0.0
        %5652 = vmatprep.subr.mxu0 0.0
        %5653 = vmatpush1.msra.mxu0 0.0
        %5654 = vmatprep.subr.mxu0 0.0
        %5655 = vmatpush1.msra.mxu0 0.0
        %5656 = vmatprep.subr.mxu0 0.0
        %5657 = vmatpush1.msra.mxu0 0.0
        %5658 = vmatprep.subr.mxu0 0.0
        %5659 = vmatpush1.msra.mxu0 0.0
        %5660 = vmatprep.subr.mxu0 0.0
        %5661 = vmatpush1.msra.mxu0 0.0
        %5662 = vmatprep.mubr.f32.mxu0 0.0
        %5663 = vmatmul.mubr.f32.gmra.mrb[0].mxu0 %v5596
        %v5664 = vpop.f32.mrb[0].mxu0
        %v5665 = vadd.f32 %v5594, %v5664
        %v5666 = vpop.f32.mrb[0].mxu0
        %5667 = vdwg.mxu0
        %5668 = vst [vmem:[%s163] sm:$0xf] %v5665
        %s5669 = sand.u32 %s93, 1
        %s5670 = scalar_lea.sflag [#allocation3], %s5669
        %s5671 = sand.u32 %s93, 1
        %s5672 = smul.addr %s5671, 4
        %s5673 = scalar_lea.vmem [#allocation2], %s5672
        // Predicated region
        $region33: #{pcd_classifier_forward.1} parent=31 // pred_check
          %p5674 = pneg %p103
        $region34: #{pcd_classifier_forward.1} parent=31 // pred_check_branch
          %5676 = sbr.rel (%p5674) target = $region36
        $region35: #{pcd_classifier_forward.1} parent=31 // pred_region
          %s5678 = ssub.s32 64, 64
          %5679 = vsyncadd %s5670, %s5678
          %s5680 = smul.addr %s17, 64
          %s5681 = scalar_lea.hbm %s3, %s5680
          %s5683 = sshll.u32 %s5673, 4
          %s5684 = int_to_ptr.vmem [resolvable:$true] %s5683
          %5686 = dma.vmem_to_hbm [thread:$0]  %s5684, 64, %s5681, %s5670
        $region36: #{pcd_classifier_forward.1} parent=31 // pred_fallthru
          _
      $region32: #{pcd_classifier_forward.1} parent=5 // pred_fallthru
        _
      %p5687 = scmp.le.s32.totalorder 2, %s12
      // Predicated region
      $region37: #{pcd_classifier_forward.1} parent=5 // pred_check
        %p5688 = pneg %p5687
      $region38: #{pcd_classifier_forward.1} parent=5 // pred_check_branch
        %5690 = sbr.rel (%p5688) target = $region40
      $region39: #{pcd_classifier_forward.1} parent=5 // pred_region
        %s5691 = ssub.s32 %s12, 2
        // Predicated region
        $region41: #{pcd_classifier_forward.1} parent=39 // pred_check
          %p5692 = pneg %p109
        $region42: #{pcd_classifier_forward.1} parent=39 // pred_check_branch
          %5694 = sbr.rel (%p5692) target = $region44
        $region43: #{pcd_classifier_forward.1} parent=39 // pred_region
          %s5695 = sand.u32 %s94, 1
          %s5696 = scalar_lea.sflag [#allocation3], %s5695
          %s5697 = sand.u32 %s94, 1
          %s5698 = smul.addr %s5697, 4
          %s5699 = scalar_lea.vmem [#allocation2], %s5698
          %5700 = dma.done %s5696, 64
        $region44: #{pcd_classifier_forward.1} parent=39 // pred_fallthru
          _
      $region40: #{pcd_classifier_forward.1} parent=5 // pred_fallthru
        _
    $region6: #{pcd_classifier_forward.1} parent=1 // loop_footer
      %s16 = sadd.s32 1, %s12
    $region7: #{pcd_classifier_forward.1} parent=1 // loop_footer_branch
      %11 = sbr.rel target = $region3
    $region8: #{pcd_classifier_forward.1} parent=1 // loop_exit
      _
    %5701 = vsyncpa [#allocation3], 1
    %s5702 = scalar_lea.sflag [#allocation3], 1
    %5703 = vsyncpa %s5702, 1

</llo_original>
